<compile_context>
chip_gen: v7x
topology: tpu7x:2x2x1
jax: 0.10.0
libtpu: 0.0.40
codegen_flags: <defaults>
</compile_context>

<pallas_src>
import functools
import math

import numpy as np
import jax
import jax.numpy as jnp
from jax.experimental import pallas as pl
from jax.experimental.pallas import tpu as pltpu

_LN_EPS = 1e-5          # nn.LayerNorm default
_NEG_INF = -1e30
_VMEM_LIMIT = 32 * 1024 * 1024


# ----------------------------------------------------------------------------
# Small helpers
# ----------------------------------------------------------------------------
def _round_up(x, m):
    return ((x + m - 1) // m) * m


def _row_tile(m, cap=256):
    """Row tile for the [M, *] kernels (multiple of 8, >= 2 grid steps when possible)."""
    if m <= 8:
        return m
    return min(cap, _round_up(-(-m // 2), 8), _round_up(m, 8))


def _seq_tile(length, cap=256):
    """Sequence tile for attention: prefer a multiple of 8 that divides L."""
    if length <= cap:
        return length
    best = cap
    for t in range(8, cap + 1, 8):
        if length % t == 0:
            best = t
    return best


def _layernorm(x, gamma, beta):
    mean = jnp.mean(x, axis=-1, keepdims=True)
    var = jnp.mean((x - mean) ** 2, axis=-1, keepdims=True)
    return (x - mean) * jax.lax.rsqrt(var + _LN_EPS) * gamma + beta


def _erf(x):
    # Abramowitz & Stegun 7.1.26, |abs err| < 1.5e-7 (keeps nn.GELU() exact semantics).
    a1, a2, a3 = 0.254829592, -0.284496736, 1.421413741
    a4, a5, p = -1.453152027, 1.061405429, 0.3275911
    s = jnp.where(x >= 0.0, 1.0, -1.0)
    ax = jnp.abs(x)
    t = 1.0 / (1.0 + p * ax)
    poly = ((((a5 * t + a4) * t + a3) * t + a2) * t + a1) * t
    return s * (1.0 - poly * jnp.exp(-ax * ax))


def _gelu_exact(x):
    # TODO(synk): tanh-approx GELU would move this polynomial to the idle EUP
    # slot on v6e/v7x; kept exact for nn.GELU() parity.
    return 0.5 * x * (1.0 + _erf(x * (1.0 / math.sqrt(2.0))))


def _silu(x):
    return x * (1.0 / (1.0 + jnp.exp(-x)))


def _rotate_half(x):
    half = x.shape[-1] // 2
    return jnp.concatenate([-x[..., half:], x[..., :half]], axis=-1)


# ----------------------------------------------------------------------------
# Kernel 1: input_proj -> concatenated q/k/v projection, three [M, HR] outputs
# ----------------------------------------------------------------------------
def _qkv_kernel(x_ref, w_in_ref, w_qkv_ref, q_ref, k_ref, v_ref, *, hr):
    x = x_ref[...].astype(jnp.bfloat16)
    h = jnp.dot(x, w_in_ref[...], preferred_element_type=jnp.float32)
    qkv = jnp.dot(h.astype(jnp.bfloat16), w_qkv_ref[...],
                  preferred_element_type=jnp.float32)
    q_ref[...] = qkv[:, :hr].astype(q_ref.dtype)
    k_ref[...] = qkv[:, hr:2 * hr].astype(k_ref.dtype)
    v_ref[...] = qkv[:, 2 * hr:].astype(v_ref.dtype)


def pallas_input_qkv_proj(x2d, w_in, w_qkv):
    """x2d: [M, E] f32, w_in: [E, HR] bf16, w_qkv: [HR, 3*HR] bf16 -> 3 x [M, HR] bf16."""
    M, E = x2d.shape
    HR = w_in.shape[1]
    TM = _row_tile(M)
    out = jax.ShapeDtypeStruct((M, HR), jnp.bfloat16)
    # TODO(synk): at realistic E/HR, tile K/N of the weight blocks with a VMEM
    # accumulator ("arbitrary" reduction axis) and single-buffer (pl.Buffered(1))
    # the constant-index weight specs.
    return pl.pallas_call(
        functools.partial(_qkv_kernel, hr=HR),
        out_shape=(out, out, out),
        grid=(pl.cdiv(M, TM),),
        in_specs=[
            pl.BlockSpec((TM, E), lambda i: (i, 0)),
            pl.BlockSpec((E, HR), lambda i: (0, 0)),
            pl.BlockSpec((HR, 3 * HR), lambda i: (0, 0)),
        ],
        out_specs=(pl.BlockSpec((TM, HR), lambda i: (i, 0)),
                   pl.BlockSpec((TM, HR), lambda i: (i, 0)),
                   pl.BlockSpec((TM, HR), lambda i: (i, 0))),
        compiler_params=pltpu.CompilerParams(
            dimension_semantics=("parallel",), vmem_limit_bytes=_VMEM_LIMIT),
    )(x2d, w_in, w_qkv)


# ----------------------------------------------------------------------------
# Kernel 2: flash-style causal attention with fused RoPE, lane-dense [B, L, HR]
# ----------------------------------------------------------------------------
def _attn_kernel(q_ref, k_ref, v_ref, cosq_ref, sinq_ref, cosk_ref, sink_ref,
                 o_ref, m_ref, l_ref, acc_ref, *, num_heads, head_dim, seq_len):
    qi = pl.program_id(1)
    ki = pl.program_id(2)
    tq = q_ref.shape[1]
    tk = k_ref.shape[1]

    @pl.when(ki == 0)
    def _init():
        m_ref[...] = jnp.full(m_ref.shape, _NEG_INF, dtype=m_ref.dtype)
        l_ref[...] = jnp.zeros(l_ref.shape, dtype=l_ref.dtype)
        acc_ref[...] = jnp.zeros(acc_ref.shape, dtype=acc_ref.dtype)

    # Skip KV tiles that are entirely above the causal diagonal.
    @pl.when(ki * tk <= qi * tq + (tq - 1))
    def _compute():
        q_pos = qi * tq + jax.lax.broadcasted_iota(jnp.int32, (tq, tk), 0)
        k_pos = ki * tk + jax.lax.broadcasted_iota(jnp.int32, (tq, tk), 1)
        keep = (k_pos <= q_pos) & (k_pos < seq_len)
        bias = jnp.where(keep, 0.0, _NEG_INF).astype(jnp.float32)

        cos_q = cosq_ref[...]          # [tq, dh], pre-scaled by 1/sqrt(dh)
        sin_q = sinq_ref[...]
        cos_k = cosk_ref[...]          # [tk, dh]
        sin_k = sink_ref[...]

        q_all = q_ref[0].astype(jnp.float32)   # [tq, HR]
        k_all = k_ref[0].astype(jnp.float32)   # [tk, HR]
        v_all = v_ref[0]                        # [tk, HR] (bf16)

        for h in range(num_heads):
            sl = slice(h * head_dim, (h + 1) * head_dim)
            q_h = q_all[:, sl]
            k_h = k_all[:, sl]
            # RoPE (scale folded into cos_q/sin_q)
            q_h = q_h * cos_q + _rotate_half(q_h) * sin_q
            k_h = k_h * cos_k + _rotate_half(k_h) * sin_k

            s = jax.lax.dot_general(
                q_h.astype(jnp.bfloat16), k_h.astype(jnp.bfloat16),
                (((1,), (1,)), ((), ())),
                preferred_element_type=jnp.float32) + bias          # [tq, tk]

            m_prev = m_ref[h]
            m_new = jnp.maximum(m_prev, jnp.max(s, axis=-1, keepdims=True))
            alpha = jnp.exp(m_prev - m_new)
            p = jnp.exp(s - m_new)
            l_ref[h] = alpha * l_ref[h] + jnp.sum(p, axis=-1, keepdims=True)
            m_ref[h] = m_new
            pv = jnp.dot(p.astype(jnp.bfloat16),
                         v_all[:, sl].astype(jnp.bfloat16),
                         preferred_element_type=jnp.float32)        # [tq, dh]
            acc_ref[h] = alpha * acc_ref[h] + pv

    @pl.when(ki == pl.num_programs(2) - 1)
    def _finalize():
        outs = [acc_ref[h] * pl.reciprocal(l_ref[h], approx=True)
                for h in range(num_heads)]
        o_ref[0] = jnp.concatenate(outs, axis=-1).astype(o_ref.dtype)


def pallas_causal_attention_rope(q, k, v, cos, sin, scale):
    """q/k/v: [B, L, HR] bf16, cos/sin: [L, dh] f32 -> [B, L, HR] f32."""
    B, L, HR = q.shape
    dh = cos.shape[-1]
    H = HR // dh
    T = _seq_tile(L)
    nq = pl.cdiv(L, T)
    nk = pl.cdiv(L, T)
    cos_q = cos * scale                      # fold 1/sqrt(dh) into q's RoPE tables
    sin_q = sin * scale

    q_spec = pl.BlockSpec((1, T, HR), lambda b, i, j: (b, i, 0))
    kv_spec = pl.BlockSpec((1, T, HR), lambda b, i, j: (b, j, 0))
    tq_spec = pl.BlockSpec((T, dh), lambda b, i, j: (i, 0))
    tk_spec = pl.BlockSpec((T, dh), lambda b, i, j: (j, 0))

    return pl.pallas_call(
        functools.partial(_attn_kernel, num_heads=H, head_dim=dh, seq_len=L),
        out_shape=jax.ShapeDtypeStruct((B, L, HR), jnp.float32),
        grid=(B, nq, nk),
        in_specs=[q_spec, kv_spec, kv_spec, tq_spec, tq_spec, tk_spec, tk_spec],
        out_specs=pl.BlockSpec((1, T, HR), lambda b, i, j: (b, i, 0)),
        scratch_shapes=[pltpu.VMEM((H, T, 1), jnp.float32),
                        pltpu.VMEM((H, T, 1), jnp.float32),
                        pltpu.VMEM((H, T, dh), jnp.float32)],
        compiler_params=pltpu.CompilerParams(
            dimension_semantics=("parallel", "parallel", "arbitrary"),
            vmem_limit_bytes=_VMEM_LIMIT),
    )(q, k, v, cos_q, sin_q, cos, sin)


# ----------------------------------------------------------------------------
# Kernel 3: norm1 -> FFN (Linear+b, GELU, Linear+b) -> +residual -> norm2
# ----------------------------------------------------------------------------
def _ffn_block_kernel(attn_ref, resid_ref, g1_ref, b1_ref, w1_ref, bb1_ref,
                      w2_ref, bb2_ref, g2_ref, b2_ref, o_ref):
    a = _layernorm(attn_ref[...].astype(jnp.float32), g1_ref[...], b1_ref[...])
    h = jnp.dot(a.astype(jnp.bfloat16), w1_ref[...],
                preferred_element_type=jnp.float32) + bb1_ref[...]
    h = _gelu_exact(h)
    f = jnp.dot(h.astype(jnp.bfloat16), w2_ref[...],
                preferred_element_type=jnp.float32) + bb2_ref[...]
    y = resid_ref[...].astype(jnp.float32) + f
    o_ref[...] = _layernorm(y, g2_ref[...], b2_ref[...]).astype(o_ref.dtype)


def pallas_ffn_block(attn2d, resid2d, g1, b1, w1, bb1, w2, bb2, g2, b2):
    """attn2d: [M, HR], resid2d: [M, E], weights bf16 -> [M, E] f32."""
    M, HR = attn2d.shape
    E = resid2d.shape[1]
    F = w1.shape[1]
    TM = _row_tile(M)
    vec = lambda d: pl.BlockSpec((1, d), lambda i: (0, 0))
    # TODO(synk): at realistic HR/E, tile K/N of w1/w2 (pl.Buffered(1) on the
    # constant weight specs) instead of keeping full blocks resident.
    return pl.pallas_call(
        _ffn_block_kernel,
        out_shape=jax.ShapeDtypeStruct((M, E), jnp.float32),
        grid=(pl.cdiv(M, TM),),
        in_specs=[
            pl.BlockSpec((TM, HR), lambda i: (i, 0)),
            pl.BlockSpec((TM, E), lambda i: (i, 0)),
            vec(HR), vec(HR),
            pl.BlockSpec((HR, F), lambda i: (0, 0)), vec(F),
            pl.BlockSpec((F, E), lambda i: (0, 0)), vec(E),
            vec(E), vec(E),
        ],
        out_specs=pl.BlockSpec((TM, E), lambda i: (i, 0)),
        compiler_params=pltpu.CompilerParams(
            dimension_semantics=("parallel",), vmem_limit_bytes=_VMEM_LIMIT),
    )(attn2d, resid2d, g1.reshape(1, -1), b1.reshape(1, -1), w1,
      bb1.reshape(1, -1), w2, bb2.reshape(1, -1), g2.reshape(1, -1),
      b2.reshape(1, -1))


# ----------------------------------------------------------------------------
# Kernel 4: norm_importance -> shared first dot -> two half dots (no zero pads)
# ----------------------------------------------------------------------------
def _importance_kernel(x_ref, g_ref, b_ref, w1_ref, wq2_ref, wk2_ref,
                       qo_ref, ko_ref, *, inter):
    x = _layernorm(x_ref[...].astype(jnp.float32), g_ref[...], b_ref[...])
    h = _silu(jnp.dot(x.astype(jnp.bfloat16), w1_ref[...],
                      preferred_element_type=jnp.float32))
    hq = h[:, :inter].astype(jnp.bfloat16)
    hk = h[:, inter:].astype(jnp.bfloat16)
    qo_ref[...] = jnp.dot(hq, wq2_ref[...],
                          preferred_element_type=jnp.float32).astype(qo_ref.dtype)
    ko_ref[...] = jnp.dot(hk, wk2_ref[...],
                          preferred_element_type=jnp.float32).astype(ko_ref.dtype)


def pallas_importance_proj(hs2d, g, b, w1_cat, wq2, wk2):
    """hs2d: [M, E], w1_cat: [E, 2I] bf16, wq2/wk2: [I, NHd] bf16 -> 2 x [M, NHd] f32."""
    M, E = hs2d.shape
    I2 = w1_cat.shape[1]
    NO = wq2.shape[1]
    TM = _row_tile(M)
    out = jax.ShapeDtypeStruct((M, NO), jnp.float32)
    return pl.pallas_call(
        functools.partial(_importance_kernel, inter=I2 // 2),
        out_shape=(out, out),
        grid=(pl.cdiv(M, TM),),
        in_specs=[
            pl.BlockSpec((TM, E), lambda i: (i, 0)),
            pl.BlockSpec((1, E), lambda i: (0, 0)),
            pl.BlockSpec((1, E), lambda i: (0, 0)),
            pl.BlockSpec((E, I2), lambda i: (0, 0)),
            pl.BlockSpec((I2 // 2, NO), lambda i: (0, 0)),
            pl.BlockSpec((I2 // 2, NO), lambda i: (0, 0)),
        ],
        out_specs=(pl.BlockSpec((TM, NO), lambda i: (i, 0)),
                   pl.BlockSpec((TM, NO), lambda i: (i, 0))),
        compiler_params=pltpu.CompilerParams(
            dimension_semantics=("parallel",), vmem_limit_bytes=_VMEM_LIMIT),
    )(hs2d, g.reshape(1, -1), b.reshape(1, -1), w1_cat, wq2, wk2)


# ----------------------------------------------------------------------------
# RoPE tables (llama3 scaling) — tiny, stay as XLA glue
# ----------------------------------------------------------------------------
def llama3_inv_freq(dim, base, factor=32.0, low_freq_factor=1.0,
                    high_freq_factor=4.0, original_max_pos=8192):
    inv_freq = 1.0 / (base ** (np.arange(0, dim, 2, dtype=np.float32) / dim))
    low_freq_wavelen = original_max_pos / low_freq_factor
    high_freq_wavelen = original_max_pos / high_freq_factor
    wavelen = 2.0 * np.pi / inv_freq
    inv_freq_llama = np.where(wavelen > low_freq_wavelen, inv_freq / factor, inv_freq)
    smooth = (original_max_pos / wavelen - low_freq_factor) / (
        high_freq_factor - low_freq_factor)
    smoothed = (1.0 - smooth) * inv_freq_llama / factor + smooth * inv_freq_llama
    is_medium = (~(wavelen < high_freq_wavelen)) & (~(wavelen > low_freq_wavelen))
    inv_freq_llama = np.where(is_medium, smoothed, inv_freq_llama)
    return jnp.asarray(inv_freq_llama, dtype=jnp.float32)


def rope_tables(inv_freq, seq_len):
    pos = jnp.arange(seq_len, dtype=jnp.float32)
    freqs = pos[:, None] * inv_freq[None, :]
    emb = jnp.concatenate([freqs, freqs], axis=-1)   # attention_scaling = 1.0
    return jnp.cos(emb), jnp.sin(emb)                # [L, dim] each, f32


# ----------------------------------------------------------------------------
# Parameter init (xavier-uniform; LayerNorm = (1, 0); biases = 0)
# ----------------------------------------------------------------------------
def xavier_uniform(key, fan_in, fan_out):
    a = math.sqrt(6.0 / (fan_in + fan_out))
    return jax.random.uniform(key, (fan_in, fan_out), jnp.float32, -a, a)  # [in, out]


def init_params(key, cfg):
    E = cfg["hidden_size"]
    HR = cfg["hidden_size_reduced"]
    I = cfg["intermediate_dim"]
    NHd = cfg["num_hidden_layers"] * cfg["num_heads"] * cfg["dDash"]
    ks = jax.random.split(key, 12)
    return {
        "input_proj": xavier_uniform(ks[0], E, HR),
        "q_proj_attn": xavier_uniform(ks[1], HR, HR),
        "k_proj_attn": xavier_uniform(ks[2], HR, HR),
        "v_proj_attn": xavier_uniform(ks[3], HR, HR),
        "norm1_g": jnp.ones((HR,), jnp.float32),
        "norm1_b": jnp.zeros((HR,), jnp.float32),
        "ffn_w1": xavier_uniform(ks[4], HR, 2 * HR),
        "ffn_b1": jnp.zeros((2 * HR,), jnp.float32),
        "ffn_w2": xavier_uniform(ks[5], 2 * HR, E),
        "ffn_b2": jnp.zeros((E,), jnp.float32),
        "norm2_g": jnp.ones((E,), jnp.float32),
        "norm2_b": jnp.zeros((E,), jnp.float32),
        "norm_imp_g": jnp.ones((E,), jnp.float32),
        "norm_imp_b": jnp.zeros((E,), jnp.float32),
        "q_imp_w1": xavier_uniform(ks[6], E, I),
        "q_imp_w2": xavier_uniform(ks[7], I, NHd),
        "k_imp_w1": xavier_uniform(ks[8], E, I),
        "k_imp_w2": xavier_uniform(ks[9], I, NHd),
        "inv_freq_attn": llama3_inv_freq(cfg["attn_head_dim"], cfg["rope_theta"]),
        "inv_freq_imp": llama3_inv_freq(cfg["dDash"], cfg["rope_theta"]),
    }


# ----------------------------------------------------------------------------
# Forward (mirrors TokenImportancePredictorAttentive.forward, no-cache path)
# ----------------------------------------------------------------------------
def token_importance_predictor_forward(params, hidden_states, cfg):
    B, L, E = hidden_states.shape
    H = cfg["num_heads"]
    N = cfg["num_hidden_layers"]
    HR = cfg["hidden_size_reduced"]
    dh = cfg["attn_head_dim"]
    dD = cfg["dDash"]

    x2d = hidden_states.reshape(B * L, E)

    # --- reduced self-attention block (input_proj + qkv + RoPE + attention) --
    w_in = params["input_proj"].astype(jnp.bfloat16)
    w_qkv = jnp.concatenate(
        [params["q_proj_attn"], params["k_proj_attn"], params["v_proj_attn"]],
        axis=1).astype(jnp.bfloat16)
    q2d, k2d, v2d = pallas_input_qkv_proj(x2d, w_in, w_qkv)      # 3 x [B*L, HR] bf16

    q = q2d.reshape(B, L, HR)     # lane-dense, no transposes
    k = k2d.reshape(B, L, HR)
    v = v2d.reshape(B, L, HR)

    cos_a, sin_a = rope_tables(params["inv_freq_attn"], L)       # [L, dh]
    attn = pallas_causal_attention_rope(q, k, v, cos_a, sin_a,
                                        1.0 / math.sqrt(dh))     # [B, L, HR] f32
    attn2d = attn.reshape(B * L, HR)

    # --- norm1 + FFN + residual + norm2 (single fused kernel) ---------------
    hs2d = pallas_ffn_block(attn2d, x2d,
                            params["norm1_g"], params["norm1_b"],
                            params["ffn_w1"].astype(jnp.bfloat16), params["ffn_b1"],
                            params["ffn_w2"].astype(jnp.bfloat16), params["ffn_b2"],
                            params["norm2_g"], params["norm2_b"])  # [B*L, E] f32

    # --- importance projections (shared first dot, two half second dots) ----
    w1_cat = jnp.concatenate([params["q_imp_w1"], params["k_imp_w1"]],
                             axis=1).astype(jnp.bfloat16)          # [E, 2I]
    q_imp2d, k_imp2d = pallas_importance_proj(
        hs2d, params["norm_imp_g"], params["norm_imp_b"], w1_cat,
        params["q_imp_w2"].astype(jnp.bfloat16),
        params["k_imp_w2"].astype(jnp.bfloat16))                   # 2 x [B*L, NHd]

    q_imp = q_imp2d.reshape(B, L, N, H, dD).transpose(0, 2, 3, 1, 4).reshape(B, N * H, L, dD)
    k_imp = k_imp2d.reshape(B, L, N, H, dD).transpose(0, 2, 3, 1, 4).reshape(B, N * H, L, dD)

    # TODO(synk): importance RoPE could also be folded into kernel 4; kept as
    # one XLA elementwise pass here.
    cos_i, sin_i = rope_tables(params["inv_freq_imp"], L)          # [L, dD]
    q_imp = q_imp * cos_i + _rotate_half(q_imp) * sin_i
    k_imp = k_imp * cos_i + _rotate_half(k_imp) * sin_i

    # matches torch .view(B*H, N, -1, dDash) on the contiguous [B, N*H, L, dD] buffer
    q_imp = q_imp.reshape(B * H, N, L, dD)
    k_imp = k_imp.reshape(B * H, N, L, dD)
    return q_imp, k_imp


# ----------------------------------------------------------------------------
# Main
# ----------------------------------------------------------------------------
if __name__ == "__main__":
    cfg = dict(
        hidden_size=64,            # pred_hid_size
        num_heads=2,
        num_hidden_layers=2,
        dDash=16,
        intermediate_dim=32,
        attn_reduce_factor=2,
        rope_theta=10000.0,
        max_position_embeddings=4096,
    )
    cfg["hidden_size_reduced"] = cfg["hidden_size"] // cfg["attn_reduce_factor"]   # 32
    cfg["attn_head_dim"] = cfg["hidden_size_reduced"] // cfg["num_heads"]          # 16

    key = jax.random.PRNGKey(0)
    pkey, xkey = jax.random.split(key)
    params = init_params(pkey, cfg)

    B, L = 2, 8
    hidden_states = jax.random.normal(xkey, (B, L, cfg["hidden_size"]), jnp.float32)

    fwd = jax.jit(lambda p, x: token_importance_predictor_forward(p, x, cfg))
    q_importance, k_importance = fwd(params, hidden_states)
    jax.block_until_ready((q_importance, k_importance))

    expected = (B * cfg["num_heads"], cfg["num_hidden_layers"], L, cfg["dDash"])
    assert q_importance.shape == expected, q_importance.shape
    assert k_importance.shape == expected, k_importance.shape
    assert bool(jnp.all(jnp.isfinite(q_importance)))
    assert bool(jnp.all(jnp.isfinite(k_importance)))
    print("KERNEL_OK")
</pallas_src>

<mosaic_0001>
module attributes {stable_mosaic.version = 11 : i64} {
  func.func @_attn_kernel(%arg0: i32, %arg1: i32, %arg2: i32, %arg3: memref<1x8x32xbf16, #tpu.memory_space<vmem>>, %arg4: memref<1x8x32xbf16, #tpu.memory_space<vmem>>, %arg5: memref<1x8x32xbf16, #tpu.memory_space<vmem>>, %arg6: memref<8x16xf32, #tpu.memory_space<vmem>>, %arg7: memref<8x16xf32, #tpu.memory_space<vmem>>, %arg8: memref<8x16xf32, #tpu.memory_space<vmem>>, %arg9: memref<8x16xf32, #tpu.memory_space<vmem>>, %arg10: memref<1x8x32xf32, #tpu.memory_space<vmem>>, %arg11: memref<2x8x1xf32, #tpu.memory_space<vmem>>, %arg12: memref<2x8x1xf32, #tpu.memory_space<vmem>>, %arg13: memref<2x8x16xf32, #tpu.memory_space<vmem>>) attributes {dimension_semantics = [#tpu.dimension_semantics<parallel>, #tpu.dimension_semantics<parallel>, #tpu.dimension_semantics<arbitrary>], iteration_bounds = array<i64: 2, 1, 1>, scalar_prefetch = 0 : i64, scratch_operands = 3 : i64, tpu.core_type = #tpu.core_type<tc>, window_params = [{transform_indices = @transform_0, window_bounds = array<i64: 1, 8, 32>}, {transform_indices = @transform_1, window_bounds = array<i64: 1, 8, 32>}, {transform_indices = @transform_2, window_bounds = array<i64: 1, 8, 32>}, {transform_indices = @transform_3, window_bounds = array<i64: 8, 16>}, {transform_indices = @transform_4, window_bounds = array<i64: 8, 16>}, {transform_indices = @transform_5, window_bounds = array<i64: 8, 16>}, {transform_indices = @transform_6, window_bounds = array<i64: 8, 16>}, {transform_indices = @transform_7, window_bounds = array<i64: 1, 8, 32>}]} {
    %c0_i32 = arith.constant 0 : i32
    %0 = arith.cmpi eq, %arg2, %c0_i32 : i32
    %1 = arith.extui %0 : i1 to i32
    %c0_i32_0 = arith.constant 0 : i32
    %2 = arith.cmpi ne, %1, %c0_i32_0 : i32
    scf.if %2 {
      %cst = arith.constant -1.000000e+30 : f32
      %12 = vector.broadcast %cst : f32 to vector<2x8x1xf32>
      %c0 = arith.constant 0 : index
      %c0_5 = arith.constant 0 : index
      %c0_6 = arith.constant 0 : index
      %13 = vector.load %arg11[%c0, %c0_5, %c0_6] : memref<2x8x1xf32, #tpu.memory_space<vmem>>, vector<2x8x1xf32>
      tpu.vector_store %arg11[%c0, %c0_5, %c0_6], %12 {strides = array<i32>} : memref<2x8x1xf32, #tpu.memory_space<vmem>>, vector<2x8x1xf32>,
      %cst_7 = arith.constant 0.000000e+00 : f32
      %14 = vector.broadcast %cst_7 : f32 to vector<2x8x1xf32>
      %c0_8 = arith.constant 0 : index
      %c0_9 = arith.constant 0 : index
      %c0_10 = arith.constant 0 : index
      %15 = vector.load %arg12[%c0_8, %c0_9, %c0_10] : memref<2x8x1xf32, #tpu.memory_space<vmem>>, vector<2x8x1xf32>
      tpu.vector_store %arg12[%c0_8, %c0_9, %c0_10], %14 {strides = array<i32>} : memref<2x8x1xf32, #tpu.memory_space<vmem>>, vector<2x8x1xf32>,
      %cst_11 = arith.constant 0.000000e+00 : f32
      %16 = vector.broadcast %cst_11 : f32 to vector<2x8x16xf32>
      %c0_12 = arith.constant 0 : index
      %c0_13 = arith.constant 0 : index
      %c0_14 = arith.constant 0 : index
      %17 = vector.load %arg13[%c0_12, %c0_13, %c0_14] : memref<2x8x16xf32, #tpu.memory_space<vmem>>, vector<2x8x16xf32>
      tpu.vector_store %arg13[%c0_12, %c0_13, %c0_14], %16 {strides = array<i32>} : memref<2x8x16xf32, #tpu.memory_space<vmem>>, vector<2x8x16xf32>,
    } else {
    }
    %c8_i32 = arith.constant 8 : i32
    %3 = arith.muli %arg2, %c8_i32 : i32
    %c8_i32_1 = arith.constant 8 : i32
    %4 = arith.muli %arg1, %c8_i32_1 : i32
    %c7_i32 = arith.constant 7 : i32
    %5 = arith.addi %4, %c7_i32 : i32
    %6 = arith.cmpi sle, %3, %5 : i32
    %7 = arith.extui %6 : i1 to i32
    %c0_i32_2 = arith.constant 0 : i32
    %8 = arith.cmpi ne, %7, %c0_i32_2 : i32
    scf.if %8 {
      %c8_i32_5 = arith.constant 8 : i32
      %12 = arith.muli %arg1, %c8_i32_5 : i32
      %13 = tpu.iota {dimensions = array<i32: 0>} : vector<8x8xi32>
      %14 = vector.broadcast %12 : i32 to vector<8x8xi32>
      %15 = arith.addi %14, %13 : vector<8x8xi32>
      %c8_i32_6 = arith.constant 8 : i32
      %16 = arith.muli %arg2, %c8_i32_6 : i32
      %17 = tpu.iota {dimensions = array<i32: 1>} : vector<8x8xi32>
      %18 = vector.broadcast %16 : i32 to vector<8x8xi32>
      %19 = arith.addi %18, %17 : vector<8x8xi32>
      %20 = arith.cmpi sle, %19, %15 : vector<8x8xi32>
      %c8_i32_7 = arith.constant 8 : i32
      %21 = vector.broadcast %c8_i32_7 : i32 to vector<8x8xi32>
      %22 = arith.cmpi slt, %19, %21 : vector<8x8xi32>
      %23 = arith.andi %20, %22 : vector<8x8xi1>
      %cst = arith.constant 0.000000e+00 : f32
      %cst_8 = arith.constant -1.000000e+30 : f32
      %24 = vector.broadcast %cst : f32 to vector<8x8xf32>
      %25 = vector.broadcast %cst_8 : f32 to vector<8x8xf32>
      %26 = arith.select %23, %24, %25 : vector<8x8xi1>, vector<8x8xf32>
      %c0 = arith.constant 0 : index
      %c0_9 = arith.constant 0 : index
      %27 = vector.load %arg6[%c0, %c0_9] : memref<8x16xf32, #tpu.memory_space<vmem>>, vector<8x16xf32>
      %c0_10 = arith.constant 0 : index
      %c0_11 = arith.constant 0 : index
      %28 = vector.load %arg7[%c0_10, %c0_11] : memref<8x16xf32, #tpu.memory_space<vmem>>, vector<8x16xf32>
      %c0_12 = arith.constant 0 : index
      %c0_13 = arith.constant 0 : index
      %29 = vector.load %arg8[%c0_12, %c0_13] : memref<8x16xf32, #tpu.memory_space<vmem>>, vector<8x16xf32>
      %c0_14 = arith.constant 0 : index
      %c0_15 = arith.constant 0 : index
      %30 = vector.load %arg9[%c0_14, %c0_15] : memref<8x16xf32, #tpu.memory_space<vmem>>, vector<8x16xf32>
      %c0_16 = arith.constant 0 : index
      %c0_17 = arith.constant 0 : index
      %c0_18 = arith.constant 0 : index
      %31 = vector.load %arg3[%c0_16, %c0_17, %c0_18] : memref<1x8x32xbf16, #tpu.memory_space<vmem>>, vector<1x8x32xbf16>
      %32 = vector.shape_cast %31 : vector<1x8x32xbf16> to vector<8x32xbf16>
      %33 = arith.extf %32 : vector<8x32xbf16> to vector<8x32xf32>
      %c0_19 = arith.constant 0 : index
      %c0_20 = arith.constant 0 : index
      %c0_21 = arith.constant 0 : index
      %34 = vector.load %arg4[%c0_19, %c0_20, %c0_21] : memref<1x8x32xbf16, #tpu.memory_space<vmem>>, vector<1x8x32xbf16>
      %35 = vector.shape_cast %34 : vector<1x8x32xbf16> to vector<8x32xbf16>
      %36 = arith.extf %35 : vector<8x32xbf16> to vector<8x32xf32>
      %c0_22 = arith.constant 0 : index
      %c0_23 = arith.constant 0 : index
      %c0_24 = arith.constant 0 : index
      %37 = vector.load %arg5[%c0_22, %c0_23, %c0_24] : memref<1x8x32xbf16, #tpu.memory_space<vmem>>, vector<1x8x32xbf16>
      %38 = vector.shape_cast %37 : vector<1x8x32xbf16> to vector<8x32xbf16>
      %39 = vector.extract_strided_slice %33 {offsets = [0, 0], sizes = [8, 16], strides = [1, 1]} : vector<8x32xf32> to vector<8x16xf32>
      %40 = vector.extract_strided_slice %36 {offsets = [0, 0], sizes = [8, 16], strides = [1, 1]} : vector<8x32xf32> to vector<8x16xf32>
      %41 = arith.mulf %39, %27 : vector<8x16xf32>
      %42 = vector.extract_strided_slice %39 {offsets = [0, 8], sizes = [8, 8], strides = [1, 1]} : vector<8x16xf32> to vector<8x8xf32>
      %cst_25 = arith.constant 0.000000e+00 : f32
      %43 = vector.broadcast %cst_25 : f32 to vector<8x8xf32>
      %44 = arith.subf %43, %42 : vector<8x8xf32>
      %45 = vector.extract_strided_slice %39 {offsets = [0, 0], sizes = [8, 8], strides = [1, 1]} : vector<8x16xf32> to vector<8x8xf32>
      %46 = tpu.concatenate %44, %45 in 1 : vector<8x8xf32>, vector<8x8xf32> -> vector<8x16xf32>
      %47 = arith.mulf %46, %28 : vector<8x16xf32>
      %48 = arith.addf %41, %47 : vector<8x16xf32>
      %49 = arith.mulf %40, %29 : vector<8x16xf32>
      %50 = vector.extract_strided_slice %40 {offsets = [0, 8], sizes = [8, 8], strides = [1, 1]} : vector<8x16xf32> to vector<8x8xf32>
      %cst_26 = arith.constant 0.000000e+00 : f32
      %51 = vector.broadcast %cst_26 : f32 to vector<8x8xf32>
      %52 = arith.subf %51, %50 : vector<8x8xf32>
      %53 = vector.extract_strided_slice %40 {offsets = [0, 0], sizes = [8, 8], strides = [1, 1]} : vector<8x16xf32> to vector<8x8xf32>
      %54 = tpu.concatenate %52, %53 in 1 : vector<8x8xf32>, vector<8x8xf32> -> vector<8x16xf32>
      %55 = arith.mulf %54, %30 : vector<8x16xf32>
      %56 = arith.addf %49, %55 : vector<8x16xf32>
      %57 = arith.truncf %48 : vector<8x16xf32> to vector<8x16xbf16>
      %58 = arith.truncf %56 : vector<8x16xf32> to vector<8x16xbf16>
      %cst_27 = arith.constant dense<0.000000e+00> : vector<8x8xf32>
      %59 = tpu.matmul %57, %58, %cst_27 {dimension_numbers = #tpu.dot_dimension_numbers<[1], [1], [0], [0], [0, 0, 1, 0], [], []>} : vector<8x16xbf16>, vector<8x16xbf16>, vector<8x8xf32> -> vector<8x8xf32>
      %60 = arith.addf %59, %26 : vector<8x8xf32>
      %c0_28 = arith.constant 0 : index
      %c0_29 = arith.constant 0 : index
      %c0_30 = arith.constant 0 : index
      %61 = vector.load %arg11[%c0_28, %c0_29, %c0_30] : memref<2x8x1xf32, #tpu.memory_space<vmem>>, vector<1x8x1xf32>
      %62 = vector.shape_cast %61 : vector<1x8x1xf32> to vector<8x1xf32>
      %cst_31 = arith.constant dense<0xFF800000> : vector<8xf32>
      %63 = vector.multi_reduction <maximumf>, %60, %cst_31 [1] : vector<8x8xf32> to vector<8xf32>
      %64 = vector.shape_cast %63 : vector<8xf32> to vector<8x1xf32>
      %65 = arith.maximumf %62, %64 : vector<8x1xf32>
      %66 = arith.subf %62, %65 : vector<8x1xf32>
      %67 = math.exp %66 : vector<8x1xf32>
      %68 = vector.broadcast %65 : vector<8x1xf32> to vector<8x8xf32>
      %69 = arith.subf %60, %68 : vector<8x8xf32>
      %70 = math.exp %69 : vector<8x8xf32>
      %c0_32 = arith.constant 0 : index
      %c0_33 = arith.constant 0 : index
      %c0_34 = arith.constant 0 : index
      %71 = vector.load %arg12[%c0_32, %c0_33, %c0_34] : memref<2x8x1xf32, #tpu.memory_space<vmem>>, vector<1x8x1xf32>
      %72 = vector.shape_cast %71 : vector<1x8x1xf32> to vector<8x1xf32>
      %73 = arith.mulf %67, %72 : vector<8x1xf32>
      %cst_35 = arith.constant dense<0.000000e+00> : vector<8xf32>
      %74 = vector.multi_reduction <add>, %70, %cst_35 [1] : vector<8x8xf32> to vector<8xf32>
      %75 = vector.shape_cast %74 : vector<8xf32> to vector<8x1xf32>
      %76 = arith.addf %73, %75 : vector<8x1xf32>
      %c0_36 = arith.constant 0 : index
      %c0_37 = arith.constant 0 : index
      %c0_38 = arith.constant 0 : index
      %77 = vector.load %arg12[%c0_36, %c0_37, %c0_38] : memref<2x8x1xf32, #tpu.memory_space<vmem>>, vector<1x8x1xf32>
      %78 = vector.shape_cast %77 : vector<1x8x1xf32> to vector<8x1xf32>
      %79 = vector.shape_cast %76 : vector<8x1xf32> to vector<1x8x1xf32>
      tpu.vector_store %arg12[%c0_36, %c0_37, %c0_38], %79 {strides = array<i32>} : memref<2x8x1xf32, #tpu.memory_space<vmem>>, vector<1x8x1xf32>,
      %c0_39 = arith.constant 0 : index
      %c0_40 = arith.constant 0 : index
      %c0_41 = arith.constant 0 : index
      %80 = vector.load %arg11[%c0_39, %c0_40, %c0_41] : memref<2x8x1xf32, #tpu.memory_space<vmem>>, vector<1x8x1xf32>
      %81 = vector.shape_cast %80 : vector<1x8x1xf32> to vector<8x1xf32>
      %82 = vector.shape_cast %65 : vector<8x1xf32> to vector<1x8x1xf32>
      tpu.vector_store %arg11[%c0_39, %c0_40, %c0_41], %82 {strides = array<i32>} : memref<2x8x1xf32, #tpu.memory_space<vmem>>, vector<1x8x1xf32>,
      %83 = arith.truncf %70 : vector<8x8xf32> to vector<8x8xbf16>
      %84 = vector.extract_strided_slice %38 {offsets = [0, 0], sizes = [8, 16], strides = [1, 1]} : vector<8x32xbf16> to vector<8x16xbf16>
      %cst_42 = arith.constant dense<0.000000e+00> : vector<8x16xf32>
      %85 = tpu.matmul %83, %84, %cst_42 {dimension_numbers = #tpu.dot_dimension_numbers<[1], [0], [0], [1], [0, 0, 1, 1], [], []>} : vector<8x8xbf16>, vector<8x16xbf16>, vector<8x16xf32> -> vector<8x16xf32>
      %c0_43 = arith.constant 0 : index
      %c0_44 = arith.constant 0 : index
      %c0_45 = arith.constant 0 : index
      %86 = vector.load %arg13[%c0_43, %c0_44, %c0_45] : memref<2x8x16xf32, #tpu.memory_space<vmem>>, vector<1x8x16xf32>
      %87 = vector.shape_cast %86 : vector<1x8x16xf32> to vector<8x16xf32>
      %88 = vector.broadcast %67 : vector<8x1xf32> to vector<8x16xf32>
      %89 = arith.mulf %88, %87 : vector<8x16xf32>
      %90 = arith.addf %89, %85 : vector<8x16xf32>
      %c0_46 = arith.constant 0 : index
      %c0_47 = arith.constant 0 : index
      %c0_48 = arith.constant 0 : index
      %91 = vector.load %arg13[%c0_46, %c0_47, %c0_48] : memref<2x8x16xf32, #tpu.memory_space<vmem>>, vector<1x8x16xf32>
      %92 = vector.shape_cast %91 : vector<1x8x16xf32> to vector<8x16xf32>
      %93 = vector.shape_cast %90 : vector<8x16xf32> to vector<1x8x16xf32>
      tpu.vector_store %arg13[%c0_46, %c0_47, %c0_48], %93 {strides = array<i32>} : memref<2x8x16xf32, #tpu.memory_space<vmem>>, vector<1x8x16xf32>,
      %94 = vector.extract_strided_slice %33 {offsets = [0, 16], sizes = [8, 16], strides = [1, 1]} : vector<8x32xf32> to vector<8x16xf32>
      %95 = vector.extract_strided_slice %36 {offsets = [0, 16], sizes = [8, 16], strides = [1, 1]} : vector<8x32xf32> to vector<8x16xf32>
      %96 = arith.mulf %94, %27 : vector<8x16xf32>
      %97 = vector.extract_strided_slice %94 {offsets = [0, 8], sizes = [8, 8], strides = [1, 1]} : vector<8x16xf32> to vector<8x8xf32>
      %cst_49 = arith.constant 0.000000e+00 : f32
      %98 = vector.broadcast %cst_49 : f32 to vector<8x8xf32>
      %99 = arith.subf %98, %97 : vector<8x8xf32>
      %100 = vector.extract_strided_slice %94 {offsets = [0, 0], sizes = [8, 8], strides = [1, 1]} : vector<8x16xf32> to vector<8x8xf32>
      %101 = tpu.concatenate %99, %100 in 1 : vector<8x8xf32>, vector<8x8xf32> -> vector<8x16xf32>
      %102 = arith.mulf %101, %28 : vector<8x16xf32>
      %103 = arith.addf %96, %102 : vector<8x16xf32>
      %104 = arith.mulf %95, %29 : vector<8x16xf32>
      %105 = vector.extract_strided_slice %95 {offsets = [0, 8], sizes = [8, 8], strides = [1, 1]} : vector<8x16xf32> to vector<8x8xf32>
      %cst_50 = arith.constant 0.000000e+00 : f32
      %106 = vector.broadcast %cst_50 : f32 to vector<8x8xf32>
      %107 = arith.subf %106, %105 : vector<8x8xf32>
      %108 = vector.extract_strided_slice %95 {offsets = [0, 0], sizes = [8, 8], strides = [1, 1]} : vector<8x16xf32> to vector<8x8xf32>
      %109 = tpu.concatenate %107, %108 in 1 : vector<8x8xf32>, vector<8x8xf32> -> vector<8x16xf32>
      %110 = arith.mulf %109, %30 : vector<8x16xf32>
      %111 = arith.addf %104, %110 : vector<8x16xf32>
      %112 = arith.truncf %103 : vector<8x16xf32> to vector<8x16xbf16>
      %113 = arith.truncf %111 : vector<8x16xf32> to vector<8x16xbf16>
      %cst_51 = arith.constant dense<0.000000e+00> : vector<8x8xf32>
      %114 = tpu.matmul %112, %113, %cst_51 {dimension_numbers = #tpu.dot_dimension_numbers<[1], [1], [0], [0], [0, 0, 1, 0], [], []>} : vector<8x16xbf16>, vector<8x16xbf16>, vector<8x8xf32> -> vector<8x8xf32>
      %115 = arith.addf %114, %26 : vector<8x8xf32>
      %c1 = arith.constant 1 : index
      %c0_52 = arith.constant 0 : index
      %c0_53 = arith.constant 0 : index
      %116 = vector.load %arg11[%c1, %c0_52, %c0_53] : memref<2x8x1xf32, #tpu.memory_space<vmem>>, vector<1x8x1xf32>
      %117 = vector.shape_cast %116 : vector<1x8x1xf32> to vector<8x1xf32>
      %cst_54 = arith.constant dense<0xFF800000> : vector<8xf32>
      %118 = vector.multi_reduction <maximumf>, %115, %cst_54 [1] : vector<8x8xf32> to vector<8xf32>
      %119 = vector.shape_cast %118 : vector<8xf32> to vector<8x1xf32>
      %120 = arith.maximumf %117, %119 : vector<8x1xf32>
      %121 = arith.subf %117, %120 : vector<8x1xf32>
      %122 = math.exp %121 : vector<8x1xf32>
      %123 = vector.broadcast %120 : vector<8x1xf32> to vector<8x8xf32>
      %124 = arith.subf %115, %123 : vector<8x8xf32>
      %125 = math.exp %124 : vector<8x8xf32>
      %c1_55 = arith.constant 1 : index
      %c0_56 = arith.constant 0 : index
      %c0_57 = arith.constant 0 : index
      %126 = vector.load %arg12[%c1_55, %c0_56, %c0_57] : memref<2x8x1xf32, #tpu.memory_space<vmem>>, vector<1x8x1xf32>
      %127 = vector.shape_cast %126 : vector<1x8x1xf32> to vector<8x1xf32>
      %128 = arith.mulf %122, %127 : vector<8x1xf32>
      %cst_58 = arith.constant dense<0.000000e+00> : vector<8xf32>
      %129 = vector.multi_reduction <add>, %125, %cst_58 [1] : vector<8x8xf32> to vector<8xf32>
      %130 = vector.shape_cast %129 : vector<8xf32> to vector<8x1xf32>
      %131 = arith.addf %128, %130 : vector<8x1xf32>
      %c1_59 = arith.constant 1 : index
      %c0_60 = arith.constant 0 : index
      %c0_61 = arith.constant 0 : index
      %132 = vector.load %arg12[%c1_59, %c0_60, %c0_61] : memref<2x8x1xf32, #tpu.memory_space<vmem>>, vector<1x8x1xf32>
      %133 = vector.shape_cast %132 : vector<1x8x1xf32> to vector<8x1xf32>
      %134 = vector.shape_cast %131 : vector<8x1xf32> to vector<1x8x1xf32>
      tpu.vector_store %arg12[%c1_59, %c0_60, %c0_61], %134 {strides = array<i32>} : memref<2x8x1xf32, #tpu.memory_space<vmem>>, vector<1x8x1xf32>,
      %c1_62 = arith.constant 1 : index
      %c0_63 = arith.constant 0 : index
      %c0_64 = arith.constant 0 : index
      %135 = vector.load %arg11[%c1_62, %c0_63, %c0_64] : memref<2x8x1xf32, #tpu.memory_space<vmem>>, vector<1x8x1xf32>
      %136 = vector.shape_cast %135 : vector<1x8x1xf32> to vector<8x1xf32>
      %137 = vector.shape_cast %120 : vector<8x1xf32> to vector<1x8x1xf32>
      tpu.vector_store %arg11[%c1_62, %c0_63, %c0_64], %137 {strides = array<i32>} : memref<2x8x1xf32, #tpu.memory_space<vmem>>, vector<1x8x1xf32>,
      %138 = arith.truncf %125 : vector<8x8xf32> to vector<8x8xbf16>
      %139 = vector.extract_strided_slice %38 {offsets = [0, 16], sizes = [8, 16], strides = [1, 1]} : vector<8x32xbf16> to vector<8x16xbf16>
      %cst_65 = arith.constant dense<0.000000e+00> : vector<8x16xf32>
      %140 = tpu.matmul %138, %139, %cst_65 {dimension_numbers = #tpu.dot_dimension_numbers<[1], [0], [0], [1], [0, 0, 1, 1], [], []>} : vector<8x8xbf16>, vector<8x16xbf16>, vector<8x16xf32> -> vector<8x16xf32>
      %c1_66 = arith.constant 1 : index
      %c0_67 = arith.constant 0 : index
      %c0_68 = arith.constant 0 : index
      %141 = vector.load %arg13[%c1_66, %c0_67, %c0_68] : memref<2x8x16xf32, #tpu.memory_space<vmem>>, vector<1x8x16xf32>
      %142 = vector.shape_cast %141 : vector<1x8x16xf32> to vector<8x16xf32>
      %143 = vector.broadcast %122 : vector<8x1xf32> to vector<8x16xf32>
      %144 = arith.mulf %143, %142 : vector<8x16xf32>
      %145 = arith.addf %144, %140 : vector<8x16xf32>
      %c1_69 = arith.constant 1 : index
      %c0_70 = arith.constant 0 : index
      %c0_71 = arith.constant 0 : index
      %146 = vector.load %arg13[%c1_69, %c0_70, %c0_71] : memref<2x8x16xf32, #tpu.memory_space<vmem>>, vector<1x8x16xf32>
      %147 = vector.shape_cast %146 : vector<1x8x16xf32> to vector<8x16xf32>
      %148 = vector.shape_cast %145 : vector<8x16xf32> to vector<1x8x16xf32>
      tpu.vector_store %arg13[%c1_69, %c0_70, %c0_71], %148 {strides = array<i32>} : memref<2x8x16xf32, #tpu.memory_space<vmem>>, vector<1x8x16xf32>,
    } else {
    }
    %c0_i32_3 = arith.constant 0 : i32
    %9 = arith.cmpi eq, %arg2, %c0_i32_3 : i32
    %10 = arith.extui %9 : i1 to i32
    %c0_i32_4 = arith.constant 0 : i32
    %11 = arith.cmpi ne, %10, %c0_i32_4 : i32
    scf.if %11 {
      %c0 = arith.constant 0 : index
      %c0_5 = arith.constant 0 : index
      %c0_6 = arith.constant 0 : index
      %12 = vector.load %arg13[%c0, %c0_5, %c0_6] : memref<2x8x16xf32, #tpu.memory_space<vmem>>, vector<1x8x16xf32>
      %13 = vector.shape_cast %12 : vector<1x8x16xf32> to vector<8x16xf32>
      %c0_7 = arith.constant 0 : index
      %c0_8 = arith.constant 0 : index
      %c0_9 = arith.constant 0 : index
      %14 = vector.load %arg12[%c0_7, %c0_8, %c0_9] : memref<2x8x1xf32, #tpu.memory_space<vmem>>, vector<1x8x1xf32>
      %15 = vector.shape_cast %14 : vector<1x8x1xf32> to vector<8x1xf32>
      %16 = tpu.reciprocal %15 {approx = true} : vector<8x1xf32> -> vector<8x1xf32>
      %17 = vector.broadcast %16 : vector<8x1xf32> to vector<8x16xf32>
      %18 = arith.mulf %13, %17 : vector<8x16xf32>
      %c1 = arith.constant 1 : index
      %c0_10 = arith.constant 0 : index
      %c0_11 = arith.constant 0 : index
      %19 = vector.load %arg13[%c1, %c0_10, %c0_11] : memref<2x8x16xf32, #tpu.memory_space<vmem>>, vector<1x8x16xf32>
      %20 = vector.shape_cast %19 : vector<1x8x16xf32> to vector<8x16xf32>
      %c1_12 = arith.constant 1 : index
      %c0_13 = arith.constant 0 : index
      %c0_14 = arith.constant 0 : index
      %21 = vector.load %arg12[%c1_12, %c0_13, %c0_14] : memref<2x8x1xf32, #tpu.memory_space<vmem>>, vector<1x8x1xf32>
      %22 = vector.shape_cast %21 : vector<1x8x1xf32> to vector<8x1xf32>
      %23 = tpu.reciprocal %22 {approx = true} : vector<8x1xf32> -> vector<8x1xf32>
      %24 = vector.broadcast %23 : vector<8x1xf32> to vector<8x16xf32>
      %25 = arith.mulf %20, %24 : vector<8x16xf32>
      %26 = tpu.concatenate %18, %25 in 1 : vector<8x16xf32>, vector<8x16xf32> -> vector<8x32xf32>
      %c0_15 = arith.constant 0 : index
      %c0_16 = arith.constant 0 : index
      %c0_17 = arith.constant 0 : index
      %27 = vector.load %arg10[%c0_15, %c0_16, %c0_17] : memref<1x8x32xf32, #tpu.memory_space<vmem>>, vector<1x8x32xf32>
      %28 = vector.shape_cast %27 : vector<1x8x32xf32> to vector<8x32xf32>
      %29 = vector.shape_cast %26 : vector<8x32xf32> to vector<1x8x32xf32>
      tpu.vector_store %arg10[%c0_15, %c0_16, %c0_17], %29 {strides = array<i32>} : memref<1x8x32xf32, #tpu.memory_space<vmem>>, vector<1x8x32xf32>,
    } else {
    }
    return
  }
  func.func @transform_0(%arg0: i32, %arg1: i32, %arg2: i32) -> (i32, i32, i32) {
    %c0_i32 = arith.constant 0 : i32
    %c0_i32_0 = arith.constant 0 : i32
    return %arg0, %arg1, %c0_i32 : i32, i32, i32
  }
  func.func @transform_1(%arg0: i32, %arg1: i32, %arg2: i32) -> (i32, i32, i32) {
    %c0_i32 = arith.constant 0 : i32
    %c0_i32_0 = arith.constant 0 : i32
    return %arg0, %arg2, %c0_i32 : i32, i32, i32
  }
  func.func @transform_2(%arg0: i32, %arg1: i32, %arg2: i32) -> (i32, i32, i32) {
    %c0_i32 = arith.constant 0 : i32
    %c0_i32_0 = arith.constant 0 : i32
    return %arg0, %arg2, %c0_i32 : i32, i32, i32
  }
  func.func @transform_3(%arg0: i32, %arg1: i32, %arg2: i32) -> (i32, i32) {
    %c0_i32 = arith.constant 0 : i32
    %c0_i32_0 = arith.constant 0 : i32
    return %arg1, %c0_i32 : i32, i32
  }
  func.func @transform_4(%arg0: i32, %arg1: i32, %arg2: i32) -> (i32, i32) {
    %c0_i32 = arith.constant 0 : i32
    %c0_i32_0 = arith.constant 0 : i32
    return %arg1, %c0_i32 : i32, i32
  }
  func.func @transform_5(%arg0: i32, %arg1: i32, %arg2: i32) -> (i32, i32) {
    %c0_i32 = arith.constant 0 : i32
    %c0_i32_0 = arith.constant 0 : i32
    return %arg2, %c0_i32 : i32, i32
  }
  func.func @transform_6(%arg0: i32, %arg1: i32, %arg2: i32) -> (i32, i32) {
    %c0_i32 = arith.constant 0 : i32
    %c0_i32_0 = arith.constant 0 : i32
    return %arg2, %c0_i32 : i32, i32
  }
  func.func @transform_7(%arg0: i32, %arg1: i32, %arg2: i32) -> (i32, i32, i32) {
    %c0_i32 = arith.constant 0 : i32
    %c0_i32_0 = arith.constant 0 : i32
    return %arg0, %arg1, %c0_i32 : i32, i32, i32
  }
}

module attributes {stable_mosaic.version = 11 : i64} {
  func.func @_qkv_kernel(%arg0: i32, %arg1: memref<8x64xf32, #tpu.memory_space<vmem>>, %arg2: memref<64x32xbf16, #tpu.memory_space<vmem>>, %arg3: memref<32x96xbf16, #tpu.memory_space<vmem>>, %arg4: memref<8x32xbf16, #tpu.memory_space<vmem>>, %arg5: memref<8x32xbf16, #tpu.memory_space<vmem>>, %arg6: memref<8x32xbf16, #tpu.memory_space<vmem>>) attributes {dimension_semantics = [#tpu.dimension_semantics<parallel>], iteration_bounds = array<i64: 2>, scalar_prefetch = 0 : i64, scratch_operands = 0 : i64, tpu.core_type = #tpu.core_type<tc>, window_params = [{transform_indices = @transform_0, window_bounds = array<i64: 8, 64>}, {pipeline_mode = #tpu.pipeline_mode<synchronous>, transform_indices = @transform_1, window_bounds = array<i64: 64, 32>}, {pipeline_mode = #tpu.pipeline_mode<synchronous>, transform_indices = @transform_2, window_bounds = array<i64: 32, 96>}, {transform_indices = @transform_3, window_bounds = array<i64: 8, 32>}, {transform_indices = @transform_4, window_bounds = array<i64: 8, 32>}, {transform_indices = @transform_5, window_bounds = array<i64: 8, 32>}]} {
    %c0 = arith.constant 0 : index
    %c0_0 = arith.constant 0 : index
    %0 = vector.load %arg1[%c0, %c0_0] : memref<8x64xf32, #tpu.memory_space<vmem>>, vector<8x64xf32>
    %1 = arith.truncf %0 : vector<8x64xf32> to vector<8x64xbf16>
    %c0_1 = arith.constant 0 : index
    %c0_2 = arith.constant 0 : index
    %2 = vector.load %arg2[%c0_1, %c0_2] : memref<64x32xbf16, #tpu.memory_space<vmem>>, vector<64x32xbf16>
    %cst = arith.constant dense<0.000000e+00> : vector<8x32xf32>
    %3 = tpu.matmul %1, %2, %cst {dimension_numbers = #tpu.dot_dimension_numbers<[1], [0], [0], [1], [0, 0, 1, 1], [], []>} : vector<8x64xbf16>, vector<64x32xbf16>, vector<8x32xf32> -> vector<8x32xf32>
    %4 = arith.truncf %3 : vector<8x32xf32> to vector<8x32xbf16>
    %c0_3 = arith.constant 0 : index
    %c0_4 = arith.constant 0 : index
    %5 = vector.load %arg3[%c0_3, %c0_4] : memref<32x96xbf16, #tpu.memory_space<vmem>>, vector<32x96xbf16>
    %cst_5 = arith.constant dense<0.000000e+00> : vector<8x96xf32>
    %6 = tpu.matmul %4, %5, %cst_5 {dimension_numbers = #tpu.dot_dimension_numbers<[1], [0], [0], [1], [0, 0, 1, 1], [], []>} : vector<8x32xbf16>, vector<32x96xbf16>, vector<8x96xf32> -> vector<8x96xf32>
    %7 = vector.extract_strided_slice %6 {offsets = [0, 0], sizes = [8, 32], strides = [1, 1]} : vector<8x96xf32> to vector<8x32xf32>
    %8 = arith.truncf %7 : vector<8x32xf32> to vector<8x32xbf16>
    %c0_6 = arith.constant 0 : index
    %c0_7 = arith.constant 0 : index
    %9 = vector.load %arg4[%c0_6, %c0_7] : memref<8x32xbf16, #tpu.memory_space<vmem>>, vector<8x32xbf16>
    tpu.vector_store %arg4[%c0_6, %c0_7], %8 {strides = array<i32>} : memref<8x32xbf16, #tpu.memory_space<vmem>>, vector<8x32xbf16>,
    %10 = vector.extract_strided_slice %6 {offsets = [0, 32], sizes = [8, 32], strides = [1, 1]} : vector<8x96xf32> to vector<8x32xf32>
    %11 = arith.truncf %10 : vector<8x32xf32> to vector<8x32xbf16>
    %c0_8 = arith.constant 0 : index
    %c0_9 = arith.constant 0 : index
    %12 = vector.load %arg5[%c0_8, %c0_9] : memref<8x32xbf16, #tpu.memory_space<vmem>>, vector<8x32xbf16>
    tpu.vector_store %arg5[%c0_8, %c0_9], %11 {strides = array<i32>} : memref<8x32xbf16, #tpu.memory_space<vmem>>, vector<8x32xbf16>,
    %13 = vector.extract_strided_slice %6 {offsets = [0, 64], sizes = [8, 32], strides = [1, 1]} : vector<8x96xf32> to vector<8x32xf32>
    %14 = arith.truncf %13 : vector<8x32xf32> to vector<8x32xbf16>
    %c0_10 = arith.constant 0 : index
    %c0_11 = arith.constant 0 : index
    %15 = vector.load %arg6[%c0_10, %c0_11] : memref<8x32xbf16, #tpu.memory_space<vmem>>, vector<8x32xbf16>
    tpu.vector_store %arg6[%c0_10, %c0_11], %14 {strides = array<i32>} : memref<8x32xbf16, #tpu.memory_space<vmem>>, vector<8x32xbf16>,
    return
  }
  func.func @transform_0(%arg0: i32) -> (i32, i32) {
    %c0_i32 = arith.constant 0 : i32
    %c0_i32_0 = arith.constant 0 : i32
    return %arg0, %c0_i32 : i32, i32
  }
  func.func @transform_1(%arg0: i32) -> (i32, i32) {
    %c0_i32 = arith.constant 0 : i32
    %c0_i32_0 = arith.constant 0 : i32
    %c0_i32_1 = arith.constant 0 : i32
    return %c0_i32, %c0_i32_0 : i32, i32
  }
  func.func @transform_2(%arg0: i32) -> (i32, i32) {
    %c0_i32 = arith.constant 0 : i32
    %c0_i32_0 = arith.constant 0 : i32
    %c0_i32_1 = arith.constant 0 : i32
    return %c0_i32, %c0_i32_0 : i32, i32
  }
  func.func @transform_3(%arg0: i32) -> (i32, i32) {
    %c0_i32 = arith.constant 0 : i32
    %c0_i32_0 = arith.constant 0 : i32
    return %arg0, %c0_i32 : i32, i32
  }
  func.func @transform_4(%arg0: i32) -> (i32, i32) {
    %c0_i32 = arith.constant 0 : i32
    %c0_i32_0 = arith.constant 0 : i32
    return %arg0, %c0_i32 : i32, i32
  }
  func.func @transform_5(%arg0: i32) -> (i32, i32) {
    %c0_i32 = arith.constant 0 : i32
    %c0_i32_0 = arith.constant 0 : i32
    return %arg0, %c0_i32 : i32, i32
  }
}

module attributes {stable_mosaic.version = 11 : i64} {
  func.func @_importance_kernel(%arg0: i32, %arg1: memref<8x64xf32, #tpu.memory_space<vmem>>, %arg2: memref<1x64xf32, #tpu.memory_space<vmem>>, %arg3: memref<1x64xf32, #tpu.memory_space<vmem>>, %arg4: memref<64x64xbf16, #tpu.memory_space<vmem>>, %arg5: memref<32x64xbf16, #tpu.memory_space<vmem>>, %arg6: memref<32x64xbf16, #tpu.memory_space<vmem>>, %arg7: memref<8x64xf32, #tpu.memory_space<vmem>>, %arg8: memref<8x64xf32, #tpu.memory_space<vmem>>) attributes {dimension_semantics = [#tpu.dimension_semantics<parallel>], iteration_bounds = array<i64: 2>, scalar_prefetch = 0 : i64, scratch_operands = 0 : i64, tpu.core_type = #tpu.core_type<tc>, window_params = [{transform_indices = @transform_0, window_bounds = array<i64: 8, 64>}, {pipeline_mode = #tpu.pipeline_mode<synchronous>, transform_indices = @transform_1, window_bounds = array<i64: 1, 64>}, {pipeline_mode = #tpu.pipeline_mode<synchronous>, transform_indices = @transform_2, window_bounds = array<i64: 1, 64>}, {pipeline_mode = #tpu.pipeline_mode<synchronous>, transform_indices = @transform_3, window_bounds = array<i64: 64, 64>}, {pipeline_mode = #tpu.pipeline_mode<synchronous>, transform_indices = @transform_4, window_bounds = array<i64: 32, 64>}, {pipeline_mode = #tpu.pipeline_mode<synchronous>, transform_indices = @transform_5, window_bounds = array<i64: 32, 64>}, {transform_indices = @transform_6, window_bounds = array<i64: 8, 64>}, {transform_indices = @transform_7, window_bounds = array<i64: 8, 64>}]} {
    %c0 = arith.constant 0 : index
    %c0_0 = arith.constant 0 : index
    %0 = vector.load %arg1[%c0, %c0_0] : memref<8x64xf32, #tpu.memory_space<vmem>>, vector<8x64xf32>
    %c0_1 = arith.constant 0 : index
    %c0_2 = arith.constant 0 : index
    %1 = vector.load %arg2[%c0_1, %c0_2] : memref<1x64xf32, #tpu.memory_space<vmem>>, vector<1x64xf32>
    %c0_3 = arith.constant 0 : index
    %c0_4 = arith.constant 0 : index
    %2 = vector.load %arg3[%c0_3, %c0_4] : memref<1x64xf32, #tpu.memory_space<vmem>>, vector<1x64xf32>
    %cst = arith.constant dense<0.000000e+00> : vector<8xf32>
    %3 = vector.multi_reduction <add>, %0, %cst [1] : vector<8x64xf32> to vector<8xf32>
    %4 = vector.shape_cast %3 : vector<8xf32> to vector<8x1xf32>
    %cst_5 = arith.constant 6.400000e+01 : f32
    %5 = vector.broadcast %cst_5 : f32 to vector<8x1xf32>
    %6 = arith.divf %4, %5 : vector<8x1xf32>
    %7 = vector.broadcast %6 : vector<8x1xf32> to vector<8x64xf32>
    %8 = arith.subf %0, %7 : vector<8x64xf32>
    %9 = arith.mulf %8, %8 : vector<8x64xf32>
    %cst_6 = arith.constant dense<0.000000e+00> : vector<8xf32>
    %10 = vector.multi_reduction <add>, %9, %cst_6 [1] : vector<8x64xf32> to vector<8xf32>
    %11 = vector.shape_cast %10 : vector<8xf32> to vector<8x1xf32>
    %cst_7 = arith.constant 6.400000e+01 : f32
    %12 = vector.broadcast %cst_7 : f32 to vector<8x1xf32>
    %13 = arith.divf %11, %12 : vector<8x1xf32>
    %14 = vector.broadcast %6 : vector<8x1xf32> to vector<8x64xf32>
    %15 = arith.subf %0, %14 : vector<8x64xf32>
    %cst_8 = arith.constant 9.99999974E-6 : f32
    %16 = vector.broadcast %cst_8 : f32 to vector<8x1xf32>
    %17 = arith.addf %13, %16 : vector<8x1xf32>
    %18 = math.rsqrt %17 : vector<8x1xf32>
    %19 = vector.broadcast %18 : vector<8x1xf32> to vector<8x64xf32>
    %20 = arith.mulf %15, %19 : vector<8x64xf32>
    %21 = vector.broadcast %1 : vector<1x64xf32> to vector<8x64xf32>
    %22 = arith.mulf %20, %21 : vector<8x64xf32>
    %23 = vector.broadcast %2 : vector<1x64xf32> to vector<8x64xf32>
    %24 = arith.addf %22, %23 : vector<8x64xf32>
    %25 = arith.truncf %24 : vector<8x64xf32> to vector<8x64xbf16>
    %c0_9 = arith.constant 0 : index
    %c0_10 = arith.constant 0 : index
    %26 = vector.load %arg4[%c0_9, %c0_10] : memref<64x64xbf16, #tpu.memory_space<vmem>>, vector<64x64xbf16>
    %cst_11 = arith.constant dense<0.000000e+00> : vector<8x64xf32>
    %27 = tpu.matmul %25, %26, %cst_11 {dimension_numbers = #tpu.dot_dimension_numbers<[1], [0], [0], [1], [0, 0, 1, 1], [], []>} : vector<8x64xbf16>, vector<64x64xbf16>, vector<8x64xf32> -> vector<8x64xf32>
    %cst_12 = arith.constant 0.000000e+00 : f32
    %28 = vector.broadcast %cst_12 : f32 to vector<8x64xf32>
    %29 = arith.subf %28, %27 : vector<8x64xf32>
    %30 = math.exp %29 : vector<8x64xf32>
    %cst_13 = arith.constant 1.000000e+00 : f32
    %31 = vector.broadcast %cst_13 : f32 to vector<8x64xf32>
    %32 = arith.addf %31, %30 : vector<8x64xf32>
    %cst_14 = arith.constant 1.000000e+00 : f32
    %33 = vector.broadcast %cst_14 : f32 to vector<8x64xf32>
    %34 = arith.divf %33, %32 : vector<8x64xf32>
    %35 = arith.mulf %27, %34 : vector<8x64xf32>
    %36 = vector.extract_strided_slice %35 {offsets = [0, 0], sizes = [8, 32], strides = [1, 1]} : vector<8x64xf32> to vector<8x32xf32>
    %37 = arith.truncf %36 : vector<8x32xf32> to vector<8x32xbf16>
    %38 = vector.extract_strided_slice %35 {offsets = [0, 32], sizes = [8, 32], strides = [1, 1]} : vector<8x64xf32> to vector<8x32xf32>
    %39 = arith.truncf %38 : vector<8x32xf32> to vector<8x32xbf16>
    %c0_15 = arith.constant 0 : index
    %c0_16 = arith.constant 0 : index
    %40 = vector.load %arg5[%c0_15, %c0_16] : memref<32x64xbf16, #tpu.memory_space<vmem>>, vector<32x64xbf16>
    %cst_17 = arith.constant dense<0.000000e+00> : vector<8x64xf32>
    %41 = tpu.matmul %37, %40, %cst_17 {dimension_numbers = #tpu.dot_dimension_numbers<[1], [0], [0], [1], [0, 0, 1, 1], [], []>} : vector<8x32xbf16>, vector<32x64xbf16>, vector<8x64xf32> -> vector<8x64xf32>
    %c0_18 = arith.constant 0 : index
    %c0_19 = arith.constant 0 : index
    %42 = vector.load %arg7[%c0_18, %c0_19] : memref<8x64xf32, #tpu.memory_space<vmem>>, vector<8x64xf32>
    tpu.vector_store %arg7[%c0_18, %c0_19], %41 {strides = array<i32>} : memref<8x64xf32, #tpu.memory_space<vmem>>, vector<8x64xf32>,
    %c0_20 = arith.constant 0 : index
    %c0_21 = arith.constant 0 : index
    %43 = vector.load %arg6[%c0_20, %c0_21] : memref<32x64xbf16, #tpu.memory_space<vmem>>, vector<32x64xbf16>
    %cst_22 = arith.constant dense<0.000000e+00> : vector<8x64xf32>
    %44 = tpu.matmul %39, %43, %cst_22 {dimension_numbers = #tpu.dot_dimension_numbers<[1], [0], [0], [1], [0, 0, 1, 1], [], []>} : vector<8x32xbf16>, vector<32x64xbf16>, vector<8x64xf32> -> vector<8x64xf32>
    %c0_23 = arith.constant 0 : index
    %c0_24 = arith.constant 0 : index
    %45 = vector.load %arg8[%c0_23, %c0_24] : memref<8x64xf32, #tpu.memory_space<vmem>>, vector<8x64xf32>
    tpu.vector_store %arg8[%c0_23, %c0_24], %44 {strides = array<i32>} : memref<8x64xf32, #tpu.memory_space<vmem>>, vector<8x64xf32>,
    return
  }
  func.func @transform_0(%arg0: i32) -> (i32, i32) {
    %c0_i32 = arith.constant 0 : i32
    %c0_i32_0 = arith.constant 0 : i32
    return %arg0, %c0_i32 : i32, i32
  }
  func.func @transform_1(%arg0: i32) -> (i32, i32) {
    %c0_i32 = arith.constant 0 : i32
    %c0_i32_0 = arith.constant 0 : i32
    %c0_i32_1 = arith.constant 0 : i32
    return %c0_i32, %c0_i32_0 : i32, i32
  }
  func.func @transform_2(%arg0: i32) -> (i32, i32) {
    %c0_i32 = arith.constant 0 : i32
    %c0_i32_0 = arith.constant 0 : i32
    %c0_i32_1 = arith.constant 0 : i32
    return %c0_i32, %c0_i32_0 : i32, i32
  }
  func.func @transform_3(%arg0: i32) -> (i32, i32) {
    %c0_i32 = arith.constant 0 : i32
    %c0_i32_0 = arith.constant 0 : i32
    %c0_i32_1 = arith.constant 0 : i32
    return %c0_i32, %c0_i32_0 : i32, i32
  }
  func.func @transform_4(%arg0: i32) -> (i32, i32) {
    %c0_i32 = arith.constant 0 : i32
    %c0_i32_0 = arith.constant 0 : i32
    %c0_i32_1 = arith.constant 0 : i32
    return %c0_i32, %c0_i32_0 : i32, i32
  }
  func.func @transform_5(%arg0: i32) -> (i32, i32) {
    %c0_i32 = arith.constant 0 : i32
    %c0_i32_0 = arith.constant 0 : i32
    %c0_i32_1 = arith.constant 0 : i32
    return %c0_i32, %c0_i32_0 : i32, i32
  }
  func.func @transform_6(%arg0: i32) -> (i32, i32) {
    %c0_i32 = arith.constant 0 : i32
    %c0_i32_0 = arith.constant 0 : i32
    return %arg0, %c0_i32 : i32, i32
  }
  func.func @transform_7(%arg0: i32) -> (i32, i32) {
    %c0_i32 = arith.constant 0 : i32
    %c0_i32_0 = arith.constant 0 : i32
    return %arg0, %c0_i32 : i32, i32
  }
}

module attributes {stable_mosaic.version = 11 : i64} {
  func.func @_ffn_block_kernel(%arg0: i32, %arg1: memref<8x32xf32, #tpu.memory_space<vmem>>, %arg2: memref<8x64xf32, #tpu.memory_space<vmem>>, %arg3: memref<1x32xf32, #tpu.memory_space<vmem>>, %arg4: memref<1x32xf32, #tpu.memory_space<vmem>>, %arg5: memref<32x64xbf16, #tpu.memory_space<vmem>>, %arg6: memref<1x64xf32, #tpu.memory_space<vmem>>, %arg7: memref<64x64xbf16, #tpu.memory_space<vmem>>, %arg8: memref<1x64xf32, #tpu.memory_space<vmem>>, %arg9: memref<1x64xf32, #tpu.memory_space<vmem>>, %arg10: memref<1x64xf32, #tpu.memory_space<vmem>>, %arg11: memref<8x64xf32, #tpu.memory_space<vmem>>) attributes {dimension_semantics = [#tpu.dimension_semantics<parallel>], iteration_bounds = array<i64: 2>, scalar_prefetch = 0 : i64, scratch_operands = 0 : i64, tpu.core_type = #tpu.core_type<tc>, window_params = [{transform_indices = @transform_0, window_bounds = array<i64: 8, 32>}, {transform_indices = @transform_1, window_bounds = array<i64: 8, 64>}, {pipeline_mode = #tpu.pipeline_mode<synchronous>, transform_indices = @transform_2, window_bounds = array<i64: 1, 32>}, {pipeline_mode = #tpu.pipeline_mode<synchronous>, transform_indices = @transform_3, window_bounds = array<i64: 1, 32>}, {pipeline_mode = #tpu.pipeline_mode<synchronous>, transform_indices = @transform_4, window_bounds = array<i64: 32, 64>}, {pipeline_mode = #tpu.pipeline_mode<synchronous>, transform_indices = @transform_5, window_bounds = array<i64: 1, 64>}, {pipeline_mode = #tpu.pipeline_mode<synchronous>, transform_indices = @transform_6, window_bounds = array<i64: 64, 64>}, {pipeline_mode = #tpu.pipeline_mode<synchronous>, transform_indices = @transform_7, window_bounds = array<i64: 1, 64>}, {pipeline_mode = #tpu.pipeline_mode<synchronous>, transform_indices = @transform_8, window_bounds = array<i64: 1, 64>}, {pipeline_mode = #tpu.pipeline_mode<synchronous>, transform_indices = @transform_9, window_bounds = array<i64: 1, 64>}, {transform_indices = @transform_10, window_bounds = array<i64: 8, 64>}]} {
    %c0 = arith.constant 0 : index
    %c0_0 = arith.constant 0 : index
    %0 = vector.load %arg1[%c0, %c0_0] : memref<8x32xf32, #tpu.memory_space<vmem>>, vector<8x32xf32>
    %c0_1 = arith.constant 0 : index
    %c0_2 = arith.constant 0 : index
    %1 = vector.load %arg3[%c0_1, %c0_2] : memref<1x32xf32, #tpu.memory_space<vmem>>, vector<1x32xf32>
    %c0_3 = arith.constant 0 : index
    %c0_4 = arith.constant 0 : index
    %2 = vector.load %arg4[%c0_3, %c0_4] : memref<1x32xf32, #tpu.memory_space<vmem>>, vector<1x32xf32>
    %cst = arith.constant dense<0.000000e+00> : vector<8xf32>
    %3 = vector.multi_reduction <add>, %0, %cst [1] : vector<8x32xf32> to vector<8xf32>
    %4 = vector.shape_cast %3 : vector<8xf32> to vector<8x1xf32>
    %cst_5 = arith.constant 3.200000e+01 : f32
    %5 = vector.broadcast %cst_5 : f32 to vector<8x1xf32>
    %6 = arith.divf %4, %5 : vector<8x1xf32>
    %7 = vector.broadcast %6 : vector<8x1xf32> to vector<8x32xf32>
    %8 = arith.subf %0, %7 : vector<8x32xf32>
    %9 = arith.mulf %8, %8 : vector<8x32xf32>
    %cst_6 = arith.constant dense<0.000000e+00> : vector<8xf32>
    %10 = vector.multi_reduction <add>, %9, %cst_6 [1] : vector<8x32xf32> to vector<8xf32>
    %11 = vector.shape_cast %10 : vector<8xf32> to vector<8x1xf32>
    %cst_7 = arith.constant 3.200000e+01 : f32
    %12 = vector.broadcast %cst_7 : f32 to vector<8x1xf32>
    %13 = arith.divf %11, %12 : vector<8x1xf32>
    %14 = vector.broadcast %6 : vector<8x1xf32> to vector<8x32xf32>
    %15 = arith.subf %0, %14 : vector<8x32xf32>
    %cst_8 = arith.constant 9.99999974E-6 : f32
    %16 = vector.broadcast %cst_8 : f32 to vector<8x1xf32>
    %17 = arith.addf %13, %16 : vector<8x1xf32>
    %18 = math.rsqrt %17 : vector<8x1xf32>
    %19 = vector.broadcast %18 : vector<8x1xf32> to vector<8x32xf32>
    %20 = arith.mulf %15, %19 : vector<8x32xf32>
    %21 = vector.broadcast %1 : vector<1x32xf32> to vector<8x32xf32>
    %22 = arith.mulf %20, %21 : vector<8x32xf32>
    %23 = vector.broadcast %2 : vector<1x32xf32> to vector<8x32xf32>
    %24 = arith.addf %22, %23 : vector<8x32xf32>
    %25 = arith.truncf %24 : vector<8x32xf32> to vector<8x32xbf16>
    %c0_9 = arith.constant 0 : index
    %c0_10 = arith.constant 0 : index
    %26 = vector.load %arg5[%c0_9, %c0_10] : memref<32x64xbf16, #tpu.memory_space<vmem>>, vector<32x64xbf16>
    %cst_11 = arith.constant dense<0.000000e+00> : vector<8x64xf32>
    %27 = tpu.matmul %25, %26, %cst_11 {dimension_numbers = #tpu.dot_dimension_numbers<[1], [0], [0], [1], [0, 0, 1, 1], [], []>} : vector<8x32xbf16>, vector<32x64xbf16>, vector<8x64xf32> -> vector<8x64xf32>
    %c0_12 = arith.constant 0 : index
    %c0_13 = arith.constant 0 : index
    %28 = vector.load %arg6[%c0_12, %c0_13] : memref<1x64xf32, #tpu.memory_space<vmem>>, vector<1x64xf32>
    %29 = vector.broadcast %28 : vector<1x64xf32> to vector<8x64xf32>
    %30 = arith.addf %27, %29 : vector<8x64xf32>
    %cst_14 = arith.constant 5.000000e-01 : f32
    %31 = vector.broadcast %cst_14 : f32 to vector<8x64xf32>
    %32 = arith.mulf %31, %30 : vector<8x64xf32>
    %cst_15 = arith.constant 0.707106769 : f32
    %33 = vector.broadcast %cst_15 : f32 to vector<8x64xf32>
    %34 = arith.mulf %30, %33 : vector<8x64xf32>
    %cst_16 = arith.constant 0.000000e+00 : f32
    %35 = vector.broadcast %cst_16 : f32 to vector<8x64xf32>
    %36 = arith.cmpf oge, %34, %35 : vector<8x64xf32>
    %cst_17 = arith.constant 1.000000e+00 : f32
    %cst_18 = arith.constant -1.000000e+00 : f32
    %37 = vector.broadcast %cst_17 : f32 to vector<8x64xf32>
    %38 = vector.broadcast %cst_18 : f32 to vector<8x64xf32>
    %39 = arith.select %36, %37, %38 : vector<8x64xi1>, vector<8x64xf32>
    %40 = math.absf %34 : vector<8x64xf32>
    %cst_19 = arith.constant 0.327591091 : f32
    %41 = vector.broadcast %cst_19 : f32 to vector<8x64xf32>
    %42 = arith.mulf %41, %40 : vector<8x64xf32>
    %cst_20 = arith.constant 1.000000e+00 : f32
    %43 = vector.broadcast %cst_20 : f32 to vector<8x64xf32>
    %44 = arith.addf %43, %42 : vector<8x64xf32>
    %cst_21 = arith.constant 1.000000e+00 : f32
    %45 = vector.broadcast %cst_21 : f32 to vector<8x64xf32>
    %46 = arith.divf %45, %44 : vector<8x64xf32>
    %cst_22 = arith.constant 1.06140542 : f32
    %47 = vector.broadcast %cst_22 : f32 to vector<8x64xf32>
    %48 = arith.mulf %47, %46 : vector<8x64xf32>
    %cst_23 = arith.constant -1.45315206 : f32
    %49 = vector.broadcast %cst_23 : f32 to vector<8x64xf32>
    %50 = arith.addf %48, %49 : vector<8x64xf32>
    %51 = arith.mulf %50, %46 : vector<8x64xf32>
    %cst_24 = arith.constant 1.42141378 : f32
    %52 = vector.broadcast %cst_24 : f32 to vector<8x64xf32>
    %53 = arith.addf %51, %52 : vector<8x64xf32>
    %54 = arith.mulf %53, %46 : vector<8x64xf32>
    %cst_25 = arith.constant -0.284496725 : f32
    %55 = vector.broadcast %cst_25 : f32 to vector<8x64xf32>
    %56 = arith.addf %54, %55 : vector<8x64xf32>
    %57 = arith.mulf %56, %46 : vector<8x64xf32>
    %cst_26 = arith.constant 0.254829586 : f32
    %58 = vector.broadcast %cst_26 : f32 to vector<8x64xf32>
    %59 = arith.addf %57, %58 : vector<8x64xf32>
    %60 = arith.mulf %59, %46 : vector<8x64xf32>
    %cst_27 = arith.constant 0.000000e+00 : f32
    %61 = vector.broadcast %cst_27 : f32 to vector<8x64xf32>
    %62 = arith.subf %61, %40 : vector<8x64xf32>
    %63 = arith.mulf %62, %40 : vector<8x64xf32>
    %64 = math.exp %63 : vector<8x64xf32>
    %65 = arith.mulf %60, %64 : vector<8x64xf32>
    %cst_28 = arith.constant 1.000000e+00 : f32
    %66 = vector.broadcast %cst_28 : f32 to vector<8x64xf32>
    %67 = arith.subf %66, %65 : vector<8x64xf32>
    %68 = arith.mulf %39, %67 : vector<8x64xf32>
    %cst_29 = arith.constant 1.000000e+00 : f32
    %69 = vector.broadcast %cst_29 : f32 to vector<8x64xf32>
    %70 = arith.addf %69, %68 : vector<8x64xf32>
    %71 = arith.mulf %32, %70 : vector<8x64xf32>
    %72 = arith.truncf %71 : vector<8x64xf32> to vector<8x64xbf16>
    %c0_30 = arith.constant 0 : index
    %c0_31 = arith.constant 0 : index
    %73 = vector.load %arg7[%c0_30, %c0_31] : memref<64x64xbf16, #tpu.memory_space<vmem>>, vector<64x64xbf16>
    %cst_32 = arith.constant dense<0.000000e+00> : vector<8x64xf32>
    %74 = tpu.matmul %72, %73, %cst_32 {dimension_numbers = #tpu.dot_dimension_numbers<[1], [0], [0], [1], [0, 0, 1, 1], [], []>} : vector<8x64xbf16>, vector<64x64xbf16>, vector<8x64xf32> -> vector<8x64xf32>
    %c0_33 = arith.constant 0 : index
    %c0_34 = arith.constant 0 : index
    %75 = vector.load %arg8[%c0_33, %c0_34] : memref<1x64xf32, #tpu.memory_space<vmem>>, vector<1x64xf32>
    %76 = vector.broadcast %75 : vector<1x64xf32> to vector<8x64xf32>
    %77 = arith.addf %74, %76 : vector<8x64xf32>
    %c0_35 = arith.constant 0 : index
    %c0_36 = arith.constant 0 : index
    %78 = vector.load %arg2[%c0_35, %c0_36] : memref<8x64xf32, #tpu.memory_space<vmem>>, vector<8x64xf32>
    %79 = arith.addf %78, %77 : vector<8x64xf32>
    %c0_37 = arith.constant 0 : index
    %c0_38 = arith.constant 0 : index
    %80 = vector.load %arg9[%c0_37, %c0_38] : memref<1x64xf32, #tpu.memory_space<vmem>>, vector<1x64xf32>
    %c0_39 = arith.constant 0 : index
    %c0_40 = arith.constant 0 : index
    %81 = vector.load %arg10[%c0_39, %c0_40] : memref<1x64xf32, #tpu.memory_space<vmem>>, vector<1x64xf32>
    %cst_41 = arith.constant dense<0.000000e+00> : vector<8xf32>
    %82 = vector.multi_reduction <add>, %79, %cst_41 [1] : vector<8x64xf32> to vector<8xf32>
    %83 = vector.shape_cast %82 : vector<8xf32> to vector<8x1xf32>
    %cst_42 = arith.constant 6.400000e+01 : f32
    %84 = vector.broadcast %cst_42 : f32 to vector<8x1xf32>
    %85 = arith.divf %83, %84 : vector<8x1xf32>
    %86 = vector.broadcast %85 : vector<8x1xf32> to vector<8x64xf32>
    %87 = arith.subf %79, %86 : vector<8x64xf32>
    %88 = arith.mulf %87, %87 : vector<8x64xf32>
    %cst_43 = arith.constant dense<0.000000e+00> : vector<8xf32>
    %89 = vector.multi_reduction <add>, %88, %cst_43 [1] : vector<8x64xf32> to vector<8xf32>
    %90 = vector.shape_cast %89 : vector<8xf32> to vector<8x1xf32>
    %cst_44 = arith.constant 6.400000e+01 : f32
    %91 = vector.broadcast %cst_44 : f32 to vector<8x1xf32>
    %92 = arith.divf %90, %91 : vector<8x1xf32>
    %93 = vector.broadcast %85 : vector<8x1xf32> to vector<8x64xf32>
    %94 = arith.subf %79, %93 : vector<8x64xf32>
    %cst_45 = arith.constant 9.99999974E-6 : f32
    %95 = vector.broadcast %cst_45 : f32 to vector<8x1xf32>
    %96 = arith.addf %92, %95 : vector<8x1xf32>
    %97 = math.rsqrt %96 : vector<8x1xf32>
    %98 = vector.broadcast %97 : vector<8x1xf32> to vector<8x64xf32>
    %99 = arith.mulf %94, %98 : vector<8x64xf32>
    %100 = vector.broadcast %80 : vector<1x64xf32> to vector<8x64xf32>
    %101 = arith.mulf %99, %100 : vector<8x64xf32>
    %102 = vector.broadcast %81 : vector<1x64xf32> to vector<8x64xf32>
    %103 = arith.addf %101, %102 : vector<8x64xf32>
    %c0_46 = arith.constant 0 : index
    %c0_47 = arith.constant 0 : index
    %104 = vector.load %arg11[%c0_46, %c0_47] : memref<8x64xf32, #tpu.memory_space<vmem>>, vector<8x64xf32>
    tpu.vector_store %arg11[%c0_46, %c0_47], %103 {strides = array<i32>} : memref<8x64xf32, #tpu.memory_space<vmem>>, vector<8x64xf32>,
    return
  }
  func.func @transform_0(%arg0: i32) -> (i32, i32) {
    %c0_i32 = arith.constant 0 : i32
    %c0_i32_0 = arith.constant 0 : i32
    return %arg0, %c0_i32 : i32, i32
  }
  func.func @transform_1(%arg0: i32) -> (i32, i32) {
    %c0_i32 = arith.constant 0 : i32
    %c0_i32_0 = arith.constant 0 : i32
    return %arg0, %c0_i32 : i32, i32
  }
  func.func @transform_2(%arg0: i32) -> (i32, i32) {
    %c0_i32 = arith.constant 0 : i32
    %c0_i32_0 = arith.constant 0 : i32
    %c0_i32_1 = arith.constant 0 : i32
    return %c0_i32, %c0_i32_0 : i32, i32
  }
  func.func @transform_3(%arg0: i32) -> (i32, i32) {
    %c0_i32 = arith.constant 0 : i32
    %c0_i32_0 = arith.constant 0 : i32
    %c0_i32_1 = arith.constant 0 : i32
    return %c0_i32, %c0_i32_0 : i32, i32
  }
  func.func @transform_4(%arg0: i32) -> (i32, i32) {
    %c0_i32 = arith.constant 0 : i32
    %c0_i32_0 = arith.constant 0 : i32
    %c0_i32_1 = arith.constant 0 : i32
    return %c0_i32, %c0_i32_0 : i32, i32
  }
  func.func @transform_5(%arg0: i32) -> (i32, i32) {
    %c0_i32 = arith.constant 0 : i32
    %c0_i32_0 = arith.constant 0 : i32
    %c0_i32_1 = arith.constant 0 : i32
    return %c0_i32, %c0_i32_0 : i32, i32
  }
  func.func @transform_6(%arg0: i32) -> (i32, i32) {
    %c0_i32 = arith.constant 0 : i32
    %c0_i32_0 = arith.constant 0 : i32
    %c0_i32_1 = arith.constant 0 : i32
    return %c0_i32, %c0_i32_0 : i32, i32
  }
  func.func @transform_7(%arg0: i32) -> (i32, i32) {
    %c0_i32 = arith.constant 0 : i32
    %c0_i32_0 = arith.constant 0 : i32
    %c0_i32_1 = arith.constant 0 : i32
    return %c0_i32, %c0_i32_0 : i32, i32
  }
  func.func @transform_8(%arg0: i32) -> (i32, i32) {
    %c0_i32 = arith.constant 0 : i32
    %c0_i32_0 = arith.constant 0 : i32
    %c0_i32_1 = arith.constant 0 : i32
    return %c0_i32, %c0_i32_0 : i32, i32
  }
  func.func @transform_9(%arg0: i32) -> (i32, i32) {
    %c0_i32 = arith.constant 0 : i32
    %c0_i32_0 = arith.constant 0 : i32
    %c0_i32_1 = arith.constant 0 : i32
    return %c0_i32, %c0_i32_0 : i32, i32
  }
  func.func @transform_10(%arg0: i32) -> (i32, i32) {
    %c0_i32 = arith.constant 0 : i32
    %c0_i32_0 = arith.constant 0 : i32
    return %arg0, %c0_i32 : i32, i32
  }
}

</mosaic_0001>

<llo_original>
// kernel: _lambda_.7
$region0: #{_lambda_.7}
  #allocation0 [shape = 'u32[]', space=smem, size = 0x4, offset = 0x4, fixed_abs, tag = 'smem constant byte address 0x4 - core index']
  #allocation1 [shape = 'u32[144,128]{1,0:T(1,128)}', space=vmem, size = 0x12000, scoped, tag = 'internal scratch']
  %s0 = inlined_call_operand.vmem [shape: f32[16,64], index: 0, kind: input, shape index: {}]
  %s1 = inlined_call_operand.vmem [shape: f32[1,64], index: 1, kind: input, shape index: {}]
  %s2 = inlined_call_operand.vmem [shape: f32[1,64], index: 2, kind: input, shape index: {}]
  %s3 = inlined_call_operand.vmem [shape: bf16[64,64], index: 3, kind: input, shape index: {}]
  %s4 = inlined_call_operand.vmem [shape: bf16[32,64], index: 4, kind: input, shape index: {}]
  %s5 = inlined_call_operand.vmem [shape: bf16[32,64], index: 5, kind: input, shape index: {}]
  %s6 = inlined_call_operand.vmem [shape: f32[16,64], index: 6, kind: output, shape index: {0}]
  %s7 = inlined_call_operand.vmem [shape: f32[16,64], index: 7, kind: output, shape index: {1}]
  %8 = xla_tuple %s6, %s7
  %s9 = sld [smem:[#allocation0]]
  $region65: #{_lambda_.7} parent=0
    _
  %s11 = ssub.s32 1, %s9
  %s12 = scalar_select 0, %s11, %s9
  loop: start=0, step=1, limit=4
  $region2: #{_lambda_.7} parent=0 // loop_pre_header
    _
  $region3: #{_lambda_.7} parent=0 // loop_header
    %s14 = sphi 0, %s18
    %p15 = scmp.ge.s32.totalorder %s14, 4
    %s24 = sphi 0, %s26
    %s27 = sphi 0, %s24
    %s28 = sphi 0, %s27
    %s44 = sphi 0, %s28
    %s48 = sphi 0, %s48
    %s50 = sphi 0, %s48
    %s51 = sphi 0, %s50
    %s65 = sphi 0, %s51
    %s69 = sphi 0, %s69
    %s71 = sphi 0, %s69
    %s72 = sphi 0, %s71
    %s86 = sphi 0, %s72
    %s90 = sphi 0, %s90
    %s92 = sphi 0, %s90
    %s93 = sphi 0, %s92
    %s107 = sphi 0, %s93
    %s111 = sphi 0, %s111
    %s113 = sphi 0, %s111
    %s114 = sphi 0, %s113
    %s128 = sphi 0, %s114
    %s132 = sphi 0, %s132
    %s134 = sphi 0, %s132
    %s135 = sphi 0, %s134
    %s149 = sphi 0, %s135
    %s155 = sphi 0, %s157
    %s158 = sphi 0, %s155
    %s159 = sphi 0, %s158
    %s175 = sphi 0, %s159
    %s181 = sphi 0, %s183
    %s184 = sphi 0, %s181
    %s185 = sphi 0, %s184
    %s201 = sphi 0, %s185
  $region4: #{_lambda_.7} parent=0 // loop_header_branch
    %17 = sbr.rel (%p15) target = $region8
  $region5: #{_lambda_.7} parent=0 // loop_body
    %s19 = ssub.s32 %s14, 1
    %s20 = ssub.s32 %s14, 2
    %s21 = sadd.s32 %s14, 1
    %s22 = ssub.s32 %s14, %s21
    %p23 = scmp.eq.s32.totalorder %s22, 0
    %s25 = sadd.s32 %s24, 1
    %s26 = scalar_select %p23, %s24, %s25
    %p29 = pneg %p23
    %p30 = scmp.eq.s32.totalorder %s14, 1
    %p31 = por %p29, %p30
    %p32 = scmp.ne.s32.totalorder %s24, %s27
    %p33 = scmp.eq.s32.totalorder %s14, 0
    %p34 = por %p32, %p33
    %p35 = scmp.ne.s32.totalorder %s24, %s27
    %p36 = scmp.eq.s32.totalorder %s19, 1
    %p37 = por %p35, %p36
    %p38 = scmp.ne.s32.totalorder %s27, %s28
    %p39 = scmp.eq.s32.totalorder %s19, 0
    %p40 = por %p38, %p39
    %p41 = scmp.ne.s32.totalorder %s27, %s28
    %p42 = scmp.eq.s32.totalorder %s20, 1
    %p43 = por %p41, %p42
    %p45 = scmp.ne.s32.totalorder %s28, %s44
    %p46 = scmp.eq.s32.totalorder %s20, 0
    %p47 = por %p45, %p46
    %s49 = sadd.s32 %s48, 1
    %p52 = scmp.eq.s32.totalorder %s14, 1
    %p53 = scmp.ne.s32.totalorder %s48, %s50
    %p54 = scmp.eq.s32.totalorder %s14, 0
    %p55 = por %p53, %p54
    %p56 = scmp.ne.s32.totalorder %s48, %s50
    %p57 = scmp.eq.s32.totalorder %s19, 1
    %p58 = por %p56, %p57
    %p59 = scmp.ne.s32.totalorder %s50, %s51
    %p60 = scmp.eq.s32.totalorder %s19, 0
    %p61 = por %p59, %p60
    %p62 = scmp.ne.s32.totalorder %s50, %s51
    %p63 = scmp.eq.s32.totalorder %s20, 1
    %p64 = por %p62, %p63
    %p66 = scmp.ne.s32.totalorder %s51, %s65
    %p67 = scmp.eq.s32.totalorder %s20, 0
    %p68 = por %p66, %p67
    %s70 = sadd.s32 %s69, 1
    %p73 = scmp.eq.s32.totalorder %s14, 1
    %p74 = scmp.ne.s32.totalorder %s69, %s71
    %p75 = scmp.eq.s32.totalorder %s14, 0
    %p76 = por %p74, %p75
    %p77 = scmp.ne.s32.totalorder %s69, %s71
    %p78 = scmp.eq.s32.totalorder %s19, 1
    %p79 = por %p77, %p78
    %p80 = scmp.ne.s32.totalorder %s71, %s72
    %p81 = scmp.eq.s32.totalorder %s19, 0
    %p82 = por %p80, %p81
    %p83 = scmp.ne.s32.totalorder %s71, %s72
    %p84 = scmp.eq.s32.totalorder %s20, 1
    %p85 = por %p83, %p84
    %p87 = scmp.ne.s32.totalorder %s72, %s86
    %p88 = scmp.eq.s32.totalorder %s20, 0
    %p89 = por %p87, %p88
    %s91 = sadd.s32 %s90, 1
    %p94 = scmp.eq.s32.totalorder %s14, 1
    %p95 = scmp.ne.s32.totalorder %s90, %s92
    %p96 = scmp.eq.s32.totalorder %s14, 0
    %p97 = por %p95, %p96
    %p98 = scmp.ne.s32.totalorder %s90, %s92
    %p99 = scmp.eq.s32.totalorder %s19, 1
    %p100 = por %p98, %p99
    %p101 = scmp.ne.s32.totalorder %s92, %s93
    %p102 = scmp.eq.s32.totalorder %s19, 0
    %p103 = por %p101, %p102
    %p104 = scmp.ne.s32.totalorder %s92, %s93
    %p105 = scmp.eq.s32.totalorder %s20, 1
    %p106 = por %p104, %p105
    %p108 = scmp.ne.s32.totalorder %s93, %s107
    %p109 = scmp.eq.s32.totalorder %s20, 0
    %p110 = por %p108, %p109
    %s112 = sadd.s32 %s111, 1
    %p115 = scmp.eq.s32.totalorder %s14, 1
    %p116 = scmp.ne.s32.totalorder %s111, %s113
    %p117 = scmp.eq.s32.totalorder %s14, 0
    %p118 = por %p116, %p117
    %p119 = scmp.ne.s32.totalorder %s111, %s113
    %p120 = scmp.eq.s32.totalorder %s19, 1
    %p121 = por %p119, %p120
    %p122 = scmp.ne.s32.totalorder %s113, %s114
    %p123 = scmp.eq.s32.totalorder %s19, 0
    %p124 = por %p122, %p123
    %p125 = scmp.ne.s32.totalorder %s113, %s114
    %p126 = scmp.eq.s32.totalorder %s20, 1
    %p127 = por %p125, %p126
    %p129 = scmp.ne.s32.totalorder %s114, %s128
    %p130 = scmp.eq.s32.totalorder %s20, 0
    %p131 = por %p129, %p130
    %s133 = sadd.s32 %s132, 1
    %p136 = scmp.eq.s32.totalorder %s14, 1
    %p137 = scmp.ne.s32.totalorder %s132, %s134
    %p138 = scmp.eq.s32.totalorder %s14, 0
    %p139 = por %p137, %p138
    %p140 = scmp.ne.s32.totalorder %s132, %s134
    %p141 = scmp.eq.s32.totalorder %s19, 1
    %p142 = por %p140, %p141
    %p143 = scmp.ne.s32.totalorder %s134, %s135
    %p144 = scmp.eq.s32.totalorder %s19, 0
    %p145 = por %p143, %p144
    %p146 = scmp.ne.s32.totalorder %s134, %s135
    %p147 = scmp.eq.s32.totalorder %s20, 1
    %p148 = por %p146, %p147
    %p150 = scmp.ne.s32.totalorder %s135, %s149
    %p151 = scmp.eq.s32.totalorder %s20, 0
    %p152 = por %p150, %p151
    %s153 = ssub.s32 %s14, %s21
    %p154 = scmp.eq.s32.totalorder %s153, 0
    %s156 = sadd.s32 %s155, 1
    %s157 = scalar_select %p154, %s155, %s156
    %p160 = pneg %p154
    %p161 = scmp.eq.s32.totalorder %s14, 1
    %p162 = por %p160, %p161
    %p163 = scmp.ne.s32.totalorder %s155, %s158
    %p164 = scmp.eq.s32.totalorder %s14, 0
    %p165 = por %p163, %p164
    %p166 = scmp.ne.s32.totalorder %s155, %s158
    %p167 = scmp.eq.s32.totalorder %s19, 1
    %p168 = por %p166, %p167
    %p169 = scmp.ne.s32.totalorder %s158, %s159
    %p170 = scmp.eq.s32.totalorder %s19, 0
    %p171 = por %p169, %p170
    %p172 = scmp.ne.s32.totalorder %s158, %s159
    %p173 = scmp.eq.s32.totalorder %s20, 1
    %p174 = por %p172, %p173
    %p176 = scmp.ne.s32.totalorder %s159, %s175
    %p177 = scmp.eq.s32.totalorder %s20, 0
    %p178 = por %p176, %p177
    %s179 = ssub.s32 %s14, %s21
    %p180 = scmp.eq.s32.totalorder %s179, 0
    %s182 = sadd.s32 %s181, 1
    %s183 = scalar_select %p180, %s181, %s182
    %p186 = pneg %p180
    %p187 = scmp.eq.s32.totalorder %s14, 1
    %p188 = por %p186, %p187
    %p189 = scmp.ne.s32.totalorder %s181, %s184
    %p190 = scmp.eq.s32.totalorder %s14, 0
    %p191 = por %p189, %p190
    %p192 = scmp.ne.s32.totalorder %s181, %s184
    %p193 = scmp.eq.s32.totalorder %s19, 1
    %p194 = por %p192, %p193
    %p195 = scmp.ne.s32.totalorder %s184, %s185
    %p196 = scmp.eq.s32.totalorder %s19, 0
    %p197 = por %p195, %p196
    %p198 = scmp.ne.s32.totalorder %s184, %s185
    %p199 = scmp.eq.s32.totalorder %s20, 1
    %p200 = por %p198, %p199
    %p202 = scmp.ne.s32.totalorder %s185, %s201
    %p203 = scmp.eq.s32.totalorder %s20, 0
    %p204 = por %p202, %p203
    %p205 = scmp.le.s32.totalorder 1, %s14
    %p206 = scmp.lt.s32.totalorder %s14, 3
    %p207 = pnand %p205, %p206
    %p208 = pneg %p207
    // Predicated region
    $region9: #{_lambda_.7} parent=5 // pred_check
      _
    $region10: #{_lambda_.7} parent=5 // pred_check_branch
      %210 = sbr.rel (%p207) target = $region12
    $region11: #{_lambda_.7} parent=5 // pred_region
      %s211 = ssub.s32 %s14, 1
      // Predicated region
      $region13: #{_lambda_.7} parent=11 // pred_check
        %p212 = pneg %p61
      $region14: #{_lambda_.7} parent=11 // pred_check_branch
        %214 = sbr.rel (%p212) target = $region16
      $region15: #{_lambda_.7} parent=11 // pred_region
        _
      $region16: #{_lambda_.7} parent=11 // pred_fallthru
        _
      // Predicated region
      $region17: #{_lambda_.7} parent=11 // pred_check
        %p215 = pneg %p82
      $region18: #{_lambda_.7} parent=11 // pred_check_branch
        %217 = sbr.rel (%p215) target = $region20
      $region19: #{_lambda_.7} parent=11 // pred_region
        _
      $region20: #{_lambda_.7} parent=11 // pred_fallthru
        _
      // Predicated region
      $region21: #{_lambda_.7} parent=11 // pred_check
        %p218 = pneg %p103
      $region22: #{_lambda_.7} parent=11 // pred_check_branch
        %220 = sbr.rel (%p218) target = $region24
      $region23: #{_lambda_.7} parent=11 // pred_region
        _
      $region24: #{_lambda_.7} parent=11 // pred_fallthru
        _
      // Predicated region
      $region25: #{_lambda_.7} parent=11 // pred_check
        %p221 = pneg %p124
      $region26: #{_lambda_.7} parent=11 // pred_check_branch
        %223 = sbr.rel (%p221) target = $region28
      $region27: #{_lambda_.7} parent=11 // pred_region
        _
      $region28: #{_lambda_.7} parent=11 // pred_fallthru
        _
      // Predicated region
      $region29: #{_lambda_.7} parent=11 // pred_check
        %p224 = pneg %p145
      $region30: #{_lambda_.7} parent=11 // pred_check_branch
        %226 = sbr.rel (%p224) target = $region32
      $region31: #{_lambda_.7} parent=11 // pred_region
        _
      $region32: #{_lambda_.7} parent=11 // pred_fallthru
        _
    $region12: #{_lambda_.7} parent=5 // pred_fallthru
      _
    %p227 = scmp.lt.s32.totalorder %s14, 2
    // Predicated region
    $region33: #{_lambda_.7} parent=5 // pred_check
      %p228 = pneg %p227
    $region34: #{_lambda_.7} parent=5 // pred_check_branch
      %230 = sbr.rel (%p228) target = $region36
    $region35: #{_lambda_.7} parent=5 // pred_region
      // Predicated region
      $region37: #{_lambda_.7} parent=35 // pred_check
        %p231 = pneg %p34
      $region38: #{_lambda_.7} parent=35 // pred_check_branch
        %233 = sbr.rel (%p231) target = $region40
      $region39: #{_lambda_.7} parent=35 // pred_region
        %p234 = scmp.lt.s32.totalorder %s14, 1
        %s235 = scalar_select %p234, %s14, 1
        %s236 = smul.addr %s235, 8
        %s237 = scalar_lea.vmem %s0, %s236
      $region40: #{_lambda_.7} parent=35 // pred_fallthru
        _
    $region36: #{_lambda_.7} parent=5 // pred_fallthru
      _
    %p238 = scmp.le.s32.totalorder 1, %s14
    %p239 = scmp.lt.s32.totalorder %s14, 3
    %p240 = pnand %p238, %p239
    %p241 = pneg %p240
    // Predicated region
    $region41: #{_lambda_.7} parent=5 // pred_check
      _
    $region42: #{_lambda_.7} parent=5 // pred_check_branch
      %243 = sbr.rel (%p240) target = $region44
    $region43: #{_lambda_.7} parent=5 // pred_region
      %s244 = ssub.s32 %s14, 1
      %p245 = scmp.lt.s32.totalorder %s19, 1
      %s246 = scalar_select %p245, %s19, 1
      %s247 = smul.addr %s246, 8
      %s248 = scalar_lea.vmem %s0, %s247
      %p249 = pneg %p40
      %p250 = pneg %p37
      %p251 = pneg %p61
      %p252 = pneg %p58
      %p253 = pneg %p82
      %p254 = pneg %p79
      %p255 = pneg %p103
      %p256 = pneg %p100
      %p257 = pneg %p124
      %p258 = pneg %p121
      %p259 = pneg %p145
      %p260 = pneg %p142
      %p261 = pneg %p171
      %p262 = pneg %p168
      %p263 = scmp.lt.s32.totalorder %s19, 1
      %s264 = scalar_select %p263, %s19, 1
      %s265 = smul.addr %s264, 8
      %s266 = scalar_lea.vmem %s6, %s265
      %p267 = pneg %p197
      %p268 = pneg %p194
      %p269 = scmp.lt.s32.totalorder %s19, 1
      %s270 = scalar_select %p269, %s19, 1
      %s271 = smul.addr %s270, 8
      %s272 = scalar_lea.vmem %s7, %s271
      %p273 = scmp.lt.s32.totalorder %s19, 1
      %s274 = scalar_select %p273, %s19, 1
      %s275 = smul.addr %s274, 8
      %s276 = scalar_lea.vmem %s0, %s275
      %p277 = scmp.lt.s32.totalorder %s19, 1
      %s278 = scalar_select %p277, %s19, 1
      %s279 = smul.addr %s278, 8
      %s280 = scalar_lea.vmem %s6, %s279
      %p281 = scmp.lt.s32.totalorder %s19, 1
      %s282 = scalar_select %p281, %s19, 1
      %s283 = smul.addr %s282, 8
      %s284 = scalar_lea.vmem %s7, %s283
      %v286 = vld [vmem:[%s276] sm:$0xff]
      %v287 = vld [vmem:[%s1] sm:$0x1]
      %v288 = vld [vmem:[%s2] sm:$0x1]
      %vm289 = vcmask 523264
      %v290 = vsel %vm289, %v286, 0.0
      %291 = vadd.xlane.f32.xlu0 %v290
      %v292 = vpop.xlane.xlu0 %291
      %v293 = vrcp.pop 64.0
      %v294 = vmul.f32 %v292, %v293
      %v295 = vsub.f32 %v286, %v294
      %v296 = vmul.f32 %v295, %v295
      %v297 = vsel %vm289, %v296, 0.0
      %298 = vadd.xlane.f32.xlu0 %v297
      %v299 = vpop.xlane.xlu0 %298
      %v300 = vmul.f32 %v299, %v293
      %v301 = vadd.f32 %v300, 1e-05
      %v302 = vrsqrt.pop %v301
      %v303 = vmul.f32 %v295, %v302
      %v305 = vlaneseq
      %v306 = vshrl.u32 %v305, 7
      %v307 = vsub.s32 0, %v306
      %v308 = vrot.slane %v287, %v307
      %v310 = vmul.f32 %v303, %v308
      %v312 = vlaneseq
      %v313 = vshrl.u32 %v312, 7
      %v314 = vsub.s32 0, %v313
      %v315 = vrot.slane %v288, %v314
      %v317 = vadd.f32 %v310, %v315
      %v318 = vpack.c.bf16 %v317, %v317
      %v319 = vld [vmem:[%s3] sm:$0xf]
      %v320 = vld [vmem:[%s3 + $0x4] sm:$0xf]
      %v321 = vld [vmem:[%s3 + $0x8] sm:$0xf]
      %v322 = vld [vmem:[%s3 + $0xc] sm:$0xf]
      %v323 = vld [vmem:[%s3 + $0x10] sm:$0xf]
      %v324 = vld [vmem:[%s3 + $0x14] sm:$0xf]
      %v325 = vld [vmem:[%s3 + $0x18] sm:$0xf]
      %v326 = vld [vmem:[%s3 + $0x1c] sm:$0xf]
      %v335 = vunpack.c.l.b16 %v319
      %v336 = vunpack.c.l.b16 %v320
      %v337 = vunpack.c.l.b16 %v321
      %v338 = vunpack.c.l.b16 %v322
      %v339 = vunpack.c.l.b16 %v323
      %v340 = vunpack.c.l.b16 %v324
      %v341 = vunpack.c.l.b16 %v325
      %v342 = vunpack.c.l.b16 %v326
      %v343 = vpack.c.b16 %v336, %v335
      %v344 = vpack.c.b16 %v338, %v337
      %v345 = vpack.c.b16 %v340, %v339
      %v346 = vpack.c.b16 %v342, %v341
      %v352 = vsel %vm289, %v318, 0
      %354 = vmatprep.subr.bf16.mxu0 0
      %355 = vmatpush1.bf16.msra.mxu0 %v343
      %356 = vmatprep.subr.bf16.mxu0 0
      %357 = vmatpush1.bf16.msra.mxu0 %v344
      %358 = vmatprep.subr.bf16.mxu0 0
      %359 = vmatpush1.bf16.msra.mxu0 %v345
      %360 = vmatprep.subr.bf16.mxu0 0
      %361 = vmatpush1.bf16.msra.mxu0 %v346
      %362 = vmatprep.subr.bf16.mxu0 0
      %363 = vmatpush1.bf16.msra.mxu0 0
      %364 = vmatprep.subr.bf16.mxu0 0
      %365 = vmatpush1.bf16.msra.mxu0 0
      %366 = vmatprep.subr.bf16.mxu0 0
      %367 = vmatpush1.bf16.msra.mxu0 0
      %368 = vmatprep.subr.bf16.mxu0 0
      %369 = vmatpush1.bf16.msra.mxu0 0
      %370 = vmatprep.subr.bf16.mxu0 0
      %371 = vmatpush1.bf16.msra.mxu0 0
      %372 = vmatprep.subr.bf16.mxu0 0
      %373 = vmatpush1.bf16.msra.mxu0 0
      %374 = vmatprep.subr.bf16.mxu0 0
      %375 = vmatpush1.bf16.msra.mxu0 0
      %376 = vmatprep.subr.bf16.mxu0 0
      %377 = vmatpush1.bf16.msra.mxu0 0
      %378 = vmatprep.subr.bf16.mxu0 0
      %379 = vmatpush1.bf16.msra.mxu0 0
      %380 = vmatprep.subr.bf16.mxu0 0
      %381 = vmatpush1.bf16.msra.mxu0 0
      %382 = vmatprep.subr.bf16.mxu0 0
      %383 = vmatpush1.bf16.msra.mxu0 0
      %384 = vmatprep.subr.bf16.mxu0 0
      %385 = vmatpush1.bf16.msra.mxu0 0
      %386 = vmatprep.mubr.bf16.mxu0 0
      %387 = vmatmul.mubr.bf16.gmra.mrb[0].mxu0 %v352
      %v388 = vpop.f32.mrb[0].mxu0
      %v389 = vadd.f32 0.0, %v388
      %v390 = vpop.f32.mrb[0].mxu0
      %v391 = vpop.f32.mrb[0].mxu0
      %v392 = vpop.f32.mrb[0].mxu0
      %393 = vdwg.mxu0
      %v394 = vsub.f32 0.0, %v389
      %v395 = vmul.f32 %v394, 1.442695
      %v396 = vpow.pop %v395
      %v397 = vadd.f32 %v396, 1.0
      %v398 = vrcp.pop %v397
      %v399 = vmul.f32 1.0, %v398
      %v400 = vmul.f32 %v389, %v399
      %v401 = vpack.c.bf16 %v400, %v400
      %v402 = vld [vmem:[%s4] sm:$0xf]
      %v403 = vld [vmem:[%s4 + $0x4] sm:$0xf]
      %v404 = vld [vmem:[%s4 + $0x8] sm:$0xf]
      %v405 = vld [vmem:[%s4 + $0xc] sm:$0xf]
      %v410 = vunpack.c.l.b16 %v402
      %v411 = vunpack.c.l.b16 %v403
      %v412 = vunpack.c.l.b16 %v404
      %v413 = vunpack.c.l.b16 %v405
      %v414 = vpack.c.b16 %v411, %v410
      %v415 = vpack.c.b16 %v413, %v412
      %vm418 = vcmask 261120
      %v420 = vsel %vm418, %v401, 0
      %422 = vmatprep.subr.bf16.mxu0 0
      %423 = vmatpush1.bf16.msra.mxu0 %v414
      %424 = vmatprep.subr.bf16.mxu0 0
      %425 = vmatpush1.bf16.msra.mxu0 %v415
      %426 = vmatprep.subr.bf16.mxu0 0
      %427 = vmatpush1.bf16.msra.mxu0 0
      %428 = vmatprep.subr.bf16.mxu0 0
      %429 = vmatpush1.bf16.msra.mxu0 0
      %430 = vmatprep.subr.bf16.mxu0 0
      %431 = vmatpush1.bf16.msra.mxu0 0
      %432 = vmatprep.subr.bf16.mxu0 0
      %433 = vmatpush1.bf16.msra.mxu0 0
      %434 = vmatprep.subr.bf16.mxu0 0
      %435 = vmatpush1.bf16.msra.mxu0 0
      %436 = vmatprep.subr.bf16.mxu0 0
      %437 = vmatpush1.bf16.msra.mxu0 0
      %438 = vmatprep.subr.bf16.mxu0 0
      %439 = vmatpush1.bf16.msra.mxu0 0
      %440 = vmatprep.subr.bf16.mxu0 0
      %441 = vmatpush1.bf16.msra.mxu0 0
      %442 = vmatprep.subr.bf16.mxu0 0
      %443 = vmatpush1.bf16.msra.mxu0 0
      %444 = vmatprep.subr.bf16.mxu0 0
      %445 = vmatpush1.bf16.msra.mxu0 0
      %446 = vmatprep.subr.bf16.mxu0 0
      %447 = vmatpush1.bf16.msra.mxu0 0
      %448 = vmatprep.subr.bf16.mxu0 0
      %449 = vmatpush1.bf16.msra.mxu0 0
      %450 = vmatprep.subr.bf16.mxu0 0
      %451 = vmatpush1.bf16.msra.mxu0 0
      %452 = vmatprep.subr.bf16.mxu0 0
      %453 = vmatpush1.bf16.msra.mxu0 0
      %454 = vmatprep.mubr.bf16.mxu0 0
      %455 = vmatmul.mubr.bf16.gmra.mrb[0].mxu0 %v420
      %v456 = vpop.f32.mrb[0].mxu0
      %v457 = vadd.f32 0.0, %v456
      %v458 = vpop.f32.mrb[0].mxu0
      %v459 = vpop.f32.mrb[0].mxu0
      %v460 = vpop.f32.mrb[0].mxu0
      %461 = vdwg.mxu0
      %462 = vst.msk [vmem:[%s280] sm:$0xff] %vm289, %v457
      %v463 = vld [vmem:[%s5] sm:$0xf]
      %v464 = vld [vmem:[%s5 + $0x4] sm:$0xf]
      %v465 = vld [vmem:[%s5 + $0x8] sm:$0xf]
      %v466 = vld [vmem:[%s5 + $0xc] sm:$0xf]
      %468 = vrot.lane.b32.xlu0 %v401, 96
      %v469 = vpop.permute.xlu0 %468
      %v474 = vunpack.c.l.b16 %v463
      %v475 = vunpack.c.l.b16 %v464
      %v476 = vunpack.c.l.b16 %v465
      %v477 = vunpack.c.l.b16 %v466
      %v478 = vpack.c.b16 %v475, %v474
      %v479 = vpack.c.b16 %v477, %v476
      %v483 = vsel %vm418, %v469, 0
      %485 = vmatprep.subr.bf16.mxu0 0
      %486 = vmatpush1.bf16.msra.mxu0 %v478
      %487 = vmatprep.subr.bf16.mxu0 0
      %488 = vmatpush1.bf16.msra.mxu0 %v479
      %489 = vmatprep.subr.bf16.mxu0 0
      %490 = vmatpush1.bf16.msra.mxu0 0
      %491 = vmatprep.subr.bf16.mxu0 0
      %492 = vmatpush1.bf16.msra.mxu0 0
      %493 = vmatprep.subr.bf16.mxu0 0
      %494 = vmatpush1.bf16.msra.mxu0 0
      %495 = vmatprep.subr.bf16.mxu0 0
      %496 = vmatpush1.bf16.msra.mxu0 0
      %497 = vmatprep.subr.bf16.mxu0 0
      %498 = vmatpush1.bf16.msra.mxu0 0
      %499 = vmatprep.subr.bf16.mxu0 0
      %500 = vmatpush1.bf16.msra.mxu0 0
      %501 = vmatprep.subr.bf16.mxu0 0
      %502 = vmatpush1.bf16.msra.mxu0 0
      %503 = vmatprep.subr.bf16.mxu0 0
      %504 = vmatpush1.bf16.msra.mxu0 0
      %505 = vmatprep.subr.bf16.mxu0 0
      %506 = vmatpush1.bf16.msra.mxu0 0
      %507 = vmatprep.subr.bf16.mxu0 0
      %508 = vmatpush1.bf16.msra.mxu0 0
      %509 = vmatprep.subr.bf16.mxu0 0
      %510 = vmatpush1.bf16.msra.mxu0 0
      %511 = vmatprep.subr.bf16.mxu0 0
      %512 = vmatpush1.bf16.msra.mxu0 0
      %513 = vmatprep.subr.bf16.mxu0 0
      %514 = vmatpush1.bf16.msra.mxu0 0
      %515 = vmatprep.subr.bf16.mxu0 0
      %516 = vmatpush1.bf16.msra.mxu0 0
      %517 = vmatprep.mubr.bf16.mxu0 0
      %518 = vmatmul.mubr.bf16.gmra.mrb[0].mxu0 %v483
      %v519 = vpop.f32.mrb[0].mxu0
      %v520 = vadd.f32 0.0, %v519
      %v521 = vpop.f32.mrb[0].mxu0
      %v522 = vpop.f32.mrb[0].mxu0
      %v523 = vpop.f32.mrb[0].mxu0
      %524 = vdwg.mxu0
      %525 = vst.msk [vmem:[%s284] sm:$0xff] %vm289, %v520
      %p526 = scmp.lt.s32.totalorder %s19, 1
      %s527 = scalar_select %p526, %s19, 1
      %s528 = smul.addr %s527, 8
      %s529 = scalar_lea.vmem %s6, %s528
      %p530 = scmp.lt.s32.totalorder %s19, 1
      %s531 = scalar_select %p530, %s19, 1
      %s532 = smul.addr %s531, 8
      %s533 = scalar_lea.vmem %s7, %s532
      // Predicated region
      $region45: #{_lambda_.7} parent=43 // pred_check
        %p534 = pneg %p168
      $region46: #{_lambda_.7} parent=43 // pred_check_branch
        %536 = sbr.rel (%p534) target = $region48
      $region47: #{_lambda_.7} parent=43 // pred_region
        _
      $region48: #{_lambda_.7} parent=43 // pred_fallthru
        _
      // Predicated region
      $region49: #{_lambda_.7} parent=43 // pred_check
        %p537 = pneg %p194
      $region50: #{_lambda_.7} parent=43 // pred_check_branch
        %539 = sbr.rel (%p537) target = $region52
      $region51: #{_lambda_.7} parent=43 // pred_region
        _
      $region52: #{_lambda_.7} parent=43 // pred_fallthru
        _
    $region44: #{_lambda_.7} parent=5 // pred_fallthru
      _
    %p540 = scmp.le.s32.totalorder 2, %s14
    // Predicated region
    $region53: #{_lambda_.7} parent=5 // pred_check
      %p541 = pneg %p540
    $region54: #{_lambda_.7} parent=5 // pred_check_branch
      %543 = sbr.rel (%p541) target = $region56
    $region55: #{_lambda_.7} parent=5 // pred_region
      %s544 = ssub.s32 %s14, 2
      // Predicated region
      $region57: #{_lambda_.7} parent=55 // pred_check
        %p545 = pneg %p174
      $region58: #{_lambda_.7} parent=55 // pred_check_branch
        %547 = sbr.rel (%p545) target = $region60
      $region59: #{_lambda_.7} parent=55 // pred_region
        %p548 = scmp.lt.s32.totalorder %s20, 1
        %s549 = scalar_select %p548, %s20, 1
        %s550 = smul.addr %s549, 8
        %s551 = scalar_lea.vmem %s6, %s550
      $region60: #{_lambda_.7} parent=55 // pred_fallthru
        _
      // Predicated region
      $region61: #{_lambda_.7} parent=55 // pred_check
        %p552 = pneg %p200
      $region62: #{_lambda_.7} parent=55 // pred_check_branch
        %554 = sbr.rel (%p552) target = $region64
      $region63: #{_lambda_.7} parent=55 // pred_region
        %p555 = scmp.lt.s32.totalorder %s20, 1
        %s556 = scalar_select %p555, %s20, 1
        %s557 = smul.addr %s556, 8
        %s558 = scalar_lea.vmem %s7, %s557
      $region64: #{_lambda_.7} parent=55 // pred_fallthru
        _
    $region56: #{_lambda_.7} parent=5 // pred_fallthru
      _
  $region6: #{_lambda_.7} parent=0 // loop_footer
    %s18 = sadd.s32 1, %s14
  $region7: #{_lambda_.7} parent=0 // loop_footer_branch
    %13 = sbr.rel target = $region3
  $region8: #{_lambda_.7} parent=0 // loop_exit
    _

// kernel: _lambda_.6
$region0: #{_lambda_.6}
  #allocation0 [shape = 'u32[]', space=smem, size = 0x4, offset = 0x4, fixed_abs, tag = 'smem constant byte address 0x4 - core index']
  #allocation1 [shape = 'u32[144,128]{1,0:T(1,128)}', space=vmem, size = 0x12000, scoped, tag = 'internal scratch']
  %s0 = inlined_call_operand.vmem [shape: f32[16,32], index: 0, kind: input, shape index: {}]
  %s1 = inlined_call_operand.vmem [shape: f32[16,64], index: 1, kind: input, shape index: {}]
  %s2 = inlined_call_operand.vmem [shape: f32[1,32], index: 2, kind: input, shape index: {}]
  %s3 = inlined_call_operand.vmem [shape: f32[1,32], index: 3, kind: input, shape index: {}]
  %s4 = inlined_call_operand.vmem [shape: bf16[32,64], index: 4, kind: input, shape index: {}]
  %s5 = inlined_call_operand.vmem [shape: f32[1,64], index: 5, kind: input, shape index: {}]
  %s6 = inlined_call_operand.vmem [shape: bf16[64,64], index: 6, kind: input, shape index: {}]
  %s7 = inlined_call_operand.vmem [shape: f32[1,64], index: 7, kind: input, shape index: {}]
  %s8 = inlined_call_operand.vmem [shape: f32[1,64], index: 8, kind: input, shape index: {}]
  %s9 = inlined_call_operand.vmem [shape: f32[1,64], index: 9, kind: input, shape index: {}]
  %s10 = inlined_call_operand.vmem [shape: f32[16,64], index: 10, kind: output, shape index: {}]
  %s11 = sld [smem:[#allocation0]]
  $region73: #{_lambda_.6} parent=0
    _
  %s13 = ssub.s32 1, %s11
  %s14 = scalar_select 0, %s13, %s11
  loop: start=0, step=1, limit=4
  $region2: #{_lambda_.6} parent=0 // loop_pre_header
    _
  $region3: #{_lambda_.6} parent=0 // loop_header
    %s16 = sphi 0, %s20
    %p17 = scmp.ge.s32.totalorder %s16, 4
    %s26 = sphi 0, %s28
    %s29 = sphi 0, %s26
    %s30 = sphi 0, %s29
    %s46 = sphi 0, %s30
    %s52 = sphi 0, %s54
    %s55 = sphi 0, %s52
    %s56 = sphi 0, %s55
    %s72 = sphi 0, %s56
    %s76 = sphi 0, %s76
    %s78 = sphi 0, %s76
    %s79 = sphi 0, %s78
    %s93 = sphi 0, %s79
    %s97 = sphi 0, %s97
    %s99 = sphi 0, %s97
    %s100 = sphi 0, %s99
    %s114 = sphi 0, %s100
    %s118 = sphi 0, %s118
    %s120 = sphi 0, %s118
    %s121 = sphi 0, %s120
    %s135 = sphi 0, %s121
    %s139 = sphi 0, %s139
    %s141 = sphi 0, %s139
    %s142 = sphi 0, %s141
    %s156 = sphi 0, %s142
    %s160 = sphi 0, %s160
    %s162 = sphi 0, %s160
    %s163 = sphi 0, %s162
    %s177 = sphi 0, %s163
    %s181 = sphi 0, %s181
    %s183 = sphi 0, %s181
    %s184 = sphi 0, %s183
    %s198 = sphi 0, %s184
    %s202 = sphi 0, %s202
    %s204 = sphi 0, %s202
    %s205 = sphi 0, %s204
    %s219 = sphi 0, %s205
    %s223 = sphi 0, %s223
    %s225 = sphi 0, %s223
    %s226 = sphi 0, %s225
    %s240 = sphi 0, %s226
    %s246 = sphi 0, %s248
    %s249 = sphi 0, %s246
    %s250 = sphi 0, %s249
    %s266 = sphi 0, %s250
  $region4: #{_lambda_.6} parent=0 // loop_header_branch
    %19 = sbr.rel (%p17) target = $region8
  $region5: #{_lambda_.6} parent=0 // loop_body
    %s21 = ssub.s32 %s16, 1
    %s22 = ssub.s32 %s16, 2
    %s23 = sadd.s32 %s16, 1
    %s24 = ssub.s32 %s16, %s23
    %p25 = scmp.eq.s32.totalorder %s24, 0
    %s27 = sadd.s32 %s26, 1
    %s28 = scalar_select %p25, %s26, %s27
    %p31 = pneg %p25
    %p32 = scmp.eq.s32.totalorder %s16, 1
    %p33 = por %p31, %p32
    %p34 = scmp.ne.s32.totalorder %s26, %s29
    %p35 = scmp.eq.s32.totalorder %s16, 0
    %p36 = por %p34, %p35
    %p37 = scmp.ne.s32.totalorder %s26, %s29
    %p38 = scmp.eq.s32.totalorder %s21, 1
    %p39 = por %p37, %p38
    %p40 = scmp.ne.s32.totalorder %s29, %s30
    %p41 = scmp.eq.s32.totalorder %s21, 0
    %p42 = por %p40, %p41
    %p43 = scmp.ne.s32.totalorder %s29, %s30
    %p44 = scmp.eq.s32.totalorder %s22, 1
    %p45 = por %p43, %p44
    %p47 = scmp.ne.s32.totalorder %s30, %s46
    %p48 = scmp.eq.s32.totalorder %s22, 0
    %p49 = por %p47, %p48
    %s50 = ssub.s32 %s16, %s23
    %p51 = scmp.eq.s32.totalorder %s50, 0
    %s53 = sadd.s32 %s52, 1
    %s54 = scalar_select %p51, %s52, %s53
    %p57 = pneg %p51
    %p58 = scmp.eq.s32.totalorder %s16, 1
    %p59 = por %p57, %p58
    %p60 = scmp.ne.s32.totalorder %s52, %s55
    %p61 = scmp.eq.s32.totalorder %s16, 0
    %p62 = por %p60, %p61
    %p63 = scmp.ne.s32.totalorder %s52, %s55
    %p64 = scmp.eq.s32.totalorder %s21, 1
    %p65 = por %p63, %p64
    %p66 = scmp.ne.s32.totalorder %s55, %s56
    %p67 = scmp.eq.s32.totalorder %s21, 0
    %p68 = por %p66, %p67
    %p69 = scmp.ne.s32.totalorder %s55, %s56
    %p70 = scmp.eq.s32.totalorder %s22, 1
    %p71 = por %p69, %p70
    %p73 = scmp.ne.s32.totalorder %s56, %s72
    %p74 = scmp.eq.s32.totalorder %s22, 0
    %p75 = por %p73, %p74
    %s77 = sadd.s32 %s76, 1
    %p80 = scmp.eq.s32.totalorder %s16, 1
    %p81 = scmp.ne.s32.totalorder %s76, %s78
    %p82 = scmp.eq.s32.totalorder %s16, 0
    %p83 = por %p81, %p82
    %p84 = scmp.ne.s32.totalorder %s76, %s78
    %p85 = scmp.eq.s32.totalorder %s21, 1
    %p86 = por %p84, %p85
    %p87 = scmp.ne.s32.totalorder %s78, %s79
    %p88 = scmp.eq.s32.totalorder %s21, 0
    %p89 = por %p87, %p88
    %p90 = scmp.ne.s32.totalorder %s78, %s79
    %p91 = scmp.eq.s32.totalorder %s22, 1
    %p92 = por %p90, %p91
    %p94 = scmp.ne.s32.totalorder %s79, %s93
    %p95 = scmp.eq.s32.totalorder %s22, 0
    %p96 = por %p94, %p95
    %s98 = sadd.s32 %s97, 1
    %p101 = scmp.eq.s32.totalorder %s16, 1
    %p102 = scmp.ne.s32.totalorder %s97, %s99
    %p103 = scmp.eq.s32.totalorder %s16, 0
    %p104 = por %p102, %p103
    %p105 = scmp.ne.s32.totalorder %s97, %s99
    %p106 = scmp.eq.s32.totalorder %s21, 1
    %p107 = por %p105, %p106
    %p108 = scmp.ne.s32.totalorder %s99, %s100
    %p109 = scmp.eq.s32.totalorder %s21, 0
    %p110 = por %p108, %p109
    %p111 = scmp.ne.s32.totalorder %s99, %s100
    %p112 = scmp.eq.s32.totalorder %s22, 1
    %p113 = por %p111, %p112
    %p115 = scmp.ne.s32.totalorder %s100, %s114
    %p116 = scmp.eq.s32.totalorder %s22, 0
    %p117 = por %p115, %p116
    %s119 = sadd.s32 %s118, 1
    %p122 = scmp.eq.s32.totalorder %s16, 1
    %p123 = scmp.ne.s32.totalorder %s118, %s120
    %p124 = scmp.eq.s32.totalorder %s16, 0
    %p125 = por %p123, %p124
    %p126 = scmp.ne.s32.totalorder %s118, %s120
    %p127 = scmp.eq.s32.totalorder %s21, 1
    %p128 = por %p126, %p127
    %p129 = scmp.ne.s32.totalorder %s120, %s121
    %p130 = scmp.eq.s32.totalorder %s21, 0
    %p131 = por %p129, %p130
    %p132 = scmp.ne.s32.totalorder %s120, %s121
    %p133 = scmp.eq.s32.totalorder %s22, 1
    %p134 = por %p132, %p133
    %p136 = scmp.ne.s32.totalorder %s121, %s135
    %p137 = scmp.eq.s32.totalorder %s22, 0
    %p138 = por %p136, %p137
    %s140 = sadd.s32 %s139, 1
    %p143 = scmp.eq.s32.totalorder %s16, 1
    %p144 = scmp.ne.s32.totalorder %s139, %s141
    %p145 = scmp.eq.s32.totalorder %s16, 0
    %p146 = por %p144, %p145
    %p147 = scmp.ne.s32.totalorder %s139, %s141
    %p148 = scmp.eq.s32.totalorder %s21, 1
    %p149 = por %p147, %p148
    %p150 = scmp.ne.s32.totalorder %s141, %s142
    %p151 = scmp.eq.s32.totalorder %s21, 0
    %p152 = por %p150, %p151
    %p153 = scmp.ne.s32.totalorder %s141, %s142
    %p154 = scmp.eq.s32.totalorder %s22, 1
    %p155 = por %p153, %p154
    %p157 = scmp.ne.s32.totalorder %s142, %s156
    %p158 = scmp.eq.s32.totalorder %s22, 0
    %p159 = por %p157, %p158
    %s161 = sadd.s32 %s160, 1
    %p164 = scmp.eq.s32.totalorder %s16, 1
    %p165 = scmp.ne.s32.totalorder %s160, %s162
    %p166 = scmp.eq.s32.totalorder %s16, 0
    %p167 = por %p165, %p166
    %p168 = scmp.ne.s32.totalorder %s160, %s162
    %p169 = scmp.eq.s32.totalorder %s21, 1
    %p170 = por %p168, %p169
    %p171 = scmp.ne.s32.totalorder %s162, %s163
    %p172 = scmp.eq.s32.totalorder %s21, 0
    %p173 = por %p171, %p172
    %p174 = scmp.ne.s32.totalorder %s162, %s163
    %p175 = scmp.eq.s32.totalorder %s22, 1
    %p176 = por %p174, %p175
    %p178 = scmp.ne.s32.totalorder %s163, %s177
    %p179 = scmp.eq.s32.totalorder %s22, 0
    %p180 = por %p178, %p179
    %s182 = sadd.s32 %s181, 1
    %p185 = scmp.eq.s32.totalorder %s16, 1
    %p186 = scmp.ne.s32.totalorder %s181, %s183
    %p187 = scmp.eq.s32.totalorder %s16, 0
    %p188 = por %p186, %p187
    %p189 = scmp.ne.s32.totalorder %s181, %s183
    %p190 = scmp.eq.s32.totalorder %s21, 1
    %p191 = por %p189, %p190
    %p192 = scmp.ne.s32.totalorder %s183, %s184
    %p193 = scmp.eq.s32.totalorder %s21, 0
    %p194 = por %p192, %p193
    %p195 = scmp.ne.s32.totalorder %s183, %s184
    %p196 = scmp.eq.s32.totalorder %s22, 1
    %p197 = por %p195, %p196
    %p199 = scmp.ne.s32.totalorder %s184, %s198
    %p200 = scmp.eq.s32.totalorder %s22, 0
    %p201 = por %p199, %p200
    %s203 = sadd.s32 %s202, 1
    %p206 = scmp.eq.s32.totalorder %s16, 1
    %p207 = scmp.ne.s32.totalorder %s202, %s204
    %p208 = scmp.eq.s32.totalorder %s16, 0
    %p209 = por %p207, %p208
    %p210 = scmp.ne.s32.totalorder %s202, %s204
    %p211 = scmp.eq.s32.totalorder %s21, 1
    %p212 = por %p210, %p211
    %p213 = scmp.ne.s32.totalorder %s204, %s205
    %p214 = scmp.eq.s32.totalorder %s21, 0
    %p215 = por %p213, %p214
    %p216 = scmp.ne.s32.totalorder %s204, %s205
    %p217 = scmp.eq.s32.totalorder %s22, 1
    %p218 = por %p216, %p217
    %p220 = scmp.ne.s32.totalorder %s205, %s219
    %p221 = scmp.eq.s32.totalorder %s22, 0
    %p222 = por %p220, %p221
    %s224 = sadd.s32 %s223, 1
    %p227 = scmp.eq.s32.totalorder %s16, 1
    %p228 = scmp.ne.s32.totalorder %s223, %s225
    %p229 = scmp.eq.s32.totalorder %s16, 0
    %p230 = por %p228, %p229
    %p231 = scmp.ne.s32.totalorder %s223, %s225
    %p232 = scmp.eq.s32.totalorder %s21, 1
    %p233 = por %p231, %p232
    %p234 = scmp.ne.s32.totalorder %s225, %s226
    %p235 = scmp.eq.s32.totalorder %s21, 0
    %p236 = por %p234, %p235
    %p237 = scmp.ne.s32.totalorder %s225, %s226
    %p238 = scmp.eq.s32.totalorder %s22, 1
    %p239 = por %p237, %p238
    %p241 = scmp.ne.s32.totalorder %s226, %s240
    %p242 = scmp.eq.s32.totalorder %s22, 0
    %p243 = por %p241, %p242
    %s244 = ssub.s32 %s16, %s23
    %p245 = scmp.eq.s32.totalorder %s244, 0
    %s247 = sadd.s32 %s246, 1
    %s248 = scalar_select %p245, %s246, %s247
    %p251 = pneg %p245
    %p252 = scmp.eq.s32.totalorder %s16, 1
    %p253 = por %p251, %p252
    %p254 = scmp.ne.s32.totalorder %s246, %s249
    %p255 = scmp.eq.s32.totalorder %s16, 0
    %p256 = por %p254, %p255
    %p257 = scmp.ne.s32.totalorder %s246, %s249
    %p258 = scmp.eq.s32.totalorder %s21, 1
    %p259 = por %p257, %p258
    %p260 = scmp.ne.s32.totalorder %s249, %s250
    %p261 = scmp.eq.s32.totalorder %s21, 0
    %p262 = por %p260, %p261
    %p263 = scmp.ne.s32.totalorder %s249, %s250
    %p264 = scmp.eq.s32.totalorder %s22, 1
    %p265 = por %p263, %p264
    %p267 = scmp.ne.s32.totalorder %s250, %s266
    %p268 = scmp.eq.s32.totalorder %s22, 0
    %p269 = por %p267, %p268
    %p270 = scmp.le.s32.totalorder 1, %s16
    %p271 = scmp.lt.s32.totalorder %s16, 3
    %p272 = pnand %p270, %p271
    %p273 = pneg %p272
    // Predicated region
    $region9: #{_lambda_.6} parent=5 // pred_check
      _
    $region10: #{_lambda_.6} parent=5 // pred_check_branch
      %275 = sbr.rel (%p272) target = $region12
    $region11: #{_lambda_.6} parent=5 // pred_region
      %s276 = ssub.s32 %s16, 1
      // Predicated region
      $region13: #{_lambda_.6} parent=11 // pred_check
        %p277 = pneg %p89
      $region14: #{_lambda_.6} parent=11 // pred_check_branch
        %279 = sbr.rel (%p277) target = $region16
      $region15: #{_lambda_.6} parent=11 // pred_region
        _
      $region16: #{_lambda_.6} parent=11 // pred_fallthru
        _
      // Predicated region
      $region17: #{_lambda_.6} parent=11 // pred_check
        %p280 = pneg %p110
      $region18: #{_lambda_.6} parent=11 // pred_check_branch
        %282 = sbr.rel (%p280) target = $region20
      $region19: #{_lambda_.6} parent=11 // pred_region
        _
      $region20: #{_lambda_.6} parent=11 // pred_fallthru
        _
      // Predicated region
      $region21: #{_lambda_.6} parent=11 // pred_check
        %p283 = pneg %p131
      $region22: #{_lambda_.6} parent=11 // pred_check_branch
        %285 = sbr.rel (%p283) target = $region24
      $region23: #{_lambda_.6} parent=11 // pred_region
        _
      $region24: #{_lambda_.6} parent=11 // pred_fallthru
        _
      // Predicated region
      $region25: #{_lambda_.6} parent=11 // pred_check
        %p286 = pneg %p152
      $region26: #{_lambda_.6} parent=11 // pred_check_branch
        %288 = sbr.rel (%p286) target = $region28
      $region27: #{_lambda_.6} parent=11 // pred_region
        _
      $region28: #{_lambda_.6} parent=11 // pred_fallthru
        _
      // Predicated region
      $region29: #{_lambda_.6} parent=11 // pred_check
        %p289 = pneg %p173
      $region30: #{_lambda_.6} parent=11 // pred_check_branch
        %291 = sbr.rel (%p289) target = $region32
      $region31: #{_lambda_.6} parent=11 // pred_region
        _
      $region32: #{_lambda_.6} parent=11 // pred_fallthru
        _
      // Predicated region
      $region33: #{_lambda_.6} parent=11 // pred_check
        %p292 = pneg %p194
      $region34: #{_lambda_.6} parent=11 // pred_check_branch
        %294 = sbr.rel (%p292) target = $region36
      $region35: #{_lambda_.6} parent=11 // pred_region
        _
      $region36: #{_lambda_.6} parent=11 // pred_fallthru
        _
      // Predicated region
      $region37: #{_lambda_.6} parent=11 // pred_check
        %p295 = pneg %p215
      $region38: #{_lambda_.6} parent=11 // pred_check_branch
        %297 = sbr.rel (%p295) target = $region40
      $region39: #{_lambda_.6} parent=11 // pred_region
        _
      $region40: #{_lambda_.6} parent=11 // pred_fallthru
        _
      // Predicated region
      $region41: #{_lambda_.6} parent=11 // pred_check
        %p298 = pneg %p236
      $region42: #{_lambda_.6} parent=11 // pred_check_branch
        %300 = sbr.rel (%p298) target = $region44
      $region43: #{_lambda_.6} parent=11 // pred_region
        _
      $region44: #{_lambda_.6} parent=11 // pred_fallthru
        _
    $region12: #{_lambda_.6} parent=5 // pred_fallthru
      _
    %p301 = scmp.lt.s32.totalorder %s16, 2
    // Predicated region
    $region45: #{_lambda_.6} parent=5 // pred_check
      %p302 = pneg %p301
    $region46: #{_lambda_.6} parent=5 // pred_check_branch
      %304 = sbr.rel (%p302) target = $region48
    $region47: #{_lambda_.6} parent=5 // pred_region
      // Predicated region
      $region49: #{_lambda_.6} parent=47 // pred_check
        %p305 = pneg %p36
      $region50: #{_lambda_.6} parent=47 // pred_check_branch
        %307 = sbr.rel (%p305) target = $region52
      $region51: #{_lambda_.6} parent=47 // pred_region
        %p308 = scmp.lt.s32.totalorder %s16, 1
        %s309 = scalar_select %p308, %s16, 1
        %s310 = smul.addr %s309, 8
        %s311 = scalar_lea.vmem %s0, %s310
      $region52: #{_lambda_.6} parent=47 // pred_fallthru
        _
      // Predicated region
      $region53: #{_lambda_.6} parent=47 // pred_check
        %p312 = pneg %p62
      $region54: #{_lambda_.6} parent=47 // pred_check_branch
        %314 = sbr.rel (%p312) target = $region56
      $region55: #{_lambda_.6} parent=47 // pred_region
        %p315 = scmp.lt.s32.totalorder %s16, 1
        %s316 = scalar_select %p315, %s16, 1
        %s317 = smul.addr %s316, 8
        %s318 = scalar_lea.vmem %s1, %s317
      $region56: #{_lambda_.6} parent=47 // pred_fallthru
        _
    $region48: #{_lambda_.6} parent=5 // pred_fallthru
      _
    %p319 = scmp.le.s32.totalorder 1, %s16
    %p320 = scmp.lt.s32.totalorder %s16, 3
    %p321 = pnand %p319, %p320
    %p322 = pneg %p321
    // Predicated region
    $region57: #{_lambda_.6} parent=5 // pred_check
      _
    $region58: #{_lambda_.6} parent=5 // pred_check_branch
      %324 = sbr.rel (%p321) target = $region60
    $region59: #{_lambda_.6} parent=5 // pred_region
      %s325 = ssub.s32 %s16, 1
      %p326 = scmp.lt.s32.totalorder %s21, 1
      %s327 = scalar_select %p326, %s21, 1
      %s328 = smul.addr %s327, 8
      %s329 = scalar_lea.vmem %s0, %s328
      %p330 = pneg %p42
      %p331 = pneg %p39
      %p332 = scmp.lt.s32.totalorder %s21, 1
      %s333 = scalar_select %p332, %s21, 1
      %s334 = smul.addr %s333, 8
      %s335 = scalar_lea.vmem %s1, %s334
      %p336 = pneg %p68
      %p337 = pneg %p65
      %p338 = pneg %p89
      %p339 = pneg %p86
      %p340 = pneg %p110
      %p341 = pneg %p107
      %p342 = pneg %p131
      %p343 = pneg %p128
      %p344 = pneg %p152
      %p345 = pneg %p149
      %p346 = pneg %p173
      %p347 = pneg %p170
      %p348 = pneg %p194
      %p349 = pneg %p191
      %p350 = pneg %p215
      %p351 = pneg %p212
      %p352 = pneg %p236
      %p353 = pneg %p233
      %p354 = pneg %p262
      %p355 = pneg %p259
      %p356 = scmp.lt.s32.totalorder %s21, 1
      %s357 = scalar_select %p356, %s21, 1
      %s358 = smul.addr %s357, 8
      %s359 = scalar_lea.vmem %s10, %s358
      %p360 = scmp.lt.s32.totalorder %s21, 1
      %s361 = scalar_select %p360, %s21, 1
      %s362 = smul.addr %s361, 8
      %s363 = scalar_lea.vmem %s0, %s362
      %p364 = scmp.lt.s32.totalorder %s21, 1
      %s365 = scalar_select %p364, %s21, 1
      %s366 = smul.addr %s365, 8
      %s367 = scalar_lea.vmem %s1, %s366
      %p368 = scmp.lt.s32.totalorder %s21, 1
      %s369 = scalar_select %p368, %s21, 1
      %s370 = smul.addr %s369, 8
      %s371 = scalar_lea.vmem %s10, %s370
      %v373 = vld [vmem:[%s363] sm:$0xff]
      %v374 = vld [vmem:[%s2] sm:$0x1]
      %v375 = vld [vmem:[%s3] sm:$0x1]
      %vm376 = vcmask 261120
      %v377 = vsel %vm376, %v373, 0.0
      %378 = vadd.xlane.f32.xlu0 %v377
      %v379 = vpop.xlane.xlu0 %378
      %v380 = vrcp.pop 32.0
      %v381 = vmul.f32 %v379, %v380
      %v382 = vsub.f32 %v373, %v381
      %v383 = vmul.f32 %v382, %v382
      %v384 = vsel %vm376, %v383, 0.0
      %385 = vadd.xlane.f32.xlu0 %v384
      %v386 = vpop.xlane.xlu0 %385
      %v387 = vmul.f32 %v386, %v380
      %v388 = vadd.f32 %v387, 1e-05
      %v389 = vrsqrt.pop %v388
      %v390 = vmul.f32 %v382, %v389
      %v392 = vlaneseq
      %v393 = vshrl.u32 %v392, 7
      %v394 = vsub.s32 0, %v393
      %v395 = vrot.slane %v374, %v394
      %v397 = vmul.f32 %v390, %v395
      %v399 = vlaneseq
      %v400 = vshrl.u32 %v399, 7
      %v401 = vsub.s32 0, %v400
      %v402 = vrot.slane %v375, %v401
      %v404 = vadd.f32 %v397, %v402
      %v405 = vpack.c.bf16 %v404, %v404
      %v406 = vld [vmem:[%s4] sm:$0xf]
      %v407 = vld [vmem:[%s4 + $0x4] sm:$0xf]
      %v408 = vld [vmem:[%s4 + $0x8] sm:$0xf]
      %v409 = vld [vmem:[%s4 + $0xc] sm:$0xf]
      %v410 = vld [vmem:[%s5] sm:$0x1]
      %v412 = vlaneseq
      %v413 = vshrl.u32 %v412, 7
      %v414 = vsub.s32 0, %v413
      %v415 = vrot.slane %v410, %v414
      %v421 = vunpack.c.l.b16 %v406
      %v422 = vunpack.c.l.b16 %v407
      %v423 = vunpack.c.l.b16 %v408
      %v424 = vunpack.c.l.b16 %v409
      %v425 = vpack.c.b16 %v422, %v421
      %v426 = vpack.c.b16 %v424, %v423
      %v430 = vsel %vm376, %v405, 0
      %432 = vmatprep.subr.bf16.mxu0 0
      %433 = vmatpush1.bf16.msra.mxu0 %v425
      %434 = vmatprep.subr.bf16.mxu0 0
      %435 = vmatpush1.bf16.msra.mxu0 %v426
      %436 = vmatprep.subr.bf16.mxu0 0
      %437 = vmatpush1.bf16.msra.mxu0 0
      %438 = vmatprep.subr.bf16.mxu0 0
      %439 = vmatpush1.bf16.msra.mxu0 0
      %440 = vmatprep.subr.bf16.mxu0 0
      %441 = vmatpush1.bf16.msra.mxu0 0
      %442 = vmatprep.subr.bf16.mxu0 0
      %443 = vmatpush1.bf16.msra.mxu0 0
      %444 = vmatprep.subr.bf16.mxu0 0
      %445 = vmatpush1.bf16.msra.mxu0 0
      %446 = vmatprep.subr.bf16.mxu0 0
      %447 = vmatpush1.bf16.msra.mxu0 0
      %448 = vmatprep.subr.bf16.mxu0 0
      %449 = vmatpush1.bf16.msra.mxu0 0
      %450 = vmatprep.subr.bf16.mxu0 0
      %451 = vmatpush1.bf16.msra.mxu0 0
      %452 = vmatprep.subr.bf16.mxu0 0
      %453 = vmatpush1.bf16.msra.mxu0 0
      %454 = vmatprep.subr.bf16.mxu0 0
      %455 = vmatpush1.bf16.msra.mxu0 0
      %456 = vmatprep.subr.bf16.mxu0 0
      %457 = vmatpush1.bf16.msra.mxu0 0
      %458 = vmatprep.subr.bf16.mxu0 0
      %459 = vmatpush1.bf16.msra.mxu0 0
      %460 = vmatprep.subr.bf16.mxu0 0
      %461 = vmatpush1.bf16.msra.mxu0 0
      %462 = vmatprep.subr.bf16.mxu0 0
      %463 = vmatpush1.bf16.msra.mxu0 0
      %464 = vmatprep.mubr.bf16.mxu0 0
      %465 = vmatmul.mubr.bf16.gmra.mrb[0].mxu0 %v430
      %v466 = vpop.f32.mrb[0].mxu0
      %v467 = vadd.f32 %v415, %v466
      %v468 = vpop.f32.mrb[0].mxu0
      %v469 = vpop.f32.mrb[0].mxu0
      %v470 = vpop.f32.mrb[0].mxu0
      %471 = vdwg.mxu0
      %v472 = vmul.f32 %v467, 0.5
      %v473 = vmul.f32 %v467, 0.70710677
      %vm474 = vcmp.ge.f32.partialorder %v473, 0.0
      %v475 = vsel %vm474, 1.0, -1.0
      %v476 = vand.u32 2147483647, %v473
      %v477 = vmul.f32 %v476, 0.3275911
      %v478 = vadd.f32 %v477, 1.0
      %v479 = vrcp.pop %v478
      %v480 = vmul.f32 1.0, %v479
      %v481 = vmul.f32 %v480, 1.0614054
      %v482 = vadd.f32 %v481, -1.4531521
      %v483 = vmul.f32 %v482, %v480
      %v484 = vadd.f32 %v483, 1.4214138
      %v485 = vmul.f32 %v484, %v480
      %v486 = vadd.f32 %v485, -0.28449672
      %v487 = vmul.f32 %v486, %v480
      %v488 = vadd.f32 %v487, 0.2548296
      %v489 = vmul.f32 %v488, %v480
      %v490 = vsub.f32 0.0, %v476
      %v491 = vmul.f32 %v490, %v476
      %v492 = vmul.f32 %v491, 1.442695
      %v493 = vpow.pop %v492
      %v494 = vmul.f32 %v489, %v493
      %v495 = vsub.f32 1.0, %v494
      %v496 = vmul.f32 %v475, %v495
      %v497 = vadd.f32 %v496, 1.0
      %v498 = vmul.f32 %v472, %v497
      %v499 = vpack.c.bf16 %v498, %v498
      %v500 = vld [vmem:[%s6] sm:$0xf]
      %v501 = vld [vmem:[%s6 + $0x4] sm:$0xf]
      %v502 = vld [vmem:[%s6 + $0x8] sm:$0xf]
      %v503 = vld [vmem:[%s6 + $0xc] sm:$0xf]
      %v504 = vld [vmem:[%s6 + $0x10] sm:$0xf]
      %v505 = vld [vmem:[%s6 + $0x14] sm:$0xf]
      %v506 = vld [vmem:[%s6 + $0x18] sm:$0xf]
      %v507 = vld [vmem:[%s6 + $0x1c] sm:$0xf]
      %v508 = vld [vmem:[%s7] sm:$0x1]
      %v510 = vlaneseq
      %v511 = vshrl.u32 %v510, 7
      %v512 = vsub.s32 0, %v511
      %v513 = vrot.slane %v508, %v512
      %v523 = vunpack.c.l.b16 %v500
      %v524 = vunpack.c.l.b16 %v501
      %v525 = vunpack.c.l.b16 %v502
      %v526 = vunpack.c.l.b16 %v503
      %v527 = vunpack.c.l.b16 %v504
      %v528 = vunpack.c.l.b16 %v505
      %v529 = vunpack.c.l.b16 %v506
      %v530 = vunpack.c.l.b16 %v507
      %v531 = vpack.c.b16 %v524, %v523
      %v532 = vpack.c.b16 %v526, %v525
      %v533 = vpack.c.b16 %v528, %v527
      %v534 = vpack.c.b16 %v530, %v529
      %vm539 = vcmask 523264
      %v541 = vsel %vm539, %v499, 0
      %543 = vmatprep.subr.bf16.mxu0 0
      %544 = vmatpush1.bf16.msra.mxu0 %v531
      %545 = vmatprep.subr.bf16.mxu0 0
      %546 = vmatpush1.bf16.msra.mxu0 %v532
      %547 = vmatprep.subr.bf16.mxu0 0
      %548 = vmatpush1.bf16.msra.mxu0 %v533
      %549 = vmatprep.subr.bf16.mxu0 0
      %550 = vmatpush1.bf16.msra.mxu0 %v534
      %551 = vmatprep.subr.bf16.mxu0 0
      %552 = vmatpush1.bf16.msra.mxu0 0
      %553 = vmatprep.subr.bf16.mxu0 0
      %554 = vmatpush1.bf16.msra.mxu0 0
      %555 = vmatprep.subr.bf16.mxu0 0
      %556 = vmatpush1.bf16.msra.mxu0 0
      %557 = vmatprep.subr.bf16.mxu0 0
      %558 = vmatpush1.bf16.msra.mxu0 0
      %559 = vmatprep.subr.bf16.mxu0 0
      %560 = vmatpush1.bf16.msra.mxu0 0
      %561 = vmatprep.subr.bf16.mxu0 0
      %562 = vmatpush1.bf16.msra.mxu0 0
      %563 = vmatprep.subr.bf16.mxu0 0
      %564 = vmatpush1.bf16.msra.mxu0 0
      %565 = vmatprep.subr.bf16.mxu0 0
      %566 = vmatpush1.bf16.msra.mxu0 0
      %567 = vmatprep.subr.bf16.mxu0 0
      %568 = vmatpush1.bf16.msra.mxu0 0
      %569 = vmatprep.subr.bf16.mxu0 0
      %570 = vmatpush1.bf16.msra.mxu0 0
      %571 = vmatprep.subr.bf16.mxu0 0
      %572 = vmatpush1.bf16.msra.mxu0 0
      %573 = vmatprep.subr.bf16.mxu0 0
      %574 = vmatpush1.bf16.msra.mxu0 0
      %575 = vmatprep.mubr.bf16.mxu0 0
      %576 = vmatmul.mubr.bf16.gmra.mrb[0].mxu0 %v541
      %v577 = vpop.f32.mrb[0].mxu0
      %v578 = vadd.f32 %v513, %v577
      %v579 = vpop.f32.mrb[0].mxu0
      %v580 = vpop.f32.mrb[0].mxu0
      %v581 = vpop.f32.mrb[0].mxu0
      %582 = vdwg.mxu0
      %v583 = vld [vmem:[%s367] sm:$0xff]
      %v584 = vadd.f32 %v583, %v578
      %v585 = vld [vmem:[%s8] sm:$0x1]
      %v586 = vld [vmem:[%s9] sm:$0x1]
      %v587 = vsel %vm539, %v584, 0.0
      %588 = vadd.xlane.f32.xlu0 %v587
      %v589 = vpop.xlane.xlu0 %588
      %v590 = vrcp.pop 64.0
      %v591 = vmul.f32 %v589, %v590
      %v592 = vsub.f32 %v584, %v591
      %v593 = vmul.f32 %v592, %v592
      %v594 = vsel %vm539, %v593, 0.0
      %595 = vadd.xlane.f32.xlu0 %v594
      %v596 = vpop.xlane.xlu0 %595
      %v597 = vmul.f32 %v596, %v590
      %v598 = vadd.f32 %v597, 1e-05
      %v599 = vrsqrt.pop %v598
      %v600 = vmul.f32 %v592, %v599
      %v602 = vlaneseq
      %v603 = vshrl.u32 %v602, 7
      %v604 = vsub.s32 0, %v603
      %v605 = vrot.slane %v585, %v604
      %v607 = vmul.f32 %v600, %v605
      %v609 = vlaneseq
      %v610 = vshrl.u32 %v609, 7
      %v611 = vsub.s32 0, %v610
      %v612 = vrot.slane %v586, %v611
      %v614 = vadd.f32 %v607, %v612
      %615 = vst.msk [vmem:[%s371] sm:$0xff] %vm539, %v614
      %p616 = scmp.lt.s32.totalorder %s21, 1
      %s617 = scalar_select %p616, %s21, 1
      %s618 = smul.addr %s617, 8
      %s619 = scalar_lea.vmem %s10, %s618
      // Predicated region
      $region61: #{_lambda_.6} parent=59 // pred_check
        %p620 = pneg %p259
      $region62: #{_lambda_.6} parent=59 // pred_check_branch
        %622 = sbr.rel (%p620) target = $region64
      $region63: #{_lambda_.6} parent=59 // pred_region
        _
      $region64: #{_lambda_.6} parent=59 // pred_fallthru
        _
    $region60: #{_lambda_.6} parent=5 // pred_fallthru
      _
    %p623 = scmp.le.s32.totalorder 2, %s16
    // Predicated region
    $region65: #{_lambda_.6} parent=5 // pred_check
      %p624 = pneg %p623
    $region66: #{_lambda_.6} parent=5 // pred_check_branch
      %626 = sbr.rel (%p624) target = $region68
    $region67: #{_lambda_.6} parent=5 // pred_region
      %s627 = ssub.s32 %s16, 2
      // Predicated region
      $region69: #{_lambda_.6} parent=67 // pred_check
        %p628 = pneg %p265
      $region70: #{_lambda_.6} parent=67 // pred_check_branch
        %630 = sbr.rel (%p628) target = $region72
      $region71: #{_lambda_.6} parent=67 // pred_region
        %p631 = scmp.lt.s32.totalorder %s22, 1
        %s632 = scalar_select %p631, %s22, 1
        %s633 = smul.addr %s632, 8
        %s634 = scalar_lea.vmem %s10, %s633
      $region72: #{_lambda_.6} parent=67 // pred_fallthru
        _
    $region68: #{_lambda_.6} parent=5 // pred_fallthru
      _
  $region6: #{_lambda_.6} parent=0 // loop_footer
    %s20 = sadd.s32 1, %s16
  $region7: #{_lambda_.6} parent=0 // loop_footer_branch
    %15 = sbr.rel target = $region3
  $region8: #{_lambda_.6} parent=0 // loop_exit
    _

// kernel: _lambda_.4
$region0: #{_lambda_.4}
  #allocation0 [shape = 'u32[]', space=smem, size = 0x4, offset = 0x4, fixed_abs, tag = 'smem constant byte address 0x4 - core index']
  #allocation1 [shape = 'u32[144,128]{1,0:T(1,128)}', space=vmem, size = 0x12000, scoped, tag = 'internal scratch']
  %s0 = inlined_call_operand.vmem [shape: f32[16,64], index: 0, kind: input, shape index: {}]
  %s1 = inlined_call_operand.vmem [shape: bf16[64,32], index: 1, kind: input, shape index: {}]
  %s2 = inlined_call_operand.vmem [shape: bf16[32,96], index: 2, kind: input, shape index: {}]
  %s3 = inlined_call_operand.vmem [shape: bf16[16,32], index: 3, kind: output, shape index: {0}]
  %s4 = inlined_call_operand.vmem [shape: bf16[16,32], index: 4, kind: output, shape index: {1}]
  %s5 = inlined_call_operand.vmem [shape: bf16[16,32], index: 5, kind: output, shape index: {2}]
  %6 = xla_tuple %s3, %s4, %s5
  %s7 = sld [smem:[#allocation0]]
  $region61: #{_lambda_.4} parent=0
    _
  %s9 = ssub.s32 1, %s7
  %s10 = scalar_select 0, %s9, %s7
  loop: start=0, step=1, limit=4
  $region2: #{_lambda_.4} parent=0 // loop_pre_header
    _
  $region3: #{_lambda_.4} parent=0 // loop_header
    %s12 = sphi 0, %s16
    %p13 = scmp.ge.s32.totalorder %s12, 4
    %s22 = sphi 0, %s24
    %s25 = sphi 0, %s22
    %s26 = sphi 0, %s25
    %s42 = sphi 0, %s26
    %s46 = sphi 0, %s46
    %s48 = sphi 0, %s46
    %s49 = sphi 0, %s48
    %s63 = sphi 0, %s49
    %s67 = sphi 0, %s67
    %s69 = sphi 0, %s67
    %s70 = sphi 0, %s69
    %s84 = sphi 0, %s70
    %s90 = sphi 0, %s92
    %s93 = sphi 0, %s90
    %s94 = sphi 0, %s93
    %s110 = sphi 0, %s94
    %s116 = sphi 0, %s118
    %s119 = sphi 0, %s116
    %s120 = sphi 0, %s119
    %s136 = sphi 0, %s120
    %s142 = sphi 0, %s144
    %s145 = sphi 0, %s142
    %s146 = sphi 0, %s145
    %s162 = sphi 0, %s146
  $region4: #{_lambda_.4} parent=0 // loop_header_branch
    %15 = sbr.rel (%p13) target = $region8
  $region5: #{_lambda_.4} parent=0 // loop_body
    %s17 = ssub.s32 %s12, 1
    %s18 = ssub.s32 %s12, 2
    %s19 = sadd.s32 %s12, 1
    %s20 = ssub.s32 %s12, %s19
    %p21 = scmp.eq.s32.totalorder %s20, 0
    %s23 = sadd.s32 %s22, 1
    %s24 = scalar_select %p21, %s22, %s23
    %p27 = pneg %p21
    %p28 = scmp.eq.s32.totalorder %s12, 1
    %p29 = por %p27, %p28
    %p30 = scmp.ne.s32.totalorder %s22, %s25
    %p31 = scmp.eq.s32.totalorder %s12, 0
    %p32 = por %p30, %p31
    %p33 = scmp.ne.s32.totalorder %s22, %s25
    %p34 = scmp.eq.s32.totalorder %s17, 1
    %p35 = por %p33, %p34
    %p36 = scmp.ne.s32.totalorder %s25, %s26
    %p37 = scmp.eq.s32.totalorder %s17, 0
    %p38 = por %p36, %p37
    %p39 = scmp.ne.s32.totalorder %s25, %s26
    %p40 = scmp.eq.s32.totalorder %s18, 1
    %p41 = por %p39, %p40
    %p43 = scmp.ne.s32.totalorder %s26, %s42
    %p44 = scmp.eq.s32.totalorder %s18, 0
    %p45 = por %p43, %p44
    %s47 = sadd.s32 %s46, 1
    %p50 = scmp.eq.s32.totalorder %s12, 1
    %p51 = scmp.ne.s32.totalorder %s46, %s48
    %p52 = scmp.eq.s32.totalorder %s12, 0
    %p53 = por %p51, %p52
    %p54 = scmp.ne.s32.totalorder %s46, %s48
    %p55 = scmp.eq.s32.totalorder %s17, 1
    %p56 = por %p54, %p55
    %p57 = scmp.ne.s32.totalorder %s48, %s49
    %p58 = scmp.eq.s32.totalorder %s17, 0
    %p59 = por %p57, %p58
    %p60 = scmp.ne.s32.totalorder %s48, %s49
    %p61 = scmp.eq.s32.totalorder %s18, 1
    %p62 = por %p60, %p61
    %p64 = scmp.ne.s32.totalorder %s49, %s63
    %p65 = scmp.eq.s32.totalorder %s18, 0
    %p66 = por %p64, %p65
    %s68 = sadd.s32 %s67, 1
    %p71 = scmp.eq.s32.totalorder %s12, 1
    %p72 = scmp.ne.s32.totalorder %s67, %s69
    %p73 = scmp.eq.s32.totalorder %s12, 0
    %p74 = por %p72, %p73
    %p75 = scmp.ne.s32.totalorder %s67, %s69
    %p76 = scmp.eq.s32.totalorder %s17, 1
    %p77 = por %p75, %p76
    %p78 = scmp.ne.s32.totalorder %s69, %s70
    %p79 = scmp.eq.s32.totalorder %s17, 0
    %p80 = por %p78, %p79
    %p81 = scmp.ne.s32.totalorder %s69, %s70
    %p82 = scmp.eq.s32.totalorder %s18, 1
    %p83 = por %p81, %p82
    %p85 = scmp.ne.s32.totalorder %s70, %s84
    %p86 = scmp.eq.s32.totalorder %s18, 0
    %p87 = por %p85, %p86
    %s88 = ssub.s32 %s12, %s19
    %p89 = scmp.eq.s32.totalorder %s88, 0
    %s91 = sadd.s32 %s90, 1
    %s92 = scalar_select %p89, %s90, %s91
    %p95 = pneg %p89
    %p96 = scmp.eq.s32.totalorder %s12, 1
    %p97 = por %p95, %p96
    %p98 = scmp.ne.s32.totalorder %s90, %s93
    %p99 = scmp.eq.s32.totalorder %s12, 0
    %p100 = por %p98, %p99
    %p101 = scmp.ne.s32.totalorder %s90, %s93
    %p102 = scmp.eq.s32.totalorder %s17, 1
    %p103 = por %p101, %p102
    %p104 = scmp.ne.s32.totalorder %s93, %s94
    %p105 = scmp.eq.s32.totalorder %s17, 0
    %p106 = por %p104, %p105
    %p107 = scmp.ne.s32.totalorder %s93, %s94
    %p108 = scmp.eq.s32.totalorder %s18, 1
    %p109 = por %p107, %p108
    %p111 = scmp.ne.s32.totalorder %s94, %s110
    %p112 = scmp.eq.s32.totalorder %s18, 0
    %p113 = por %p111, %p112
    %s114 = ssub.s32 %s12, %s19
    %p115 = scmp.eq.s32.totalorder %s114, 0
    %s117 = sadd.s32 %s116, 1
    %s118 = scalar_select %p115, %s116, %s117
    %p121 = pneg %p115
    %p122 = scmp.eq.s32.totalorder %s12, 1
    %p123 = por %p121, %p122
    %p124 = scmp.ne.s32.totalorder %s116, %s119
    %p125 = scmp.eq.s32.totalorder %s12, 0
    %p126 = por %p124, %p125
    %p127 = scmp.ne.s32.totalorder %s116, %s119
    %p128 = scmp.eq.s32.totalorder %s17, 1
    %p129 = por %p127, %p128
    %p130 = scmp.ne.s32.totalorder %s119, %s120
    %p131 = scmp.eq.s32.totalorder %s17, 0
    %p132 = por %p130, %p131
    %p133 = scmp.ne.s32.totalorder %s119, %s120
    %p134 = scmp.eq.s32.totalorder %s18, 1
    %p135 = por %p133, %p134
    %p137 = scmp.ne.s32.totalorder %s120, %s136
    %p138 = scmp.eq.s32.totalorder %s18, 0
    %p139 = por %p137, %p138
    %s140 = ssub.s32 %s12, %s19
    %p141 = scmp.eq.s32.totalorder %s140, 0
    %s143 = sadd.s32 %s142, 1
    %s144 = scalar_select %p141, %s142, %s143
    %p147 = pneg %p141
    %p148 = scmp.eq.s32.totalorder %s12, 1
    %p149 = por %p147, %p148
    %p150 = scmp.ne.s32.totalorder %s142, %s145
    %p151 = scmp.eq.s32.totalorder %s12, 0
    %p152 = por %p150, %p151
    %p153 = scmp.ne.s32.totalorder %s142, %s145
    %p154 = scmp.eq.s32.totalorder %s17, 1
    %p155 = por %p153, %p154
    %p156 = scmp.ne.s32.totalorder %s145, %s146
    %p157 = scmp.eq.s32.totalorder %s17, 0
    %p158 = por %p156, %p157
    %p159 = scmp.ne.s32.totalorder %s145, %s146
    %p160 = scmp.eq.s32.totalorder %s18, 1
    %p161 = por %p159, %p160
    %p163 = scmp.ne.s32.totalorder %s146, %s162
    %p164 = scmp.eq.s32.totalorder %s18, 0
    %p165 = por %p163, %p164
    %p166 = scmp.le.s32.totalorder 1, %s12
    %p167 = scmp.lt.s32.totalorder %s12, 3
    %p168 = pnand %p166, %p167
    %p169 = pneg %p168
    // Predicated region
    $region9: #{_lambda_.4} parent=5 // pred_check
      _
    $region10: #{_lambda_.4} parent=5 // pred_check_branch
      %171 = sbr.rel (%p168) target = $region12
    $region11: #{_lambda_.4} parent=5 // pred_region
      %s172 = ssub.s32 %s12, 1
      // Predicated region
      $region13: #{_lambda_.4} parent=11 // pred_check
        %p173 = pneg %p59
      $region14: #{_lambda_.4} parent=11 // pred_check_branch
        %175 = sbr.rel (%p173) target = $region16
      $region15: #{_lambda_.4} parent=11 // pred_region
        _
      $region16: #{_lambda_.4} parent=11 // pred_fallthru
        _
      // Predicated region
      $region17: #{_lambda_.4} parent=11 // pred_check
        %p176 = pneg %p80
      $region18: #{_lambda_.4} parent=11 // pred_check_branch
        %178 = sbr.rel (%p176) target = $region20
      $region19: #{_lambda_.4} parent=11 // pred_region
        _
      $region20: #{_lambda_.4} parent=11 // pred_fallthru
        _
    $region12: #{_lambda_.4} parent=5 // pred_fallthru
      _
    %p179 = scmp.lt.s32.totalorder %s12, 2
    // Predicated region
    $region21: #{_lambda_.4} parent=5 // pred_check
      %p180 = pneg %p179
    $region22: #{_lambda_.4} parent=5 // pred_check_branch
      %182 = sbr.rel (%p180) target = $region24
    $region23: #{_lambda_.4} parent=5 // pred_region
      // Predicated region
      $region25: #{_lambda_.4} parent=23 // pred_check
        %p183 = pneg %p32
      $region26: #{_lambda_.4} parent=23 // pred_check_branch
        %185 = sbr.rel (%p183) target = $region28
      $region27: #{_lambda_.4} parent=23 // pred_region
        %p186 = scmp.lt.s32.totalorder %s12, 1
        %s187 = scalar_select %p186, %s12, 1
        %s188 = smul.addr %s187, 8
        %s189 = scalar_lea.vmem %s0, %s188
      $region28: #{_lambda_.4} parent=23 // pred_fallthru
        _
    $region24: #{_lambda_.4} parent=5 // pred_fallthru
      _
    %p190 = scmp.le.s32.totalorder 1, %s12
    %p191 = scmp.lt.s32.totalorder %s12, 3
    %p192 = pnand %p190, %p191
    %p193 = pneg %p192
    // Predicated region
    $region29: #{_lambda_.4} parent=5 // pred_check
      _
    $region30: #{_lambda_.4} parent=5 // pred_check_branch
      %195 = sbr.rel (%p192) target = $region32
    $region31: #{_lambda_.4} parent=5 // pred_region
      %s196 = ssub.s32 %s12, 1
      %p197 = scmp.lt.s32.totalorder %s17, 1
      %s198 = scalar_select %p197, %s17, 1
      %s199 = smul.addr %s198, 8
      %s200 = scalar_lea.vmem %s0, %s199
      %p201 = pneg %p38
      %p202 = pneg %p35
      %p203 = pneg %p59
      %p204 = pneg %p56
      %p205 = pneg %p80
      %p206 = pneg %p77
      %p207 = pneg %p106
      %p208 = pneg %p103
      %p209 = scmp.lt.s32.totalorder %s17, 1
      %s210 = scalar_select %p209, %s17, 1
      %s211 = smul.addr %s210, 4
      %s212 = scalar_lea.vmem %s3, %s211
      %p213 = pneg %p132
      %p214 = pneg %p129
      %p215 = scmp.lt.s32.totalorder %s17, 1
      %s216 = scalar_select %p215, %s17, 1
      %s217 = smul.addr %s216, 4
      %s218 = scalar_lea.vmem %s4, %s217
      %p219 = pneg %p158
      %p220 = pneg %p155
      %p221 = scmp.lt.s32.totalorder %s17, 1
      %s222 = scalar_select %p221, %s17, 1
      %s223 = smul.addr %s222, 4
      %s224 = scalar_lea.vmem %s5, %s223
      %p225 = scmp.lt.s32.totalorder %s17, 1
      %s226 = scalar_select %p225, %s17, 1
      %s227 = smul.addr %s226, 8
      %s228 = scalar_lea.vmem %s0, %s227
      %p229 = scmp.lt.s32.totalorder %s17, 1
      %s230 = scalar_select %p229, %s17, 1
      %s231 = smul.addr %s230, 4
      %s232 = scalar_lea.vmem %s3, %s231
      %p233 = scmp.lt.s32.totalorder %s17, 1
      %s234 = scalar_select %p233, %s17, 1
      %s235 = smul.addr %s234, 4
      %s236 = scalar_lea.vmem %s4, %s235
      %p237 = scmp.lt.s32.totalorder %s17, 1
      %s238 = scalar_select %p237, %s17, 1
      %s239 = smul.addr %s238, 4
      %s240 = scalar_lea.vmem %s5, %s239
      %v242 = vld [vmem:[%s228] sm:$0xff]
      %v243 = vpack.c.bf16 %v242, %v242
      %v244 = vld [vmem:[%s1] sm:$0xf]
      %v245 = vld [vmem:[%s1 + $0x4] sm:$0xf]
      %v246 = vld [vmem:[%s1 + $0x8] sm:$0xf]
      %v247 = vld [vmem:[%s1 + $0xc] sm:$0xf]
      %v248 = vld [vmem:[%s1 + $0x10] sm:$0xf]
      %v249 = vld [vmem:[%s1 + $0x14] sm:$0xf]
      %v250 = vld [vmem:[%s1 + $0x18] sm:$0xf]
      %v251 = vld [vmem:[%s1 + $0x1c] sm:$0xf]
      %v260 = vunpack.c.l.b16 %v244
      %v261 = vunpack.c.l.b16 %v245
      %v262 = vunpack.c.l.b16 %v246
      %v263 = vunpack.c.l.b16 %v247
      %v264 = vunpack.c.l.b16 %v248
      %v265 = vunpack.c.l.b16 %v249
      %v266 = vunpack.c.l.b16 %v250
      %v267 = vunpack.c.l.b16 %v251
      %v268 = vpack.c.b16 %v261, %v260
      %v269 = vpack.c.b16 %v263, %v262
      %v270 = vpack.c.b16 %v265, %v264
      %v271 = vpack.c.b16 %v267, %v266
      %vm276 = vcmask 523264
      %v278 = vsel %vm276, %v243, 0
      %280 = vmatprep.subr.bf16.mxu0 0
      %281 = vmatpush1.bf16.msra.mxu0 %v268
      %282 = vmatprep.subr.bf16.mxu0 0
      %283 = vmatpush1.bf16.msra.mxu0 %v269
      %284 = vmatprep.subr.bf16.mxu0 0
      %285 = vmatpush1.bf16.msra.mxu0 %v270
      %286 = vmatprep.subr.bf16.mxu0 0
      %287 = vmatpush1.bf16.msra.mxu0 %v271
      %288 = vmatprep.subr.bf16.mxu0 0
      %289 = vmatpush1.bf16.msra.mxu0 0
      %290 = vmatprep.subr.bf16.mxu0 0
      %291 = vmatpush1.bf16.msra.mxu0 0
      %292 = vmatprep.subr.bf16.mxu0 0
      %293 = vmatpush1.bf16.msra.mxu0 0
      %294 = vmatprep.subr.bf16.mxu0 0
      %295 = vmatpush1.bf16.msra.mxu0 0
      %296 = vmatprep.subr.bf16.mxu0 0
      %297 = vmatpush1.bf16.msra.mxu0 0
      %298 = vmatprep.subr.bf16.mxu0 0
      %299 = vmatpush1.bf16.msra.mxu0 0
      %300 = vmatprep.subr.bf16.mxu0 0
      %301 = vmatpush1.bf16.msra.mxu0 0
      %302 = vmatprep.subr.bf16.mxu0 0
      %303 = vmatpush1.bf16.msra.mxu0 0
      %304 = vmatprep.subr.bf16.mxu0 0
      %305 = vmatpush1.bf16.msra.mxu0 0
      %306 = vmatprep.subr.bf16.mxu0 0
      %307 = vmatpush1.bf16.msra.mxu0 0
      %308 = vmatprep.subr.bf16.mxu0 0
      %309 = vmatpush1.bf16.msra.mxu0 0
      %310 = vmatprep.subr.bf16.mxu0 0
      %311 = vmatpush1.bf16.msra.mxu0 0
      %312 = vmatprep.mubr.bf16.mxu0 0
      %313 = vmatmul.mubr.bf16.gmra.mrb[0].mxu0 %v278
      %v314 = vpop.f32.mrb[0].mxu0
      %v315 = vadd.f32 0.0, %v314
      %v316 = vpop.f32.mrb[0].mxu0
      %v317 = vpop.f32.mrb[0].mxu0
      %v318 = vpop.f32.mrb[0].mxu0
      %319 = vdwg.mxu0
      %v320 = vpack.c.bf16 %v315, %v315
      %v321 = vld [vmem:[%s2] sm:$0xf]
      %v322 = vld [vmem:[%s2 + $0x4] sm:$0xf]
      %v323 = vld [vmem:[%s2 + $0x8] sm:$0xf]
      %v324 = vld [vmem:[%s2 + $0xc] sm:$0xf]
      %v329 = vunpack.c.l.b16 %v321
      %v330 = vunpack.c.l.b16 %v322
      %v331 = vunpack.c.l.b16 %v323
      %v332 = vunpack.c.l.b16 %v324
      %v333 = vpack.c.b16 %v330, %v329
      %v334 = vpack.c.b16 %v332, %v331
      %vm337 = vcmask 261120
      %v339 = vsel %vm337, %v320, 0
      %341 = vmatprep.subr.bf16.mxu0 0
      %342 = vmatpush1.bf16.msra.mxu0 %v333
      %343 = vmatprep.subr.bf16.mxu0 0
      %344 = vmatpush1.bf16.msra.mxu0 %v334
      %345 = vmatprep.subr.bf16.mxu0 0
      %346 = vmatpush1.bf16.msra.mxu0 0
      %347 = vmatprep.subr.bf16.mxu0 0
      %348 = vmatpush1.bf16.msra.mxu0 0
      %349 = vmatprep.subr.bf16.mxu0 0
      %350 = vmatpush1.bf16.msra.mxu0 0
      %351 = vmatprep.subr.bf16.mxu0 0
      %352 = vmatpush1.bf16.msra.mxu0 0
      %353 = vmatprep.subr.bf16.mxu0 0
      %354 = vmatpush1.bf16.msra.mxu0 0
      %355 = vmatprep.subr.bf16.mxu0 0
      %356 = vmatpush1.bf16.msra.mxu0 0
      %357 = vmatprep.subr.bf16.mxu0 0
      %358 = vmatpush1.bf16.msra.mxu0 0
      %359 = vmatprep.subr.bf16.mxu0 0
      %360 = vmatpush1.bf16.msra.mxu0 0
      %361 = vmatprep.subr.bf16.mxu0 0
      %362 = vmatpush1.bf16.msra.mxu0 0
      %363 = vmatprep.subr.bf16.mxu0 0
      %364 = vmatpush1.bf16.msra.mxu0 0
      %365 = vmatprep.subr.bf16.mxu0 0
      %366 = vmatpush1.bf16.msra.mxu0 0
      %367 = vmatprep.subr.bf16.mxu0 0
      %368 = vmatpush1.bf16.msra.mxu0 0
      %369 = vmatprep.subr.bf16.mxu0 0
      %370 = vmatpush1.bf16.msra.mxu0 0
      %371 = vmatprep.subr.bf16.mxu0 0
      %372 = vmatpush1.bf16.msra.mxu0 0
      %373 = vmatprep.mubr.bf16.mxu0 0
      %374 = vmatmul.mubr.bf16.gmra.mrb[0].mxu0 %v339
      %v375 = vpop.f32.mrb[0].mxu0
      %v376 = vadd.f32 0.0, %v375
      %v377 = vpop.f32.mrb[0].mxu0
      %v378 = vpop.f32.mrb[0].mxu0
      %v379 = vpop.f32.mrb[0].mxu0
      %380 = vdwg.mxu0
      %v381 = vpack.c.bf16 %v376, %v376
      %vm382 = vcmask 257024
      %383 = vst.msk [vmem:[%s232] sm:$0xf] %vm382, %v381
      %v385 = vunpack.c.l.b16 %v381
      %v386 = vpack.c.b16 %v385, %v385
      %387 = vrot.lane.b32.xlu0 %v386, 96
      %v388 = vpop.permute.xlu0 %387
      %390 = vst.msk [vmem:[%s236] sm:$0xf] %vm382, %v388
      %391 = vrot.lane.b32.xlu0 %v386, 64
      %v392 = vpop.permute.xlu0 %391
      %394 = vst.msk [vmem:[%s240] sm:$0xf] %vm382, %v392
      %p395 = scmp.lt.s32.totalorder %s17, 1
      %s396 = scalar_select %p395, %s17, 1
      %s397 = smul.addr %s396, 4
      %s398 = scalar_lea.vmem %s3, %s397
      %p399 = scmp.lt.s32.totalorder %s17, 1
      %s400 = scalar_select %p399, %s17, 1
      %s401 = smul.addr %s400, 4
      %s402 = scalar_lea.vmem %s4, %s401
      %p403 = scmp.lt.s32.totalorder %s17, 1
      %s404 = scalar_select %p403, %s17, 1
      %s405 = smul.addr %s404, 4
      %s406 = scalar_lea.vmem %s5, %s405
      // Predicated region
      $region33: #{_lambda_.4} parent=31 // pred_check
        %p407 = pneg %p103
      $region34: #{_lambda_.4} parent=31 // pred_check_branch
        %409 = sbr.rel (%p407) target = $region36
      $region35: #{_lambda_.4} parent=31 // pred_region
        _
      $region36: #{_lambda_.4} parent=31 // pred_fallthru
        _
      // Predicated region
      $region37: #{_lambda_.4} parent=31 // pred_check
        %p410 = pneg %p129
      $region38: #{_lambda_.4} parent=31 // pred_check_branch
        %412 = sbr.rel (%p410) target = $region40
      $region39: #{_lambda_.4} parent=31 // pred_region
        _
      $region40: #{_lambda_.4} parent=31 // pred_fallthru
        _
      // Predicated region
      $region41: #{_lambda_.4} parent=31 // pred_check
        %p413 = pneg %p155
      $region42: #{_lambda_.4} parent=31 // pred_check_branch
        %415 = sbr.rel (%p413) target = $region44
      $region43: #{_lambda_.4} parent=31 // pred_region
        _
      $region44: #{_lambda_.4} parent=31 // pred_fallthru
        _
    $region32: #{_lambda_.4} parent=5 // pred_fallthru
      _
    %p416 = scmp.le.s32.totalorder 2, %s12
    // Predicated region
    $region45: #{_lambda_.4} parent=5 // pred_check
      %p417 = pneg %p416
    $region46: #{_lambda_.4} parent=5 // pred_check_branch
      %419 = sbr.rel (%p417) target = $region48
    $region47: #{_lambda_.4} parent=5 // pred_region
      %s420 = ssub.s32 %s12, 2
      // Predicated region
      $region49: #{_lambda_.4} parent=47 // pred_check
        %p421 = pneg %p109
      $region50: #{_lambda_.4} parent=47 // pred_check_branch
        %423 = sbr.rel (%p421) target = $region52
      $region51: #{_lambda_.4} parent=47 // pred_region
        %p424 = scmp.lt.s32.totalorder %s18, 1
        %s425 = scalar_select %p424, %s18, 1
        %s426 = smul.addr %s425, 4
        %s427 = scalar_lea.vmem %s3, %s426
      $region52: #{_lambda_.4} parent=47 // pred_fallthru
        _
      // Predicated region
      $region53: #{_lambda_.4} parent=47 // pred_check
        %p428 = pneg %p135
      $region54: #{_lambda_.4} parent=47 // pred_check_branch
        %430 = sbr.rel (%p428) target = $region56
      $region55: #{_lambda_.4} parent=47 // pred_region
        %p431 = scmp.lt.s32.totalorder %s18, 1
        %s432 = scalar_select %p431, %s18, 1
        %s433 = smul.addr %s432, 4
        %s434 = scalar_lea.vmem %s4, %s433
      $region56: #{_lambda_.4} parent=47 // pred_fallthru
        _
      // Predicated region
      $region57: #{_lambda_.4} parent=47 // pred_check
        %p435 = pneg %p161
      $region58: #{_lambda_.4} parent=47 // pred_check_branch
        %437 = sbr.rel (%p435) target = $region60
      $region59: #{_lambda_.4} parent=47 // pred_region
        %p438 = scmp.lt.s32.totalorder %s18, 1
        %s439 = scalar_select %p438, %s18, 1
        %s440 = smul.addr %s439, 4
        %s441 = scalar_lea.vmem %s5, %s440
      $region60: #{_lambda_.4} parent=47 // pred_fallthru
        _
    $region48: #{_lambda_.4} parent=5 // pred_fallthru
      _
  $region6: #{_lambda_.4} parent=0 // loop_footer
    %s16 = sadd.s32 1, %s12
  $region7: #{_lambda_.4} parent=0 // loop_footer_branch
    %11 = sbr.rel target = $region3
  $region8: #{_lambda_.4} parent=0 // loop_exit
    _

// kernel: _lambda_.5
$region0: #{_lambda_.5}
  #allocation0 [shape = 'u32[]', space=smem, size = 0x4, offset = 0x4, fixed_abs, tag = 'smem constant byte address 0x4 - core index']
  #allocation1 [shape = 'u32[144,128]{1,0:T(1,128)}', space=vmem, size = 0x12000, scoped, tag = 'internal scratch']
  #allocation2 [shape = 'f32[2,8,1]{2,1,0:T(8,128)}', space=vmem, size = 0x2000, scoped, tag = 'scratch operand']
  #allocation3 [shape = 'f32[2,8,1]{2,1,0:T(8,128)}', space=vmem, size = 0x2000, scoped, tag = 'scratch operand']
  #allocation4 [shape = 'f32[2,8,16]{2,1,0:T(8,128)}', space=vmem, size = 0x2000, scoped, tag = 'scratch operand']
  %s0 = inlined_call_operand.vmem [shape: bf16[2,8,32], index: 0, kind: input, shape index: {}]
  %s1 = inlined_call_operand.vmem [shape: bf16[2,8,32], index: 1, kind: input, shape index: {}]
  %s2 = inlined_call_operand.vmem [shape: bf16[2,8,32], index: 2, kind: input, shape index: {}]
  %s3 = inlined_call_operand.vmem [shape: f32[8,16], index: 3, kind: input, shape index: {}]
  %s4 = inlined_call_operand.vmem [shape: f32[8,16], index: 4, kind: input, shape index: {}]
  %s5 = inlined_call_operand.vmem [shape: f32[8,16], index: 5, kind: input, shape index: {}]
  %s6 = inlined_call_operand.vmem [shape: f32[8,16], index: 6, kind: input, shape index: {}]
  %s7 = inlined_call_operand.vmem [shape: f32[2,8,32], index: 7, kind: output, shape index: {}]
  %s8 = sld [smem:[#allocation0]]
  $region73: #{_lambda_.5} parent=0
    _
  %s10 = ssub.s32 1, %s8
  %s11 = scalar_select 0, %s10, %s8
  loop: start=0, step=1, limit=4
  $region2: #{_lambda_.5} parent=0 // loop_pre_header
    _
  $region3: #{_lambda_.5} parent=0 // loop_header
    %s13 = sphi 0, %s17
    %p14 = scmp.ge.s32.totalorder %s13, 4
    %s20 = sphi 0, %s39
    %s21 = sphi 0, %s35
    %s22 = sphi 0, %s31
    %s23 = sphi 0, %s20
    %s24 = sphi 0, %s21
    %s25 = sphi 0, %s22
    %s26 = sphi 0, %s23
    %s27 = sphi 0, %s24
    %s28 = sphi 0, %s25
    %s44 = sphi 0, %s46
    %s47 = sphi 0, %s44
    %s48 = sphi 0, %s47
    %s64 = sphi 0, %s48
    %s72 = sphi 0, %s74
    %s75 = sphi 0, %s72
    %s76 = sphi 0, %s75
    %s92 = sphi 0, %s76
    %s100 = sphi 0, %s102
    %s103 = sphi 0, %s100
    %s104 = sphi 0, %s103
    %s120 = sphi 0, %s104
    %s126 = sphi 0, %s128
    %s129 = sphi 0, %s126
    %s130 = sphi 0, %s129
    %s146 = sphi 0, %s130
    %s152 = sphi 0, %s154
    %s155 = sphi 0, %s152
    %s156 = sphi 0, %s155
    %s172 = sphi 0, %s156
    %s178 = sphi 0, %s180
    %s181 = sphi 0, %s178
    %s182 = sphi 0, %s181
    %s198 = sphi 0, %s182
    %s204 = sphi 0, %s206
    %s207 = sphi 0, %s204
    %s208 = sphi 0, %s207
    %s224 = sphi 0, %s208
    %s232 = sphi 0, %s234
    %s235 = sphi 0, %s232
    %s236 = sphi 0, %s235
    %s252 = sphi 0, %s236
  $region4: #{_lambda_.5} parent=0 // loop_header_branch
    %16 = sbr.rel (%p14) target = $region8
  $region5: #{_lambda_.5} parent=0 // loop_body
    %s18 = ssub.s32 %s13, 1
    %s19 = ssub.s32 %s13, 2
    %s29 = sadd.s32 1, %s22
    %p30 = scmp.ge.s32.totalorder %s29, 1
    %s31 = scalar_select %p30, 0, %s29
    %s32 = sadd.s32 1, %s21
    %s33 = scalar_select %p30, %s32, %s21
    %p34 = scmp.ge.s32.totalorder %s33, 1
    %s35 = scalar_select %p34, 0, %s33
    %s36 = sadd.s32 1, %s20
    %s37 = scalar_select %p34, %s36, %s20
    %p38 = scmp.ge.s32.totalorder %s37, 2
    %s39 = scalar_select %p38, 0, %s37
    %s40 = ssub.s32 %s20, %s39
    %s41 = ssub.s32 %s21, %s35
    %s42 = sor.u32 %s40, %s41
    %p43 = scmp.eq.s32.totalorder %s42, 0
    %s45 = sadd.s32 %s44, 1
    %s46 = scalar_select %p43, %s44, %s45
    %p49 = pneg %p43
    %p50 = scmp.eq.s32.totalorder %s13, 1
    %p51 = por %p49, %p50
    %p52 = scmp.ne.s32.totalorder %s44, %s47
    %p53 = scmp.eq.s32.totalorder %s13, 0
    %p54 = por %p52, %p53
    %p55 = scmp.ne.s32.totalorder %s44, %s47
    %p56 = scmp.eq.s32.totalorder %s18, 1
    %p57 = por %p55, %p56
    %p58 = scmp.ne.s32.totalorder %s47, %s48
    %p59 = scmp.eq.s32.totalorder %s18, 0
    %p60 = por %p58, %p59
    %p61 = scmp.ne.s32.totalorder %s47, %s48
    %p62 = scmp.eq.s32.totalorder %s19, 1
    %p63 = por %p61, %p62
    %p65 = scmp.ne.s32.totalorder %s48, %s64
    %p66 = scmp.eq.s32.totalorder %s19, 0
    %p67 = por %p65, %p66
    %s68 = ssub.s32 %s20, %s39
    %s69 = ssub.s32 %s22, %s31
    %s70 = sor.u32 %s68, %s69
    %p71 = scmp.eq.s32.totalorder %s70, 0
    %s73 = sadd.s32 %s72, 1
    %s74 = scalar_select %p71, %s72, %s73
    %p77 = pneg %p71
    %p78 = scmp.eq.s32.totalorder %s13, 1
    %p79 = por %p77, %p78
    %p80 = scmp.ne.s32.totalorder %s72, %s75
    %p81 = scmp.eq.s32.totalorder %s13, 0
    %p82 = por %p80, %p81
    %p83 = scmp.ne.s32.totalorder %s72, %s75
    %p84 = scmp.eq.s32.totalorder %s18, 1
    %p85 = por %p83, %p84
    %p86 = scmp.ne.s32.totalorder %s75, %s76
    %p87 = scmp.eq.s32.totalorder %s18, 0
    %p88 = por %p86, %p87
    %p89 = scmp.ne.s32.totalorder %s75, %s76
    %p90 = scmp.eq.s32.totalorder %s19, 1
    %p91 = por %p89, %p90
    %p93 = scmp.ne.s32.totalorder %s76, %s92
    %p94 = scmp.eq.s32.totalorder %s19, 0
    %p95 = por %p93, %p94
    %s96 = ssub.s32 %s20, %s39
    %s97 = ssub.s32 %s22, %s31
    %s98 = sor.u32 %s96, %s97
    %p99 = scmp.eq.s32.totalorder %s98, 0
    %s101 = sadd.s32 %s100, 1
    %s102 = scalar_select %p99, %s100, %s101
    %p105 = pneg %p99
    %p106 = scmp.eq.s32.totalorder %s13, 1
    %p107 = por %p105, %p106
    %p108 = scmp.ne.s32.totalorder %s100, %s103
    %p109 = scmp.eq.s32.totalorder %s13, 0
    %p110 = por %p108, %p109
    %p111 = scmp.ne.s32.totalorder %s100, %s103
    %p112 = scmp.eq.s32.totalorder %s18, 1
    %p113 = por %p111, %p112
    %p114 = scmp.ne.s32.totalorder %s103, %s104
    %p115 = scmp.eq.s32.totalorder %s18, 0
    %p116 = por %p114, %p115
    %p117 = scmp.ne.s32.totalorder %s103, %s104
    %p118 = scmp.eq.s32.totalorder %s19, 1
    %p119 = por %p117, %p118
    %p121 = scmp.ne.s32.totalorder %s104, %s120
    %p122 = scmp.eq.s32.totalorder %s19, 0
    %p123 = por %p121, %p122
    %s124 = ssub.s32 %s21, %s35
    %p125 = scmp.eq.s32.totalorder %s124, 0
    %s127 = sadd.s32 %s126, 1
    %s128 = scalar_select %p125, %s126, %s127
    %p131 = pneg %p125
    %p132 = scmp.eq.s32.totalorder %s13, 1
    %p133 = por %p131, %p132
    %p134 = scmp.ne.s32.totalorder %s126, %s129
    %p135 = scmp.eq.s32.totalorder %s13, 0
    %p136 = por %p134, %p135
    %p137 = scmp.ne.s32.totalorder %s126, %s129
    %p138 = scmp.eq.s32.totalorder %s18, 1
    %p139 = por %p137, %p138
    %p140 = scmp.ne.s32.totalorder %s129, %s130
    %p141 = scmp.eq.s32.totalorder %s18, 0
    %p142 = por %p140, %p141
    %p143 = scmp.ne.s32.totalorder %s129, %s130
    %p144 = scmp.eq.s32.totalorder %s19, 1
    %p145 = por %p143, %p144
    %p147 = scmp.ne.s32.totalorder %s130, %s146
    %p148 = scmp.eq.s32.totalorder %s19, 0
    %p149 = por %p147, %p148
    %s150 = ssub.s32 %s21, %s35
    %p151 = scmp.eq.s32.totalorder %s150, 0
    %s153 = sadd.s32 %s152, 1
    %s154 = scalar_select %p151, %s152, %s153
    %p157 = pneg %p151
    %p158 = scmp.eq.s32.totalorder %s13, 1
    %p159 = por %p157, %p158
    %p160 = scmp.ne.s32.totalorder %s152, %s155
    %p161 = scmp.eq.s32.totalorder %s13, 0
    %p162 = por %p160, %p161
    %p163 = scmp.ne.s32.totalorder %s152, %s155
    %p164 = scmp.eq.s32.totalorder %s18, 1
    %p165 = por %p163, %p164
    %p166 = scmp.ne.s32.totalorder %s155, %s156
    %p167 = scmp.eq.s32.totalorder %s18, 0
    %p168 = por %p166, %p167
    %p169 = scmp.ne.s32.totalorder %s155, %s156
    %p170 = scmp.eq.s32.totalorder %s19, 1
    %p171 = por %p169, %p170
    %p173 = scmp.ne.s32.totalorder %s156, %s172
    %p174 = scmp.eq.s32.totalorder %s19, 0
    %p175 = por %p173, %p174
    %s176 = ssub.s32 %s22, %s31
    %p177 = scmp.eq.s32.totalorder %s176, 0
    %s179 = sadd.s32 %s178, 1
    %s180 = scalar_select %p177, %s178, %s179
    %p183 = pneg %p177
    %p184 = scmp.eq.s32.totalorder %s13, 1
    %p185 = por %p183, %p184
    %p186 = scmp.ne.s32.totalorder %s178, %s181
    %p187 = scmp.eq.s32.totalorder %s13, 0
    %p188 = por %p186, %p187
    %p189 = scmp.ne.s32.totalorder %s178, %s181
    %p190 = scmp.eq.s32.totalorder %s18, 1
    %p191 = por %p189, %p190
    %p192 = scmp.ne.s32.totalorder %s181, %s182
    %p193 = scmp.eq.s32.totalorder %s18, 0
    %p194 = por %p192, %p193
    %p195 = scmp.ne.s32.totalorder %s181, %s182
    %p196 = scmp.eq.s32.totalorder %s19, 1
    %p197 = por %p195, %p196
    %p199 = scmp.ne.s32.totalorder %s182, %s198
    %p200 = scmp.eq.s32.totalorder %s19, 0
    %p201 = por %p199, %p200
    %s202 = ssub.s32 %s22, %s31
    %p203 = scmp.eq.s32.totalorder %s202, 0
    %s205 = sadd.s32 %s204, 1
    %s206 = scalar_select %p203, %s204, %s205
    %p209 = pneg %p203
    %p210 = scmp.eq.s32.totalorder %s13, 1
    %p211 = por %p209, %p210
    %p212 = scmp.ne.s32.totalorder %s204, %s207
    %p213 = scmp.eq.s32.totalorder %s13, 0
    %p214 = por %p212, %p213
    %p215 = scmp.ne.s32.totalorder %s204, %s207
    %p216 = scmp.eq.s32.totalorder %s18, 1
    %p217 = por %p215, %p216
    %p218 = scmp.ne.s32.totalorder %s207, %s208
    %p219 = scmp.eq.s32.totalorder %s18, 0
    %p220 = por %p218, %p219
    %p221 = scmp.ne.s32.totalorder %s207, %s208
    %p222 = scmp.eq.s32.totalorder %s19, 1
    %p223 = por %p221, %p222
    %p225 = scmp.ne.s32.totalorder %s208, %s224
    %p226 = scmp.eq.s32.totalorder %s19, 0
    %p227 = por %p225, %p226
    %s228 = ssub.s32 %s20, %s39
    %s229 = ssub.s32 %s21, %s35
    %s230 = sor.u32 %s228, %s229
    %p231 = scmp.eq.s32.totalorder %s230, 0
    %s233 = sadd.s32 %s232, 1
    %s234 = scalar_select %p231, %s232, %s233
    %p237 = pneg %p231
    %p238 = scmp.eq.s32.totalorder %s13, 1
    %p239 = por %p237, %p238
    %p240 = scmp.ne.s32.totalorder %s232, %s235
    %p241 = scmp.eq.s32.totalorder %s13, 0
    %p242 = por %p240, %p241
    %p243 = scmp.ne.s32.totalorder %s232, %s235
    %p244 = scmp.eq.s32.totalorder %s18, 1
    %p245 = por %p243, %p244
    %p246 = scmp.ne.s32.totalorder %s235, %s236
    %p247 = scmp.eq.s32.totalorder %s18, 0
    %p248 = por %p246, %p247
    %p249 = scmp.ne.s32.totalorder %s235, %s236
    %p250 = scmp.eq.s32.totalorder %s19, 1
    %p251 = por %p249, %p250
    %p253 = scmp.ne.s32.totalorder %s236, %s252
    %p254 = scmp.eq.s32.totalorder %s19, 0
    %p255 = por %p253, %p254
    %p256 = scmp.le.s32.totalorder 1, %s13
    %p257 = scmp.lt.s32.totalorder %s13, 3
    %p258 = pnand %p256, %p257
    %p259 = pneg %p258
    // Predicated region
    $region9: #{_lambda_.5} parent=5 // pred_check
      _
    $region10: #{_lambda_.5} parent=5 // pred_check_branch
      %261 = sbr.rel (%p258) target = $region12
    $region11: #{_lambda_.5} parent=5 // pred_region
      %s262 = ssub.s32 %s13, 1
      // Predicated region
      $region13: #{_lambda_.5} parent=11 // pred_check
        %p263 = pneg %p142
      $region14: #{_lambda_.5} parent=11 // pred_check_branch
        %265 = sbr.rel (%p263) target = $region16
      $region15: #{_lambda_.5} parent=11 // pred_region
        %p266 = scmp.lt.s32.totalorder %s24, 0
        %s267 = scalar_select %p266, %s24, 0
        %s268 = smul.addr %s267, 8
        %s269 = scalar_lea.vmem %s3, %s268
      $region16: #{_lambda_.5} parent=11 // pred_fallthru
        _
      // Predicated region
      $region17: #{_lambda_.5} parent=11 // pred_check
        %p270 = pneg %p168
      $region18: #{_lambda_.5} parent=11 // pred_check_branch
        %272 = sbr.rel (%p270) target = $region20
      $region19: #{_lambda_.5} parent=11 // pred_region
        %p273 = scmp.lt.s32.totalorder %s24, 0
        %s274 = scalar_select %p273, %s24, 0
        %s275 = smul.addr %s274, 8
        %s276 = scalar_lea.vmem %s4, %s275
      $region20: #{_lambda_.5} parent=11 // pred_fallthru
        _
      // Predicated region
      $region21: #{_lambda_.5} parent=11 // pred_check
        %p277 = pneg %p194
      $region22: #{_lambda_.5} parent=11 // pred_check_branch
        %279 = sbr.rel (%p277) target = $region24
      $region23: #{_lambda_.5} parent=11 // pred_region
        %p280 = scmp.lt.s32.totalorder %s25, 0
        %s281 = scalar_select %p280, %s25, 0
        %s282 = smul.addr %s281, 8
        %s283 = scalar_lea.vmem %s5, %s282
      $region24: #{_lambda_.5} parent=11 // pred_fallthru
        _
      // Predicated region
      $region25: #{_lambda_.5} parent=11 // pred_check
        %p284 = pneg %p220
      $region26: #{_lambda_.5} parent=11 // pred_check_branch
        %286 = sbr.rel (%p284) target = $region28
      $region27: #{_lambda_.5} parent=11 // pred_region
        %p287 = scmp.lt.s32.totalorder %s25, 0
        %s288 = scalar_select %p287, %s25, 0
        %s289 = smul.addr %s288, 8
        %s290 = scalar_lea.vmem %s6, %s289
      $region28: #{_lambda_.5} parent=11 // pred_fallthru
        _
    $region12: #{_lambda_.5} parent=5 // pred_fallthru
      _
    %p291 = scmp.lt.s32.totalorder %s13, 2
    // Predicated region
    $region29: #{_lambda_.5} parent=5 // pred_check
      %p292 = pneg %p291
    $region30: #{_lambda_.5} parent=5 // pred_check_branch
      %294 = sbr.rel (%p292) target = $region32
    $region31: #{_lambda_.5} parent=5 // pred_region
      // Predicated region
      $region33: #{_lambda_.5} parent=31 // pred_check
        %p295 = pneg %p54
      $region34: #{_lambda_.5} parent=31 // pred_check_branch
        %297 = sbr.rel (%p295) target = $region36
      $region35: #{_lambda_.5} parent=31 // pred_region
        %p298 = scmp.lt.s32.totalorder %s20, 1
        %s299 = scalar_select %p298, %s20, 1
        %p300 = scmp.lt.s32.totalorder %s21, 0
        %s301 = scalar_select %p300, %s21, 0
        %s302 = sadd.s32 %s301, %s299
        %s303 = smul.addr %s302, 4
        %s304 = scalar_lea.vmem %s0, %s303
      $region36: #{_lambda_.5} parent=31 // pred_fallthru
        _
      // Predicated region
      $region37: #{_lambda_.5} parent=31 // pred_check
        %p305 = pneg %p82
      $region38: #{_lambda_.5} parent=31 // pred_check_branch
        %307 = sbr.rel (%p305) target = $region40
      $region39: #{_lambda_.5} parent=31 // pred_region
        %p308 = scmp.lt.s32.totalorder %s20, 1
        %s309 = scalar_select %p308, %s20, 1
        %p310 = scmp.lt.s32.totalorder %s22, 0
        %s311 = scalar_select %p310, %s22, 0
        %s312 = sadd.s32 %s311, %s309
        %s313 = smul.addr %s312, 4
        %s314 = scalar_lea.vmem %s1, %s313
      $region40: #{_lambda_.5} parent=31 // pred_fallthru
        _
      // Predicated region
      $region41: #{_lambda_.5} parent=31 // pred_check
        %p315 = pneg %p110
      $region42: #{_lambda_.5} parent=31 // pred_check_branch
        %317 = sbr.rel (%p315) target = $region44
      $region43: #{_lambda_.5} parent=31 // pred_region
        %p318 = scmp.lt.s32.totalorder %s20, 1
        %s319 = scalar_select %p318, %s20, 1
        %p320 = scmp.lt.s32.totalorder %s22, 0
        %s321 = scalar_select %p320, %s22, 0
        %s322 = sadd.s32 %s321, %s319
        %s323 = smul.addr %s322, 4
        %s324 = scalar_lea.vmem %s2, %s323
      $region44: #{_lambda_.5} parent=31 // pred_fallthru
        _
    $region32: #{_lambda_.5} parent=5 // pred_fallthru
      _
    %p325 = scmp.le.s32.totalorder 1, %s13
    %p326 = scmp.lt.s32.totalorder %s13, 3
    %p327 = pnand %p325, %p326
    %p328 = pneg %p327
    // Predicated region
    $region45: #{_lambda_.5} parent=5 // pred_check
      _
    $region46: #{_lambda_.5} parent=5 // pred_check_branch
      %330 = sbr.rel (%p327) target = $region48
    $region47: #{_lambda_.5} parent=5 // pred_region
      %s331 = ssub.s32 %s13, 1
      %p332 = scmp.lt.s32.totalorder %s23, 1
      %s333 = scalar_select %p332, %s23, 1
      %p334 = scmp.lt.s32.totalorder %s24, 0
      %s335 = scalar_select %p334, %s24, 0
      %s336 = sadd.s32 %s335, %s333
      %s337 = smul.addr %s336, 4
      %s338 = scalar_lea.vmem %s0, %s337
      %p339 = pneg %p60
      %p340 = pneg %p57
      %p341 = scmp.lt.s32.totalorder %s23, 1
      %s342 = scalar_select %p341, %s23, 1
      %p343 = scmp.lt.s32.totalorder %s25, 0
      %s344 = scalar_select %p343, %s25, 0
      %s345 = sadd.s32 %s344, %s342
      %s346 = smul.addr %s345, 4
      %s347 = scalar_lea.vmem %s1, %s346
      %p348 = pneg %p88
      %p349 = pneg %p85
      %p350 = scmp.lt.s32.totalorder %s23, 1
      %s351 = scalar_select %p350, %s23, 1
      %p352 = scmp.lt.s32.totalorder %s25, 0
      %s353 = scalar_select %p352, %s25, 0
      %s354 = sadd.s32 %s353, %s351
      %s355 = smul.addr %s354, 4
      %s356 = scalar_lea.vmem %s2, %s355
      %p357 = pneg %p116
      %p358 = pneg %p113
      %p359 = scmp.lt.s32.totalorder %s24, 0
      %s360 = scalar_select %p359, %s24, 0
      %s361 = smul.addr %s360, 8
      %s362 = scalar_lea.vmem %s3, %s361
      %p363 = pneg %p142
      %p364 = pneg %p139
      %p365 = scmp.lt.s32.totalorder %s24, 0
      %s366 = scalar_select %p365, %s24, 0
      %s367 = smul.addr %s366, 8
      %s368 = scalar_lea.vmem %s4, %s367
      %p369 = pneg %p168
      %p370 = pneg %p165
      %p371 = scmp.lt.s32.totalorder %s25, 0
      %s372 = scalar_select %p371, %s25, 0
      %s373 = smul.addr %s372, 8
      %s374 = scalar_lea.vmem %s5, %s373
      %p375 = pneg %p194
      %p376 = pneg %p191
      %p377 = scmp.lt.s32.totalorder %s25, 0
      %s378 = scalar_select %p377, %s25, 0
      %s379 = smul.addr %s378, 8
      %s380 = scalar_lea.vmem %s6, %s379
      %p381 = pneg %p220
      %p382 = pneg %p217
      %p383 = pneg %p248
      %p384 = pneg %p245
      %p385 = scmp.lt.s32.totalorder %s23, 1
      %s386 = scalar_select %p385, %s23, 1
      %p387 = scmp.lt.s32.totalorder %s24, 0
      %s388 = scalar_select %p387, %s24, 0
      %s389 = sadd.s32 %s388, %s386
      %s390 = smul.addr %s389, 8
      %s391 = scalar_lea.vmem %s7, %s390
      %p392 = scmp.lt.s32.totalorder %s23, 1
      %s393 = scalar_select %p392, %s23, 1
      %p394 = scmp.lt.s32.totalorder %s24, 0
      %s395 = scalar_select %p394, %s24, 0
      %s396 = sadd.s32 %s395, %s393
      %s397 = smul.addr %s396, 4
      %s398 = scalar_lea.vmem %s0, %s397
      %p399 = scmp.lt.s32.totalorder %s23, 1
      %s400 = scalar_select %p399, %s23, 1
      %p401 = scmp.lt.s32.totalorder %s25, 0
      %s402 = scalar_select %p401, %s25, 0
      %s403 = sadd.s32 %s402, %s400
      %s404 = smul.addr %s403, 4
      %s405 = scalar_lea.vmem %s1, %s404
      %p406 = scmp.lt.s32.totalorder %s23, 1
      %s407 = scalar_select %p406, %s23, 1
      %p408 = scmp.lt.s32.totalorder %s25, 0
      %s409 = scalar_select %p408, %s25, 0
      %s410 = sadd.s32 %s409, %s407
      %s411 = smul.addr %s410, 4
      %s412 = scalar_lea.vmem %s2, %s411
      %p413 = scmp.lt.s32.totalorder %s24, 0
      %s414 = scalar_select %p413, %s24, 0
      %s415 = smul.addr %s414, 8
      %s416 = scalar_lea.vmem %s3, %s415
      %p417 = scmp.lt.s32.totalorder %s24, 0
      %s418 = scalar_select %p417, %s24, 0
      %s419 = smul.addr %s418, 8
      %s420 = scalar_lea.vmem %s4, %s419
      %p421 = scmp.lt.s32.totalorder %s25, 0
      %s422 = scalar_select %p421, %s25, 0
      %s423 = smul.addr %s422, 8
      %s424 = scalar_lea.vmem %s5, %s423
      %p425 = scmp.lt.s32.totalorder %s25, 0
      %s426 = scalar_select %p425, %s25, 0
      %s427 = smul.addr %s426, 8
      %s428 = scalar_lea.vmem %s6, %s427
      %p429 = scmp.lt.s32.totalorder %s23, 1
      %s430 = scalar_select %p429, %s23, 1
      %p431 = scmp.lt.s32.totalorder %s24, 0
      %s432 = scalar_select %p431, %s24, 0
      %s433 = sadd.s32 %s432, %s430
      %s434 = smul.addr %s433, 8
      %s435 = scalar_lea.vmem %s7, %s434
      %p437 = scmp.eq.s32.totalorder %s25, 0
      // Predicated region
      $region49: #{_lambda_.5} parent=47 // pred_check
        %p438 = pneg %p437
      $region50: #{_lambda_.5} parent=47 // pred_check_branch
        %440 = sbr.rel (%p438) target = $region52
      $region51: #{_lambda_.5} parent=47 // pred_region
        %vm441 = vcmask 7168
        %442 = vst.msk [vmem:[#allocation2] sm:$0xff] %vm441, -1e+30
        %443 = vst.msk [vmem:[#allocation2 + $0x8] sm:$0xff] %vm441, -1e+30
        %444 = vst.msk [vmem:[#allocation3] sm:$0xff] %vm441, 0.0
        %445 = vst.msk [vmem:[#allocation3 + $0x8] sm:$0xff] %vm441, 0.0
        %vm446 = vcmask 130048
        %447 = vst.msk [vmem:[#allocation4] sm:$0xff] %vm446, 0.0
        %448 = vst.msk [vmem:[#allocation4 + $0x8] sm:$0xff] %vm446, 0.0
      $region52: #{_lambda_.5} parent=47 // pred_fallthru
        _
      %s449 = smul.u32 %s25, 8
      %s450 = smul.u32 %s24, 8
      %s451 = sadd.s32 %s450, 7
      %p452 = scmp.le.s32.totalorder %s449, %s451
      // Predicated region
      $region53: #{_lambda_.5} parent=47 // pred_check
        %p453 = pneg %p452
      $region54: #{_lambda_.5} parent=47 // pred_check_branch
        %455 = sbr.rel (%p453) target = $region56
      $region55: #{_lambda_.5} parent=47 // pred_region
        %v456 = vlaneseq
        %v457 = vshrl.u32 %v456, 7
        %v458 = vstv %s450
        %v459 = vadd.s32 %v458, %v457
        %v460 = vlaneseq
        %v461 = vand.u32 %v460, 127
        %v462 = vstv %s449
        %v463 = vadd.s32 %v462, %v461
        %vm464 = vcmp.le.s32.totalorder %v463, %v459
        %vm465 = vcmp.lt.s32.totalorder %v463, 8
        %vm466 = vmand %vm464, %vm465
        %v467 = vsel %vm466, 0.0, -1e+30
        %v468 = vld [vmem:[%s416] sm:$0xff]
        %v469 = vld [vmem:[%s420] sm:$0xff]
        %v470 = vld [vmem:[%s424] sm:$0xff]
        %v471 = vld [vmem:[%s428] sm:$0xff]
        %v472 = vld [vmem:[%s398] sm:$0xf]
        %v473 = vunpack.c.l.bf16 %v472
        %v474 = vld [vmem:[%s405] sm:$0xf]
        %v475 = vunpack.c.l.bf16 %v474
        %v476 = vld [vmem:[%s412] sm:$0xf]
        %v477 = vmul.f32 %v473, %v468
        %v478 = vsub.f32 0.0, %v473
        %480 = vrot.lane.b32.xlu0 %v478, 120
        %v481 = vpop.permute.xlu0 %480
        %484 = vrot.lane.b32.xlu0 %v473, 8
        %v485 = vpop.permute.xlu0 %484
        %vm487 = vcmask 64512
        %v488 = vsel %vm487, %v481, %v485
        %v489 = vmul.f32 %v488, %v469
        %v490 = vadd.f32 %v477, %v489
        %v491 = vmul.f32 %v475, %v470
        %v492 = vsub.f32 0.0, %v475
        %494 = vrot.lane.b32.xlu0 %v492, 120
        %v495 = vpop.permute.xlu0 %494
        %498 = vrot.lane.b32.xlu0 %v475, 8
        %v499 = vpop.permute.xlu0 %498
        %v501 = vsel %vm487, %v495, %v499
        %v502 = vmul.f32 %v501, %v471
        %v503 = vadd.f32 %v491, %v502
        %v504 = vpack.c.bf16 %v490, %v490
        %v505 = vpack.c.bf16 %v503, %v503
        %vm506 = vcmask 130048
        %v508 = vsel %vm506, %v504, 0
        %v511 = vsel %vm506, %v505, 0
        %513 = vmatprep.subr.bf16.mxu0 0
        %514 = vmatpush1.bf16.xpose.msra.mxu0 %v511
        %515 = vmatprep.subr.bf16.mxu0 0
        %516 = vmatpush1.bf16.xpose.msra.mxu0 0
        %517 = vmatprep.subr.bf16.mxu0 0
        %518 = vmatpush1.bf16.xpose.msra.mxu0 0
        %519 = vmatprep.subr.bf16.mxu0 0
        %520 = vmatpush1.bf16.xpose.msra.mxu0 0
        %521 = vmatprep.subr.bf16.mxu0 0
        %522 = vmatpush1.bf16.xpose.msra.mxu0 0
        %523 = vmatprep.subr.bf16.mxu0 0
        %524 = vmatpush1.bf16.xpose.msra.mxu0 0
        %525 = vmatprep.subr.bf16.mxu0 0
        %526 = vmatpush1.bf16.xpose.msra.mxu0 0
        %527 = vmatprep.subr.bf16.mxu0 0
        %528 = vmatpush1.bf16.xpose.msra.mxu0 0
        %529 = vmatprep.subr.bf16.mxu0 0
        %530 = vmatpush1.bf16.xpose.msra.mxu0 0
        %531 = vmatprep.subr.bf16.mxu0 0
        %532 = vmatpush1.bf16.xpose.msra.mxu0 0
        %533 = vmatprep.subr.bf16.mxu0 0
        %534 = vmatpush1.bf16.xpose.msra.mxu0 0
        %535 = vmatprep.subr.bf16.mxu0 0
        %536 = vmatpush1.bf16.xpose.msra.mxu0 0
        %537 = vmatprep.subr.bf16.mxu0 0
        %538 = vmatpush1.bf16.xpose.msra.mxu0 0
        %539 = vmatprep.subr.bf16.mxu0 0
        %540 = vmatpush1.bf16.xpose.msra.mxu0 0
        %541 = vmatprep.subr.bf16.mxu0 0
        %542 = vmatpush1.bf16.xpose.msra.mxu0 0
        %543 = vmatprep.subr.bf16.mxu0 0
        %544 = vmatpush1.bf16.xpose.msra.mxu0 0
        %545 = vmatprep.mubr.bf16.mxu0 0
        %546 = vmatmul.mubr.bf16.gmra.mrb[0].mxu0 %v508
        %v547 = vpop.f32.mrb[0].mxu0
        %v548 = vadd.f32 %v467, %v547
        %v549 = vpop.f32.mrb[0].mxu0
        %v550 = vpop.f32.mrb[0].mxu0
        %v551 = vpop.f32.mrb[0].mxu0
        %552 = vdwg.mxu0
        %v553 = vld [vmem:[#allocation2] sm:$0xff]
        %v554 = vsel %vm487, %v548, -inf
        %555 = vmax.xlane.f32.xlu0 %v554
        %v556 = vpop.xlane.xlu0 %555
        %v557 = vmax.f32 %v553, %v556
        %v558 = vsub.f32 %v553, %v557
        %v559 = vmul.f32 %v558, 1.442695
        %v560 = vpow.pop %v559
        %562 = vset.pattern.permute.xlu0 0
        %563 = vperm.xlu0 %562, %v557
        %v564 = vpop.permute.xlu0 %563
        %v566 = vsub.f32 %v548, %v564
        %v567 = vmul.f32 %v566, 1.442695
        %v568 = vpow.pop %v567
        %v569 = vld [vmem:[#allocation3] sm:$0xff]
        %v570 = vmul.f32 %v560, %v569
        %v571 = vsel %vm487, %v568, 0.0
        %572 = vadd.xlane.f32.xlu0 %v571
        %v573 = vpop.xlane.xlu0 %572
        %v574 = vadd.f32 %v570, %v573
        %vm575 = vcmask 7168
        %576 = vst.msk [vmem:[#allocation3] sm:$0xff] %vm575, %v574
        %577 = vst.msk [vmem:[#allocation2] sm:$0xff] %vm575, %v557
        %v578 = vpack.c.bf16 %v568, %v568
        %v580 = vsel %vm487, %v578, 0
        %vm582 = vcmask 1043456
        %v584 = vsel %vm582, %v476, 0
        %586 = vmatprep.subr.bf16.mxu0 0
        %587 = vmatpush1.bf16.msra.mxu0 %v584
        %588 = vmatprep.subr.bf16.mxu0 0
        %589 = vmatpush1.bf16.msra.mxu0 0
        %590 = vmatprep.subr.bf16.mxu0 0
        %591 = vmatpush1.bf16.msra.mxu0 0
        %592 = vmatprep.subr.bf16.mxu0 0
        %593 = vmatpush1.bf16.msra.mxu0 0
        %594 = vmatprep.subr.bf16.mxu0 0
        %595 = vmatpush1.bf16.msra.mxu0 0
        %596 = vmatprep.subr.bf16.mxu0 0
        %597 = vmatpush1.bf16.msra.mxu0 0
        %598 = vmatprep.subr.bf16.mxu0 0
        %599 = vmatpush1.bf16.msra.mxu0 0
        %600 = vmatprep.subr.bf16.mxu0 0
        %601 = vmatpush1.bf16.msra.mxu0 0
        %602 = vmatprep.subr.bf16.mxu0 0
        %603 = vmatpush1.bf16.msra.mxu0 0
        %604 = vmatprep.subr.bf16.mxu0 0
        %605 = vmatpush1.bf16.msra.mxu0 0
        %606 = vmatprep.subr.bf16.mxu0 0
        %607 = vmatpush1.bf16.msra.mxu0 0
        %608 = vmatprep.subr.bf16.mxu0 0
        %609 = vmatpush1.bf16.msra.mxu0 0
        %610 = vmatprep.subr.bf16.mxu0 0
        %611 = vmatpush1.bf16.msra.mxu0 0
        %612 = vmatprep.subr.bf16.mxu0 0
        %613 = vmatpush1.bf16.msra.mxu0 0
        %614 = vmatprep.subr.bf16.mxu0 0
        %615 = vmatpush1.bf16.msra.mxu0 0
        %616 = vmatprep.subr.bf16.mxu0 0
        %617 = vmatpush1.bf16.msra.mxu0 0
        %618 = vmatprep.mubr.bf16.mxu0 0
        %619 = vmatmul.mubr.bf16.gmra.mrb[0].mxu0 %v580
        %v620 = vpop.f32.mrb[0].mxu0
        %v621 = vadd.f32 0.0, %v620
        %v622 = vpop.f32.mrb[0].mxu0
        %v623 = vpop.f32.mrb[0].mxu0
        %v624 = vpop.f32.mrb[0].mxu0
        %625 = vdwg.mxu0
        %v626 = vld [vmem:[#allocation4] sm:$0xff]
        %628 = vset.pattern.permute.xlu0 0
        %629 = vperm.xlu0 %628, %v560
        %v630 = vpop.permute.xlu0 %629
        %v632 = vmul.f32 %v630, %v626
        %v633 = vadd.f32 %v632, %v621
        %634 = vst.msk [vmem:[#allocation4] sm:$0xff] %vm506, %v633
        %636 = vrot.lane.b32.xlu0 %v468, 16
        %v637 = vpop.permute.xlu0 %636
        %v639 = vmul.f32 %v473, %v637
        %640 = vrot.lane.b32.xlu0 %v478, 104
        %v641 = vpop.permute.xlu0 %640
        %643 = vrot.lane.b32.xlu0 %v473, 120
        %v644 = vpop.permute.xlu0 %643
        %v646 = vsel %vm487, %v641, %v644
        %v647 = vmul.f32 %v646, %v469
        %649 = vrot.lane.b32.xlu0 %v647, 16
        %v650 = vpop.permute.xlu0 %649
        %v652 = vadd.f32 %v639, %v650
        %654 = vrot.lane.b32.xlu0 %v470, 16
        %v655 = vpop.permute.xlu0 %654
        %v657 = vmul.f32 %v475, %v655
        %658 = vrot.lane.b32.xlu0 %v492, 104
        %v659 = vpop.permute.xlu0 %658
        %661 = vrot.lane.b32.xlu0 %v475, 120
        %v662 = vpop.permute.xlu0 %661
        %v664 = vsel %vm487, %v659, %v662
        %v665 = vmul.f32 %v664, %v471
        %667 = vrot.lane.b32.xlu0 %v665, 16
        %v668 = vpop.permute.xlu0 %667
        %v670 = vadd.f32 %v657, %v668
        %v671 = vpack.c.bf16 %v652, %v652
        %v672 = vpack.c.bf16 %v670, %v670
        %674 = vrot.lane.b32.xlu0 %v671, 112
        %v675 = vpop.permute.xlu0 %674
        %677 = vrot.lane.b32.xlu0 %v672, 112
        %v678 = vpop.permute.xlu0 %677
        %v680 = vsel %vm506, %v675, 0
        %v683 = vsel %vm506, %v678, 0
        %685 = vmatprep.subr.bf16.mxu0 0
        %686 = vmatpush1.bf16.xpose.msra.mxu0 %v683
        %687 = vmatprep.subr.bf16.mxu0 0
        %688 = vmatpush1.bf16.xpose.msra.mxu0 0
        %689 = vmatprep.subr.bf16.mxu0 0
        %690 = vmatpush1.bf16.xpose.msra.mxu0 0
        %691 = vmatprep.subr.bf16.mxu0 0
        %692 = vmatpush1.bf16.xpose.msra.mxu0 0
        %693 = vmatprep.subr.bf16.mxu0 0
        %694 = vmatpush1.bf16.xpose.msra.mxu0 0
        %695 = vmatprep.subr.bf16.mxu0 0
        %696 = vmatpush1.bf16.xpose.msra.mxu0 0
        %697 = vmatprep.subr.bf16.mxu0 0
        %698 = vmatpush1.bf16.xpose.msra.mxu0 0
        %699 = vmatprep.subr.bf16.mxu0 0
        %700 = vmatpush1.bf16.xpose.msra.mxu0 0
        %701 = vmatprep.subr.bf16.mxu0 0
        %702 = vmatpush1.bf16.xpose.msra.mxu0 0
        %703 = vmatprep.subr.bf16.mxu0 0
        %704 = vmatpush1.bf16.xpose.msra.mxu0 0
        %705 = vmatprep.subr.bf16.mxu0 0
        %706 = vmatpush1.bf16.xpose.msra.mxu0 0
        %707 = vmatprep.subr.bf16.mxu0 0
        %708 = vmatpush1.bf16.xpose.msra.mxu0 0
        %709 = vmatprep.subr.bf16.mxu0 0
        %710 = vmatpush1.bf16.xpose.msra.mxu0 0
        %711 = vmatprep.subr.bf16.mxu0 0
        %712 = vmatpush1.bf16.xpose.msra.mxu0 0
        %713 = vmatprep.subr.bf16.mxu0 0
        %714 = vmatpush1.bf16.xpose.msra.mxu0 0
        %715 = vmatprep.subr.bf16.mxu0 0
        %716 = vmatpush1.bf16.xpose.msra.mxu0 0
        %717 = vmatprep.mubr.bf16.mxu0 0
        %718 = vmatmul.mubr.bf16.gmra.mrb[0].mxu0 %v680
        %v719 = vpop.f32.mrb[0].mxu0
        %v720 = vadd.f32 %v467, %v719
        %v721 = vpop.f32.mrb[0].mxu0
        %v722 = vpop.f32.mrb[0].mxu0
        %v723 = vpop.f32.mrb[0].mxu0
        %724 = vdwg.mxu0
        %s725 = scalar_lea.vmem [#allocation2], 8
        %v726 = vld [vmem:[%s725] sm:$0xff]
        %v727 = vsel %vm487, %v720, -inf
        %728 = vmax.xlane.f32.xlu0 %v727
        %v729 = vpop.xlane.xlu0 %728
        %v730 = vmax.f32 %v726, %v729
        %v731 = vsub.f32 %v726, %v730
        %v732 = vmul.f32 %v731, 1.442695
        %v733 = vpow.pop %v732
        %735 = vset.pattern.permute.xlu0 0
        %736 = vperm.xlu0 %735, %v730
        %v737 = vpop.permute.xlu0 %736
        %v739 = vsub.f32 %v720, %v737
        %v740 = vmul.f32 %v739, 1.442695
        %v741 = vpow.pop %v740
        %s742 = scalar_lea.vmem [#allocation3], 8
        %v743 = vld [vmem:[%s742] sm:$0xff]
        %v744 = vmul.f32 %v733, %v743
        %v745 = vsel %vm487, %v741, 0.0
        %746 = vadd.xlane.f32.xlu0 %v745
        %v747 = vpop.xlane.xlu0 %746
        %v748 = vadd.f32 %v744, %v747
        %749 = vst.msk [vmem:[%s742] sm:$0xff] %vm575, %v748
        %750 = vst.msk [vmem:[%s725] sm:$0xff] %vm575, %v730
        %v751 = vpack.c.bf16 %v741, %v741
        %v753 = vunpack.c.l.b16 %v476
        %v754 = vpack.c.b16 %v753, %v753
        %755 = vrot.lane.b32.xlu0 %v754, 112
        %v756 = vpop.permute.xlu0 %755
        %v758 = vsel %vm487, %v751, 0
        %v761 = vsel %vm582, %v756, 0
        %763 = vmatprep.subr.bf16.mxu0 0
        %764 = vmatpush1.bf16.msra.mxu0 %v761
        %765 = vmatprep.subr.bf16.mxu0 0
        %766 = vmatpush1.bf16.msra.mxu0 0
        %767 = vmatprep.subr.bf16.mxu0 0
        %768 = vmatpush1.bf16.msra.mxu0 0
        %769 = vmatprep.subr.bf16.mxu0 0
        %770 = vmatpush1.bf16.msra.mxu0 0
        %771 = vmatprep.subr.bf16.mxu0 0
        %772 = vmatpush1.bf16.msra.mxu0 0
        %773 = vmatprep.subr.bf16.mxu0 0
        %774 = vmatpush1.bf16.msra.mxu0 0
        %775 = vmatprep.subr.bf16.mxu0 0
        %776 = vmatpush1.bf16.msra.mxu0 0
        %777 = vmatprep.subr.bf16.mxu0 0
        %778 = vmatpush1.bf16.msra.mxu0 0
        %779 = vmatprep.subr.bf16.mxu0 0
        %780 = vmatpush1.bf16.msra.mxu0 0
        %781 = vmatprep.subr.bf16.mxu0 0
        %782 = vmatpush1.bf16.msra.mxu0 0
        %783 = vmatprep.subr.bf16.mxu0 0
        %784 = vmatpush1.bf16.msra.mxu0 0
        %785 = vmatprep.subr.bf16.mxu0 0
        %786 = vmatpush1.bf16.msra.mxu0 0
        %787 = vmatprep.subr.bf16.mxu0 0
        %788 = vmatpush1.bf16.msra.mxu0 0
        %789 = vmatprep.subr.bf16.mxu0 0
        %790 = vmatpush1.bf16.msra.mxu0 0
        %791 = vmatprep.subr.bf16.mxu0 0
        %792 = vmatpush1.bf16.msra.mxu0 0
        %793 = vmatprep.subr.bf16.mxu0 0
        %794 = vmatpush1.bf16.msra.mxu0 0
        %795 = vmatprep.mubr.bf16.mxu0 0
        %796 = vmatmul.mubr.bf16.gmra.mrb[0].mxu0 %v758
        %v797 = vpop.f32.mrb[0].mxu0
        %v798 = vadd.f32 0.0, %v797
        %v799 = vpop.f32.mrb[0].mxu0
        %v800 = vpop.f32.mrb[0].mxu0
        %v801 = vpop.f32.mrb[0].mxu0
        %802 = vdwg.mxu0
        %s803 = scalar_lea.vmem [#allocation4], 8
        %v804 = vld [vmem:[%s803] sm:$0xff]
        %806 = vset.pattern.permute.xlu0 0
        %807 = vperm.xlu0 %806, %v733
        %v808 = vpop.permute.xlu0 %807
        %v810 = vmul.f32 %v808, %v804
        %v811 = vadd.f32 %v810, %v798
        %812 = vst.msk [vmem:[%s803] sm:$0xff] %vm506, %v811
      $region56: #{_lambda_.5} parent=47 // pred_fallthru
        _
      // Predicated region
      $region57: #{_lambda_.5} parent=47 // pred_check
        %p813 = pneg %p437
      $region58: #{_lambda_.5} parent=47 // pred_check_branch
        %815 = sbr.rel (%p813) target = $region60
      $region59: #{_lambda_.5} parent=47 // pred_region
        %v816 = vld [vmem:[#allocation4] sm:$0xff]
        %v817 = vld [vmem:[#allocation3] sm:$0xff]
        %v818 = vrcp.pop %v817
        %820 = vset.pattern.permute.xlu0 0
        %821 = vperm.xlu0 %820, %v818
        %v822 = vpop.permute.xlu0 %821
        %v824 = vmul.f32 %v816, %v822
        %s825 = scalar_lea.vmem [#allocation4], 8
        %v826 = vld [vmem:[%s825] sm:$0xff]
        %s827 = scalar_lea.vmem [#allocation3], 8
        %v828 = vld [vmem:[%s827] sm:$0xff]
        %v829 = vrcp.pop %v828
        %831 = vset.pattern.permute.xlu0 0
        %832 = vperm.xlu0 %831, %v829
        %v833 = vpop.permute.xlu0 %832
        %v835 = vmul.f32 %v826, %v833
        %837 = vrot.lane.b32.xlu0 %v835, 16
        %v838 = vpop.permute.xlu0 %837
        %vm840 = vcmask 130048
        %v841 = vsel %vm840, %v824, %v838
        %vm842 = vcmask 261120
        %843 = vst.msk [vmem:[%s435] sm:$0xff] %vm842, %v841
      $region60: #{_lambda_.5} parent=47 // pred_fallthru
        _
      %p844 = scmp.lt.s32.totalorder %s23, 1
      %s845 = scalar_select %p844, %s23, 1
      %p846 = scmp.lt.s32.totalorder %s24, 0
      %s847 = scalar_select %p846, %s24, 0
      %s848 = sadd.s32 %s847, %s845
      %s849 = smul.addr %s848, 8
      %s850 = scalar_lea.vmem %s7, %s849
      // Predicated region
      $region61: #{_lambda_.5} parent=47 // pred_check
        %p851 = pneg %p245
      $region62: #{_lambda_.5} parent=47 // pred_check_branch
        %853 = sbr.rel (%p851) target = $region64
      $region63: #{_lambda_.5} parent=47 // pred_region
        _
      $region64: #{_lambda_.5} parent=47 // pred_fallthru
        _
    $region48: #{_lambda_.5} parent=5 // pred_fallthru
      _
    %p854 = scmp.le.s32.totalorder 2, %s13
    // Predicated region
    $region65: #{_lambda_.5} parent=5 // pred_check
      %p855 = pneg %p854
    $region66: #{_lambda_.5} parent=5 // pred_check_branch
      %857 = sbr.rel (%p855) target = $region68
    $region67: #{_lambda_.5} parent=5 // pred_region
      %s858 = ssub.s32 %s13, 2
      // Predicated region
      $region69: #{_lambda_.5} parent=67 // pred_check
        %p859 = pneg %p251
      $region70: #{_lambda_.5} parent=67 // pred_check_branch
        %861 = sbr.rel (%p859) target = $region72
      $region71: #{_lambda_.5} parent=67 // pred_region
        %p862 = scmp.lt.s32.totalorder %s26, 1
        %s863 = scalar_select %p862, %s26, 1
        %p864 = scmp.lt.s32.totalorder %s27, 0
        %s865 = scalar_select %p864, %s27, 0
        %s866 = sadd.s32 %s865, %s863
        %s867 = smul.addr %s866, 8
        %s868 = scalar_lea.vmem %s7, %s867
      $region72: #{_lambda_.5} parent=67 // pred_fallthru
        _
    $region68: #{_lambda_.5} parent=5 // pred_fallthru
      _
  $region6: #{_lambda_.5} parent=0 // loop_footer
    %s17 = sadd.s32 1, %s13
  $region7: #{_lambda_.5} parent=0 // loop_footer_branch
    %12 = sbr.rel target = $region3
  $region8: #{_lambda_.5} parent=0 // loop_exit
    _

</llo_original>
